<compile_context>
chip_gen: v7x
topology: tpu7x:2x2x1
jax: 0.10.0
libtpu: 0.0.40
codegen_flags: <defaults>
</compile_context>

<pallas_src>
import functools
import math

import jax
import jax.numpy as jnp
from jax.experimental import pallas as pl
from jax.experimental.pallas import tpu as pltpu

_LANE = 128
_SUBLANE = 8


def _round_up(n, m):
    return (n + m - 1) // m * m


def _pinn_kernel(num_linear, compute_dtype, x_ref, *refs):
    """refs = (w0, b0, w1, b1, ..., w_{L-1}, b_{L-1}, out_ref).

    Hidden weights are zero-padded to 128-lane multiples, so padded lanes of
    every activation are exactly 0 (tanh(0) = 0) and the math matches the
    unpadded network.  The final weight keeps its real output width, so the
    result tile is (tile, out_dim) and is stored directly.
    """
    out_ref = refs[-1]
    params = refs[:-1]

    use_f32 = jnp.dtype(compute_dtype) == jnp.dtype(jnp.float32)
    precision = (jax.lax.Precision.HIGHEST if use_f32
                 else jax.lax.Precision.DEFAULT)

    h = x_ref[...]  # (tile, 8) f32: [x, y, t, 0, 0, 0, 0, 0]
    for li in range(num_linear):
        w = params[2 * li][...]        # (in_pad, out_pad) f32
        b = params[2 * li + 1][...]    # (1, out_pad) f32
        h = jnp.dot(h.astype(compute_dtype), w.astype(compute_dtype),
                    preferred_element_type=jnp.float32,
                    precision=precision) + b
        if li < num_linear - 1:
            h = jnp.tanh(h)
    out_ref[...] = h.astype(out_ref.dtype)


def pad_params(weights, biases):
    """Zero-pad parameters ONCE (call after every parameter update, not per
    forward).  weights[i]: [in_i, out_i] (transpose of the torch [out, in]
    layout), biases[i]: [out_i].  Hidden dims are padded to 128 lanes; the
    first layer's input dim is padded to 8 (matching the [x y t 0...] slab);
    the final output dim is kept at its real width."""
    num_linear = len(weights)
    assert weights[0].shape[0] == 3, "PINN_Net input is cat([x, y, t], dim=1)"
    out_dim = int(weights[-1].shape[1])
    pw, pb = [], []
    for li, (w, b) in enumerate(zip(weights, biases)):
        in_d, out_d = w.shape
        ip = _round_up(in_d, _SUBLANE) if li == 0 else _round_up(in_d, _LANE)
        op = out_d if li == num_linear - 1 else _round_up(out_d, _LANE)
        wp = jnp.zeros((ip, op), jnp.float32).at[:in_d, :out_d].set(
            w.astype(jnp.float32))
        bp = jnp.zeros((1, op), jnp.float32).at[0, :out_d].set(
            b.astype(jnp.float32))
        pw.append(wp)
        pb.append(bp)
    return pw, pb, out_dim


def pinn_forward(x, y, t, params, *, tile_m=8192, compute_dtype=jnp.float32):
    """x, y, t: [N, 1] f32 collocation coordinates.  params = pad_params(...).
    Returns [N, out_dim] f32 == PINN_Net.forward(x, y, t)."""
    padded_w, padded_b, out_dim = params
    num_linear = len(padded_w)

    x = x.reshape(-1, 1).astype(jnp.float32)
    y = y.reshape(-1, 1).astype(jnp.float32)
    t = t.reshape(-1, 1).astype(jnp.float32)
    N = x.shape[0]

    in_width = padded_w[0].shape[0]  # 8
    X = jnp.concatenate(
        [x, y, t, jnp.zeros((N, in_width - 3), jnp.float32)], axis=1)

    # Big batch tiles amortize the ~0.35us per-grid-step overhead; large N
    # naturally gives >= 2 steps for v7x's two TensorCores.  VMEM per step at
    # tile=8192 is ~10-15 MiB (< 32 MiB scoped default on every generation).
    tile = max(_SUBLANE, min(tile_m, _round_up(N, _SUBLANE)))
    grid = (pl.cdiv(N, tile),)

    args = [X]
    in_specs = [pl.BlockSpec((tile, in_width), lambda i: (i, 0))]
    for w, b in zip(padded_w, padded_b):
        in_specs.append(pl.BlockSpec(w.shape, lambda i: (0, 0)))
        in_specs.append(pl.BlockSpec(b.shape, lambda i: (0, 0)))
        args.append(w)
        args.append(b)

    # Output block is exactly the real columns: 12 B/row writeback, no wrapper
    # slice afterwards.
    out_spec = pl.BlockSpec((tile, out_dim), lambda i: (i, 0))

    return pl.pallas_call(
        functools.partial(_pinn_kernel, num_linear, compute_dtype),
        out_shape=jax.ShapeDtypeStruct((N, out_dim), jnp.float32),
        grid_spec=pltpu.PrefetchScalarGridSpec(
            num_scalar_prefetch=0,
            grid=grid,
            in_specs=in_specs,
            out_specs=out_spec,
        ),
        compiler_params=pltpu.CompilerParams(
            dimension_semantics=("parallel",),
        ),
    )(*args)


def init_params(layer_mat, key):
    """Deterministic xavier_normal_ weights (stored as [in, out]) and zero
    biases, matching PINN_Net.Initial_param()."""
    weights, biases = [], []
    for i in range(len(layer_mat) - 1):
        fan_in, fan_out = layer_mat[i], layer_mat[i + 1]
        key, sub = jax.random.split(key)
        std = math.sqrt(2.0 / (fan_in + fan_out))
        # torch weight is [out, in]; we store the transpose [in, out].
        w = (std * jax.random.normal(sub, (fan_out, fan_in), jnp.float32)).T
        weights.append(w)
        biases.append(jnp.zeros((fan_out,), jnp.float32))
    return weights, biases


def reference_forward(x, y, t, weights, biases):
    h = jnp.concatenate([x, y, t], axis=1)
    for i, (w, b) in enumerate(zip(weights, biases)):
        h = jnp.dot(h, w, precision=jax.lax.Precision.HIGHEST) + b
        if i < len(weights) - 1:
            h = jnp.tanh(h)
    return h


if __name__ == "__main__":
    key = jax.random.PRNGKey(0)

    # layer_mat as in the PINN paper: 3 inputs (x, y, t) -> hidden -> hidden
    # -> 3 outputs (u, v, p).
    layer_mat = [3, 32, 32, 3]

    key, kp = jax.random.split(key)
    weights, biases = init_params(layer_mat, kp)
    params = pad_params(weights, biases)  # padded once, reused per call

    def make_inputs(n, k):
        kx, ky, kt = jax.random.split(k, 3)
        return (jax.random.normal(kx, (n, 1), jnp.float32),
                jax.random.normal(ky, (n, 1), jnp.float32),
                jax.random.normal(kt, (n, 1), jnp.float32))

    # Case 1: default tile (single full block), f32 matmuls.
    key, k1 = jax.random.split(key)
    x1, y1, t1 = make_inputs(200, k1)
    out1 = jax.block_until_ready(pinn_forward(x1, y1, t1, params))
    ref1 = reference_forward(x1, y1, t1, weights, biases)
    assert out1.shape == (200, layer_mat[-1])
    assert jnp.allclose(out1, ref1, atol=1e-5, rtol=1e-5), \
        float(jnp.max(jnp.abs(out1 - ref1)))

    # Case 2: multi-step grid with a partial last batch block.
    key, k2 = jax.random.split(key)
    x2, y2, t2 = make_inputs(203, k2)
    out2 = jax.block_until_ready(pinn_forward(x2, y2, t2, params, tile_m=64))
    ref2 = reference_forward(x2, y2, t2, weights, biases)
    assert out2.shape == (203, layer_mat[-1])
    assert jnp.allclose(out2, ref2, atol=1e-5, rtol=1e-5), \
        float(jnp.max(jnp.abs(out2 - ref2)))

    # Case 3: bf16-operand / f32-accumulate MXU fast path (looser tolerance).
    out3 = jax.block_until_ready(
        pinn_forward(x1, y1, t1, params, compute_dtype=jnp.bfloat16))
    assert jnp.allclose(out3, ref1, atol=5e-2, rtol=5e-2), \
        float(jnp.max(jnp.abs(out3 - ref1)))

    print("KERNEL_OK")
</pallas_src>

<mosaic_0001>
module attributes {stable_mosaic.version = 11 : i64} {
  func.func @_pinn_kernel(%arg0: i32, %arg1: memref<200x8xf32, #tpu.memory_space<vmem>>, %arg2: memref<8x128xf32, #tpu.memory_space<vmem>>, %arg3: memref<1x128xf32, #tpu.memory_space<vmem>>, %arg4: memref<128x128xf32, #tpu.memory_space<vmem>>, %arg5: memref<1x128xf32, #tpu.memory_space<vmem>>, %arg6: memref<128x3xf32, #tpu.memory_space<vmem>>, %arg7: memref<1x3xf32, #tpu.memory_space<vmem>>, %arg8: memref<200x3xf32, #tpu.memory_space<vmem>>) attributes {dimension_semantics = [#tpu.dimension_semantics<parallel>], iteration_bounds = array<i64: 1>, scalar_prefetch = 0 : i64, scratch_operands = 0 : i64, tpu.core_type = #tpu.core_type<tc>, window_params = [{transform_indices = @transform_0, window_bounds = array<i64: 200, 8>}, {pipeline_mode = #tpu.pipeline_mode<synchronous>, transform_indices = @transform_1, window_bounds = array<i64: 8, 128>}, {pipeline_mode = #tpu.pipeline_mode<synchronous>, transform_indices = @transform_2, window_bounds = array<i64: 1, 128>}, {pipeline_mode = #tpu.pipeline_mode<synchronous>, transform_indices = @transform_3, window_bounds = array<i64: 128, 128>}, {pipeline_mode = #tpu.pipeline_mode<synchronous>, transform_indices = @transform_4, window_bounds = array<i64: 1, 128>}, {pipeline_mode = #tpu.pipeline_mode<synchronous>, transform_indices = @transform_5, window_bounds = array<i64: 128, 3>}, {pipeline_mode = #tpu.pipeline_mode<synchronous>, transform_indices = @transform_6, window_bounds = array<i64: 1, 3>}, {transform_indices = @transform_7, window_bounds = array<i64: 200, 3>}]} {
    %c0 = arith.constant 0 : index
    %c0_0 = arith.constant 0 : index
    %0 = vector.load %arg1[%c0, %c0_0] : memref<200x8xf32, #tpu.memory_space<vmem>>, vector<200x8xf32>
    %c0_1 = arith.constant 0 : index
    %c0_2 = arith.constant 0 : index
    %1 = vector.load %arg2[%c0_1, %c0_2] : memref<8x128xf32, #tpu.memory_space<vmem>>, vector<8x128xf32>
    %c0_3 = arith.constant 0 : index
    %c0_4 = arith.constant 0 : index
    %2 = vector.load %arg3[%c0_3, %c0_4] : memref<1x128xf32, #tpu.memory_space<vmem>>, vector<1x128xf32>
    %cst = arith.constant dense<0.000000e+00> : vector<200x128xf32>
    %3 = tpu.matmul %0, %1, %cst {dimension_numbers = #tpu.dot_dimension_numbers<[1], [0], [0], [1], [0, 0, 1, 1], [], []>, precision = #tpu.contract_precision<fp32>} : vector<200x8xf32>, vector<8x128xf32>, vector<200x128xf32> -> vector<200x128xf32>
    %4 = vector.broadcast %2 : vector<1x128xf32> to vector<200x128xf32>
    %5 = arith.addf %3, %4 : vector<200x128xf32>
    %6 = math.tanh %5 : vector<200x128xf32>
    %c0_5 = arith.constant 0 : index
    %c0_6 = arith.constant 0 : index
    %7 = vector.load %arg4[%c0_5, %c0_6] : memref<128x128xf32, #tpu.memory_space<vmem>>, vector<128x128xf32>
    %c0_7 = arith.constant 0 : index
    %c0_8 = arith.constant 0 : index
    %8 = vector.load %arg5[%c0_7, %c0_8] : memref<1x128xf32, #tpu.memory_space<vmem>>, vector<1x128xf32>
    %cst_9 = arith.constant dense<0.000000e+00> : vector<200x128xf32>
    %9 = tpu.matmul %6, %7, %cst_9 {dimension_numbers = #tpu.dot_dimension_numbers<[1], [0], [0], [1], [0, 0, 1, 1], [], []>, precision = #tpu.contract_precision<fp32>} : vector<200x128xf32>, vector<128x128xf32>, vector<200x128xf32> -> vector<200x128xf32>
    %10 = vector.broadcast %8 : vector<1x128xf32> to vector<200x128xf32>
    %11 = arith.addf %9, %10 : vector<200x128xf32>
    %12 = math.tanh %11 : vector<200x128xf32>
    %c0_10 = arith.constant 0 : index
    %c0_11 = arith.constant 0 : index
    %13 = vector.load %arg6[%c0_10, %c0_11] : memref<128x3xf32, #tpu.memory_space<vmem>>, vector<128x3xf32>
    %c0_12 = arith.constant 0 : index
    %c0_13 = arith.constant 0 : index
    %14 = vector.load %arg7[%c0_12, %c0_13] : memref<1x3xf32, #tpu.memory_space<vmem>>, vector<1x3xf32>
    %cst_14 = arith.constant dense<0.000000e+00> : vector<200x3xf32>
    %15 = tpu.matmul %12, %13, %cst_14 {dimension_numbers = #tpu.dot_dimension_numbers<[1], [0], [0], [1], [0, 0, 1, 1], [], []>, precision = #tpu.contract_precision<fp32>} : vector<200x128xf32>, vector<128x3xf32>, vector<200x3xf32> -> vector<200x3xf32>
    %16 = vector.broadcast %14 : vector<1x3xf32> to vector<200x3xf32>
    %17 = arith.addf %15, %16 : vector<200x3xf32>
    %c0_15 = arith.constant 0 : index
    %c0_16 = arith.constant 0 : index
    %18 = vector.load %arg8[%c0_15, %c0_16] : memref<200x3xf32, #tpu.memory_space<vmem>>, vector<200x3xf32>
    tpu.vector_store %arg8[%c0_15, %c0_16], %17 {strides = array<i32>} : memref<200x3xf32, #tpu.memory_space<vmem>>, vector<200x3xf32>,
    return
  }
  func.func @transform_0(%arg0: i32) -> (i32, i32) {
    %c0_i32 = arith.constant 0 : i32
    %c0_i32_0 = arith.constant 0 : i32
    return %arg0, %c0_i32 : i32, i32
  }
  func.func @transform_1(%arg0: i32) -> (i32, i32) {
    %c0_i32 = arith.constant 0 : i32
    %c0_i32_0 = arith.constant 0 : i32
    %c0_i32_1 = arith.constant 0 : i32
    return %c0_i32, %c0_i32_0 : i32, i32
  }
  func.func @transform_2(%arg0: i32) -> (i32, i32) {
    %c0_i32 = arith.constant 0 : i32
    %c0_i32_0 = arith.constant 0 : i32
    %c0_i32_1 = arith.constant 0 : i32
    return %c0_i32, %c0_i32_0 : i32, i32
  }
  func.func @transform_3(%arg0: i32) -> (i32, i32) {
    %c0_i32 = arith.constant 0 : i32
    %c0_i32_0 = arith.constant 0 : i32
    %c0_i32_1 = arith.constant 0 : i32
    return %c0_i32, %c0_i32_0 : i32, i32
  }
  func.func @transform_4(%arg0: i32) -> (i32, i32) {
    %c0_i32 = arith.constant 0 : i32
    %c0_i32_0 = arith.constant 0 : i32
    %c0_i32_1 = arith.constant 0 : i32
    return %c0_i32, %c0_i32_0 : i32, i32
  }
  func.func @transform_5(%arg0: i32) -> (i32, i32) {
    %c0_i32 = arith.constant 0 : i32
    %c0_i32_0 = arith.constant 0 : i32
    %c0_i32_1 = arith.constant 0 : i32
    return %c0_i32, %c0_i32_0 : i32, i32
  }
  func.func @transform_6(%arg0: i32) -> (i32, i32) {
    %c0_i32 = arith.constant 0 : i32
    %c0_i32_0 = arith.constant 0 : i32
    %c0_i32_1 = arith.constant 0 : i32
    return %c0_i32, %c0_i32_0 : i32, i32
  }
  func.func @transform_7(%arg0: i32) -> (i32, i32) {
    %c0_i32 = arith.constant 0 : i32
    %c0_i32_0 = arith.constant 0 : i32
    return %arg0, %c0_i32 : i32, i32
  }
}

</mosaic_0001>

<llo_original>
// kernel: tpu_custom_call.1
$region0: #{tpu_custom_call.1}
  #allocation0 [shape = 'u32[]', space=smem, size = 0x4, offset = 0x4, fixed_abs, tag = 'smem constant byte address 0x4 - core index']
  #allocation1 [shape = 'u32[144,128]{1,0:T(1,128)}', space=vmem, size = 0x12000, scoped, tag = 'internal scratch']
  %s0 = inlined_call_operand.vmem [shape: f32[200,8], index: 0, kind: input, shape index: {}]
  %s1 = inlined_call_operand.vmem [shape: f32[8,128], index: 1, kind: input, shape index: {}]
  %s2 = inlined_call_operand.vmem [shape: f32[1,128], index: 2, kind: input, shape index: {}]
  %s3 = inlined_call_operand.vmem [shape: f32[128,128], index: 3, kind: input, shape index: {}]
  %s4 = inlined_call_operand.vmem [shape: f32[1,128], index: 4, kind: input, shape index: {}]
  %s5 = inlined_call_operand.vmem [shape: f32[128,3], index: 5, kind: input, shape index: {}]
  %s6 = inlined_call_operand.vmem [shape: f32[1,3], index: 6, kind: input, shape index: {}]
  %s7 = inlined_call_operand.vmem [shape: f32[200,3], index: 7, kind: output, shape index: {}]
  %s8 = sld [smem:[#allocation0]]
  $region38: #{tpu_custom_call.1} parent=0
    _
  %s10 = ssub.s32 1, %s8
  %s11 = scalar_select 0, %s10, %s8
  // Predicated region
  $region2: #{tpu_custom_call.1} parent=0 // pred_check
    _
  $region3: #{tpu_custom_call.1} parent=0 // pred_check_branch
    %13 = sbr.rel (0) target = $region5
  $region4: #{tpu_custom_call.1} parent=0 // pred_region
    _
  $region5: #{tpu_custom_call.1} parent=0 // pred_fallthru
    _
  // Predicated region
  $region6: #{tpu_custom_call.1} parent=0 // pred_check
    _
  $region7: #{tpu_custom_call.1} parent=0 // pred_check_branch
    %15 = sbr.rel (0) target = $region9
  $region8: #{tpu_custom_call.1} parent=0 // pred_region
    _
  $region9: #{tpu_custom_call.1} parent=0 // pred_fallthru
    _
  // Predicated region
  $region10: #{tpu_custom_call.1} parent=0 // pred_check
    _
  $region11: #{tpu_custom_call.1} parent=0 // pred_check_branch
    %17 = sbr.rel (0) target = $region13
  $region12: #{tpu_custom_call.1} parent=0 // pred_region
    _
  $region13: #{tpu_custom_call.1} parent=0 // pred_fallthru
    _
  // Predicated region
  $region14: #{tpu_custom_call.1} parent=0 // pred_check
    _
  $region15: #{tpu_custom_call.1} parent=0 // pred_check_branch
    %19 = sbr.rel (0) target = $region17
  $region16: #{tpu_custom_call.1} parent=0 // pred_region
    _
  $region17: #{tpu_custom_call.1} parent=0 // pred_fallthru
    _
  // Predicated region
  $region18: #{tpu_custom_call.1} parent=0 // pred_check
    _
  $region19: #{tpu_custom_call.1} parent=0 // pred_check_branch
    %21 = sbr.rel (0) target = $region21
  $region20: #{tpu_custom_call.1} parent=0 // pred_region
    _
  $region21: #{tpu_custom_call.1} parent=0 // pred_fallthru
    _
  // Predicated region
  $region22: #{tpu_custom_call.1} parent=0 // pred_check
    _
  $region23: #{tpu_custom_call.1} parent=0 // pred_check_branch
    %23 = sbr.rel (0) target = $region25
  $region24: #{tpu_custom_call.1} parent=0 // pred_region
    _
  $region25: #{tpu_custom_call.1} parent=0 // pred_fallthru
    _
  // Predicated region
  $region26: #{tpu_custom_call.1} parent=0 // pred_check
    _
  $region27: #{tpu_custom_call.1} parent=0 // pred_check_branch
    %25 = sbr.rel (0) target = $region29
  $region28: #{tpu_custom_call.1} parent=0 // pred_region
    _
  $region29: #{tpu_custom_call.1} parent=0 // pred_fallthru
    _
  %v26 = vld [vmem:[%s0] sm:$0xff]
  %v27 = vld [vmem:[%s0 + $0x8] sm:$0xff]
  %v28 = vld [vmem:[%s0 + $0x10] sm:$0xff]
  %v29 = vld [vmem:[%s0 + $0x18] sm:$0xff]
  %v30 = vld [vmem:[%s0 + $0x20] sm:$0xff]
  %v31 = vld [vmem:[%s0 + $0x28] sm:$0xff]
  %v32 = vld [vmem:[%s0 + $0x30] sm:$0xff]
  %v33 = vld [vmem:[%s0 + $0x38] sm:$0xff]
  %v34 = vld [vmem:[%s0 + $0x40] sm:$0xff]
  %v35 = vld [vmem:[%s0 + $0x48] sm:$0xff]
  %v36 = vld [vmem:[%s0 + $0x50] sm:$0xff]
  %v37 = vld [vmem:[%s0 + $0x58] sm:$0xff]
  %v38 = vld [vmem:[%s0 + $0x60] sm:$0xff]
  %v39 = vld [vmem:[%s0 + $0x68] sm:$0xff]
  %v40 = vld [vmem:[%s0 + $0x70] sm:$0xff]
  %v41 = vld [vmem:[%s0 + $0x78] sm:$0xff]
  %v42 = vld [vmem:[%s0 + $0x80] sm:$0xff]
  %v43 = vld [vmem:[%s0 + $0x88] sm:$0xff]
  %v44 = vld [vmem:[%s0 + $0x90] sm:$0xff]
  %v45 = vld [vmem:[%s0 + $0x98] sm:$0xff]
  %v46 = vld [vmem:[%s0 + $0xa0] sm:$0xff]
  %v47 = vld [vmem:[%s0 + $0xa8] sm:$0xff]
  %v48 = vld [vmem:[%s0 + $0xb0] sm:$0xff]
  %v49 = vld [vmem:[%s0 + $0xb8] sm:$0xff]
  %v50 = vld [vmem:[%s0 + $0xc0] sm:$0xff]
  %v51 = vld [vmem:[%s1] sm:$0xff]
  %v52 = vld [vmem:[%s2] sm:$0x1]
  %v54 = vlaneseq
  %v55 = vshrl.u32 %v54, 7
  %v56 = vsub.s32 0, %v55
  %v57 = vrot.slane %v52, %v56
  %vm59 = vcmask 64512
  %v61 = vsel %vm59, %v26, 0
  %v64 = vsel %vm59, %v27, 0
  %v67 = vsel %vm59, %v28, 0
  %v70 = vsel %vm59, %v29, 0
  %v73 = vsel %vm59, %v30, 0
  %v76 = vsel %vm59, %v31, 0
  %v79 = vsel %vm59, %v32, 0
  %v82 = vsel %vm59, %v33, 0
  %v85 = vsel %vm59, %v34, 0
  %v88 = vsel %vm59, %v35, 0
  %v91 = vsel %vm59, %v36, 0
  %v94 = vsel %vm59, %v37, 0
  %v97 = vsel %vm59, %v38, 0
  %v100 = vsel %vm59, %v39, 0
  %v103 = vsel %vm59, %v40, 0
  %v106 = vsel %vm59, %v41, 0
  %v109 = vsel %vm59, %v42, 0
  %v112 = vsel %vm59, %v43, 0
  %v115 = vsel %vm59, %v44, 0
  %v118 = vsel %vm59, %v45, 0
  %v121 = vsel %vm59, %v46, 0
  %v124 = vsel %vm59, %v47, 0
  %v127 = vsel %vm59, %v48, 0
  %v130 = vsel %vm59, %v49, 0
  %v133 = vsel %vm59, %v50, 0
  %135 = vmatprep.subr.mxu0 0.0
  %v136 = vand.u32 %v51, 4294901760
  %137 = vmatpush1.msra.mxu0 %v136
  %138 = vmatprep.subr.mxu0 0.0
  %139 = vmatpush1.msra.mxu0 0.0
  %140 = vmatprep.subr.mxu0 0.0
  %141 = vmatpush1.msra.mxu0 0.0
  %142 = vmatprep.subr.mxu0 0.0
  %143 = vmatpush1.msra.mxu0 0.0
  %144 = vmatprep.subr.mxu0 0.0
  %145 = vmatpush1.msra.mxu0 0.0
  %146 = vmatprep.subr.mxu0 0.0
  %147 = vmatpush1.msra.mxu0 0.0
  %148 = vmatprep.subr.mxu0 0.0
  %149 = vmatpush1.msra.mxu0 0.0
  %150 = vmatprep.subr.mxu0 0.0
  %151 = vmatpush1.msra.mxu0 0.0
  %152 = vmatprep.subr.mxu0 0.0
  %153 = vmatpush1.msra.mxu0 0.0
  %154 = vmatprep.subr.mxu0 0.0
  %155 = vmatpush1.msra.mxu0 0.0
  %156 = vmatprep.subr.mxu0 0.0
  %157 = vmatpush1.msra.mxu0 0.0
  %158 = vmatprep.subr.mxu0 0.0
  %159 = vmatpush1.msra.mxu0 0.0
  %160 = vmatprep.subr.mxu0 0.0
  %161 = vmatpush1.msra.mxu0 0.0
  %162 = vmatprep.subr.mxu0 0.0
  %163 = vmatpush1.msra.mxu0 0.0
  %164 = vmatprep.subr.mxu0 0.0
  %165 = vmatpush1.msra.mxu0 0.0
  %166 = vmatprep.subr.mxu0 0.0
  %167 = vmatpush1.msra.mxu0 0.0
  %168 = vmatprep.subr.mxu0 0.0
  %169 = vmatpush1.msra.mxu0 0.0
  %170 = vmatprep.subr.mxu0 0.0
  %171 = vmatpush1.msra.mxu0 0.0
  %172 = vmatprep.subr.mxu0 0.0
  %173 = vmatpush1.msra.mxu0 0.0
  %174 = vmatprep.subr.mxu0 0.0
  %175 = vmatpush1.msra.mxu0 0.0
  %176 = vmatprep.subr.mxu0 0.0
  %177 = vmatpush1.msra.mxu0 0.0
  %178 = vmatprep.subr.mxu0 0.0
  %179 = vmatpush1.msra.mxu0 0.0
  %180 = vmatprep.subr.mxu0 0.0
  %181 = vmatpush1.msra.mxu0 0.0
  %182 = vmatprep.subr.mxu0 0.0
  %183 = vmatpush1.msra.mxu0 0.0
  %184 = vmatprep.subr.mxu0 0.0
  %185 = vmatpush1.msra.mxu0 0.0
  %186 = vmatprep.subr.mxu0 0.0
  %187 = vmatpush1.msra.mxu0 0.0
  %188 = vmatprep.subr.mxu0 0.0
  %189 = vmatpush1.msra.mxu0 0.0
  %190 = vmatprep.subr.mxu0 0.0
  %191 = vmatpush1.msra.mxu0 0.0
  %192 = vmatprep.subr.mxu0 0.0
  %193 = vmatpush1.msra.mxu0 0.0
  %194 = vmatprep.subr.mxu0 0.0
  %195 = vmatpush1.msra.mxu0 0.0
  %196 = vmatprep.subr.mxu0 0.0
  %197 = vmatpush1.msra.mxu0 0.0
  %198 = vmatprep.subr.mxu0 0.0
  %199 = vmatpush1.msra.mxu0 0.0
  %200 = vmatprep.mubr.f32.mxu0 0.0
  %v201 = vand.u32 %v61, 4294901760
  %v202 = vsub.f32 %v61, %v201
  %v203 = vand.u32 %v202, 4294901760
  %v204 = vsub.f32 %v202, %v203
  %v205 = vand.u32 %v204, 4294901760
  %206 = vmatmul.mubr.f32.gmra.mrb[0].mxu0 %v205
  %v207 = vpop.f32.mrb[0].mxu0
  %v208 = vadd.f32 %v57, %v207
  %v209 = vpop.f32.mrb[0].mxu0
  %210 = vmatprep.mubr.f32.mxu0 0.0
  %v211 = vand.u32 %v64, 4294901760
  %v212 = vsub.f32 %v64, %v211
  %v213 = vand.u32 %v212, 4294901760
  %v214 = vsub.f32 %v212, %v213
  %v215 = vand.u32 %v214, 4294901760
  %216 = vmatmul.mubr.f32.gmra.mrb[0].mxu0 %v215
  %v217 = vpop.f32.mrb[0].mxu0
  %v218 = vadd.f32 %v57, %v217
  %v219 = vpop.f32.mrb[0].mxu0
  %220 = vmatprep.mubr.f32.mxu0 0.0
  %v221 = vand.u32 %v67, 4294901760
  %v222 = vsub.f32 %v67, %v221
  %v223 = vand.u32 %v222, 4294901760
  %v224 = vsub.f32 %v222, %v223
  %v225 = vand.u32 %v224, 4294901760
  %226 = vmatmul.mubr.f32.gmra.mrb[0].mxu0 %v225
  %v227 = vpop.f32.mrb[0].mxu0
  %v228 = vadd.f32 %v57, %v227
  %v229 = vpop.f32.mrb[0].mxu0
  %230 = vmatprep.mubr.f32.mxu0 0.0
  %v231 = vand.u32 %v70, 4294901760
  %v232 = vsub.f32 %v70, %v231
  %v233 = vand.u32 %v232, 4294901760
  %v234 = vsub.f32 %v232, %v233
  %v235 = vand.u32 %v234, 4294901760
  %236 = vmatmul.mubr.f32.gmra.mrb[0].mxu0 %v235
  %v237 = vpop.f32.mrb[0].mxu0
  %v238 = vadd.f32 %v57, %v237
  %v239 = vpop.f32.mrb[0].mxu0
  %240 = vmatprep.mubr.f32.mxu0 0.0
  %v241 = vand.u32 %v73, 4294901760
  %v242 = vsub.f32 %v73, %v241
  %v243 = vand.u32 %v242, 4294901760
  %v244 = vsub.f32 %v242, %v243
  %v245 = vand.u32 %v244, 4294901760
  %246 = vmatmul.mubr.f32.gmra.mrb[0].mxu0 %v245
  %v247 = vpop.f32.mrb[0].mxu0
  %v248 = vadd.f32 %v57, %v247
  %v249 = vpop.f32.mrb[0].mxu0
  %250 = vmatprep.mubr.f32.mxu0 0.0
  %v251 = vand.u32 %v76, 4294901760
  %v252 = vsub.f32 %v76, %v251
  %v253 = vand.u32 %v252, 4294901760
  %v254 = vsub.f32 %v252, %v253
  %v255 = vand.u32 %v254, 4294901760
  %256 = vmatmul.mubr.f32.gmra.mrb[0].mxu0 %v255
  %v257 = vpop.f32.mrb[0].mxu0
  %v258 = vadd.f32 %v57, %v257
  %v259 = vpop.f32.mrb[0].mxu0
  %260 = vmatprep.mubr.f32.mxu0 0.0
  %v261 = vand.u32 %v79, 4294901760
  %v262 = vsub.f32 %v79, %v261
  %v263 = vand.u32 %v262, 4294901760
  %v264 = vsub.f32 %v262, %v263
  %v265 = vand.u32 %v264, 4294901760
  %266 = vmatmul.mubr.f32.gmra.mrb[0].mxu0 %v265
  %v267 = vpop.f32.mrb[0].mxu0
  %v268 = vadd.f32 %v57, %v267
  %v269 = vpop.f32.mrb[0].mxu0
  %270 = vmatprep.mubr.f32.mxu0 0.0
  %v271 = vand.u32 %v82, 4294901760
  %v272 = vsub.f32 %v82, %v271
  %v273 = vand.u32 %v272, 4294901760
  %v274 = vsub.f32 %v272, %v273
  %v275 = vand.u32 %v274, 4294901760
  %276 = vmatmul.mubr.f32.gmra.mrb[0].mxu0 %v275
  %v277 = vpop.f32.mrb[0].mxu0
  %v278 = vadd.f32 %v57, %v277
  %v279 = vpop.f32.mrb[0].mxu0
  %280 = vmatprep.mubr.f32.mxu0 0.0
  %v281 = vand.u32 %v85, 4294901760
  %v282 = vsub.f32 %v85, %v281
  %v283 = vand.u32 %v282, 4294901760
  %v284 = vsub.f32 %v282, %v283
  %v285 = vand.u32 %v284, 4294901760
  %286 = vmatmul.mubr.f32.gmra.mrb[0].mxu0 %v285
  %v287 = vpop.f32.mrb[0].mxu0
  %v288 = vadd.f32 %v57, %v287
  %v289 = vpop.f32.mrb[0].mxu0
  %290 = vmatprep.mubr.f32.mxu0 0.0
  %v291 = vand.u32 %v88, 4294901760
  %v292 = vsub.f32 %v88, %v291
  %v293 = vand.u32 %v292, 4294901760
  %v294 = vsub.f32 %v292, %v293
  %v295 = vand.u32 %v294, 4294901760
  %296 = vmatmul.mubr.f32.gmra.mrb[0].mxu0 %v295
  %v297 = vpop.f32.mrb[0].mxu0
  %v298 = vadd.f32 %v57, %v297
  %v299 = vpop.f32.mrb[0].mxu0
  %300 = vmatprep.mubr.f32.mxu0 0.0
  %v301 = vand.u32 %v91, 4294901760
  %v302 = vsub.f32 %v91, %v301
  %v303 = vand.u32 %v302, 4294901760
  %v304 = vsub.f32 %v302, %v303
  %v305 = vand.u32 %v304, 4294901760
  %306 = vmatmul.mubr.f32.gmra.mrb[0].mxu0 %v305
  %v307 = vpop.f32.mrb[0].mxu0
  %v308 = vadd.f32 %v57, %v307
  %v309 = vpop.f32.mrb[0].mxu0
  %310 = vmatprep.mubr.f32.mxu0 0.0
  %v311 = vand.u32 %v94, 4294901760
  %v312 = vsub.f32 %v94, %v311
  %v313 = vand.u32 %v312, 4294901760
  %v314 = vsub.f32 %v312, %v313
  %v315 = vand.u32 %v314, 4294901760
  %316 = vmatmul.mubr.f32.gmra.mrb[0].mxu0 %v315
  %v317 = vpop.f32.mrb[0].mxu0
  %v318 = vadd.f32 %v57, %v317
  %v319 = vpop.f32.mrb[0].mxu0
  %320 = vmatprep.mubr.f32.mxu0 0.0
  %v321 = vand.u32 %v97, 4294901760
  %v322 = vsub.f32 %v97, %v321
  %v323 = vand.u32 %v322, 4294901760
  %v324 = vsub.f32 %v322, %v323
  %v325 = vand.u32 %v324, 4294901760
  %326 = vmatmul.mubr.f32.gmra.mrb[0].mxu0 %v325
  %v327 = vpop.f32.mrb[0].mxu0
  %v328 = vadd.f32 %v57, %v327
  %v329 = vpop.f32.mrb[0].mxu0
  %330 = vmatprep.mubr.f32.mxu0 0.0
  %v331 = vand.u32 %v100, 4294901760
  %v332 = vsub.f32 %v100, %v331
  %v333 = vand.u32 %v332, 4294901760
  %v334 = vsub.f32 %v332, %v333
  %v335 = vand.u32 %v334, 4294901760
  %336 = vmatmul.mubr.f32.gmra.mrb[0].mxu0 %v335
  %v337 = vpop.f32.mrb[0].mxu0
  %v338 = vadd.f32 %v57, %v337
  %v339 = vpop.f32.mrb[0].mxu0
  %340 = vmatprep.mubr.f32.mxu0 0.0
  %v341 = vand.u32 %v103, 4294901760
  %v342 = vsub.f32 %v103, %v341
  %v343 = vand.u32 %v342, 4294901760
  %v344 = vsub.f32 %v342, %v343
  %v345 = vand.u32 %v344, 4294901760
  %346 = vmatmul.mubr.f32.gmra.mrb[0].mxu0 %v345
  %v347 = vpop.f32.mrb[0].mxu0
  %v348 = vadd.f32 %v57, %v347
  %v349 = vpop.f32.mrb[0].mxu0
  %350 = vmatprep.mubr.f32.mxu0 0.0
  %v351 = vand.u32 %v106, 4294901760
  %v352 = vsub.f32 %v106, %v351
  %v353 = vand.u32 %v352, 4294901760
  %v354 = vsub.f32 %v352, %v353
  %v355 = vand.u32 %v354, 4294901760
  %356 = vmatmul.mubr.f32.gmra.mrb[0].mxu0 %v355
  %v357 = vpop.f32.mrb[0].mxu0
  %v358 = vadd.f32 %v57, %v357
  %v359 = vpop.f32.mrb[0].mxu0
  %360 = vmatprep.mubr.f32.mxu0 0.0
  %v361 = vand.u32 %v109, 4294901760
  %v362 = vsub.f32 %v109, %v361
  %v363 = vand.u32 %v362, 4294901760
  %v364 = vsub.f32 %v362, %v363
  %v365 = vand.u32 %v364, 4294901760
  %366 = vmatmul.mubr.f32.gmra.mrb[0].mxu0 %v365
  %v367 = vpop.f32.mrb[0].mxu0
  %v368 = vadd.f32 %v57, %v367
  %v369 = vpop.f32.mrb[0].mxu0
  %370 = vmatprep.mubr.f32.mxu0 0.0
  %v371 = vand.u32 %v112, 4294901760
  %v372 = vsub.f32 %v112, %v371
  %v373 = vand.u32 %v372, 4294901760
  %v374 = vsub.f32 %v372, %v373
  %v375 = vand.u32 %v374, 4294901760
  %376 = vmatmul.mubr.f32.gmra.mrb[0].mxu0 %v375
  %v377 = vpop.f32.mrb[0].mxu0
  %v378 = vadd.f32 %v57, %v377
  %v379 = vpop.f32.mrb[0].mxu0
  %380 = vmatprep.mubr.f32.mxu0 0.0
  %v381 = vand.u32 %v115, 4294901760
  %v382 = vsub.f32 %v115, %v381
  %v383 = vand.u32 %v382, 4294901760
  %v384 = vsub.f32 %v382, %v383
  %v385 = vand.u32 %v384, 4294901760
  %386 = vmatmul.mubr.f32.gmra.mrb[0].mxu0 %v385
  %v387 = vpop.f32.mrb[0].mxu0
  %v388 = vadd.f32 %v57, %v387
  %v389 = vpop.f32.mrb[0].mxu0
  %390 = vmatprep.mubr.f32.mxu0 0.0
  %v391 = vand.u32 %v118, 4294901760
  %v392 = vsub.f32 %v118, %v391
  %v393 = vand.u32 %v392, 4294901760
  %v394 = vsub.f32 %v392, %v393
  %v395 = vand.u32 %v394, 4294901760
  %396 = vmatmul.mubr.f32.gmra.mrb[0].mxu0 %v395
  %v397 = vpop.f32.mrb[0].mxu0
  %v398 = vadd.f32 %v57, %v397
  %v399 = vpop.f32.mrb[0].mxu0
  %400 = vmatprep.mubr.f32.mxu0 0.0
  %v401 = vand.u32 %v121, 4294901760
  %v402 = vsub.f32 %v121, %v401
  %v403 = vand.u32 %v402, 4294901760
  %v404 = vsub.f32 %v402, %v403
  %v405 = vand.u32 %v404, 4294901760
  %406 = vmatmul.mubr.f32.gmra.mrb[0].mxu0 %v405
  %v407 = vpop.f32.mrb[0].mxu0
  %v408 = vadd.f32 %v57, %v407
  %v409 = vpop.f32.mrb[0].mxu0
  %410 = vmatprep.mubr.f32.mxu0 0.0
  %v411 = vand.u32 %v124, 4294901760
  %v412 = vsub.f32 %v124, %v411
  %v413 = vand.u32 %v412, 4294901760
  %v414 = vsub.f32 %v412, %v413
  %v415 = vand.u32 %v414, 4294901760
  %416 = vmatmul.mubr.f32.gmra.mrb[0].mxu0 %v415
  %v417 = vpop.f32.mrb[0].mxu0
  %v418 = vadd.f32 %v57, %v417
  %v419 = vpop.f32.mrb[0].mxu0
  %420 = vmatprep.mubr.f32.mxu0 0.0
  %v421 = vand.u32 %v127, 4294901760
  %v422 = vsub.f32 %v127, %v421
  %v423 = vand.u32 %v422, 4294901760
  %v424 = vsub.f32 %v422, %v423
  %v425 = vand.u32 %v424, 4294901760
  %426 = vmatmul.mubr.f32.gmra.mrb[0].mxu0 %v425
  %v427 = vpop.f32.mrb[0].mxu0
  %v428 = vadd.f32 %v57, %v427
  %v429 = vpop.f32.mrb[0].mxu0
  %430 = vmatprep.mubr.f32.mxu0 0.0
  %v431 = vand.u32 %v130, 4294901760
  %v432 = vsub.f32 %v130, %v431
  %v433 = vand.u32 %v432, 4294901760
  %v434 = vsub.f32 %v432, %v433
  %v435 = vand.u32 %v434, 4294901760
  %436 = vmatmul.mubr.f32.gmra.mrb[0].mxu0 %v435
  %v437 = vpop.f32.mrb[0].mxu0
  %v438 = vadd.f32 %v57, %v437
  %v439 = vpop.f32.mrb[0].mxu0
  %440 = vmatprep.mubr.f32.mxu0 0.0
  %v441 = vand.u32 %v133, 4294901760
  %v442 = vsub.f32 %v133, %v441
  %v443 = vand.u32 %v442, 4294901760
  %v444 = vsub.f32 %v442, %v443
  %v445 = vand.u32 %v444, 4294901760
  %446 = vmatmul.mubr.f32.gmra.mrb[0].mxu0 %v445
  %v447 = vpop.f32.mrb[0].mxu0
  %v448 = vadd.f32 %v57, %v447
  %v449 = vpop.f32.mrb[0].mxu0
  %450 = vdwg.mxu0
  %451 = vmatprep.subr.mxu0 0.0
  %v452 = vand.u32 %v51, 4294901760
  %v453 = vsub.f32 %v51, %v452
  %v454 = vand.u32 %v453, 4294901760
  %v455 = vsub.f32 %v453, %v454
  %v456 = vand.u32 %v455, 4294901760
  %457 = vmatpush1.msra.mxu0 %v456
  %458 = vmatprep.subr.mxu0 0.0
  %459 = vmatpush1.msra.mxu0 0.0
  %460 = vmatprep.subr.mxu0 0.0
  %461 = vmatpush1.msra.mxu0 0.0
  %462 = vmatprep.subr.mxu0 0.0
  %463 = vmatpush1.msra.mxu0 0.0
  %464 = vmatprep.subr.mxu0 0.0
  %465 = vmatpush1.msra.mxu0 0.0
  %466 = vmatprep.subr.mxu0 0.0
  %467 = vmatpush1.msra.mxu0 0.0
  %468 = vmatprep.subr.mxu0 0.0
  %469 = vmatpush1.msra.mxu0 0.0
  %470 = vmatprep.subr.mxu0 0.0
  %471 = vmatpush1.msra.mxu0 0.0
  %472 = vmatprep.subr.mxu0 0.0
  %473 = vmatpush1.msra.mxu0 0.0
  %474 = vmatprep.subr.mxu0 0.0
  %475 = vmatpush1.msra.mxu0 0.0
  %476 = vmatprep.subr.mxu0 0.0
  %477 = vmatpush1.msra.mxu0 0.0
  %478 = vmatprep.subr.mxu0 0.0
  %479 = vmatpush1.msra.mxu0 0.0
  %480 = vmatprep.subr.mxu0 0.0
  %481 = vmatpush1.msra.mxu0 0.0
  %482 = vmatprep.subr.mxu0 0.0
  %483 = vmatpush1.msra.mxu0 0.0
  %484 = vmatprep.subr.mxu0 0.0
  %485 = vmatpush1.msra.mxu0 0.0
  %486 = vmatprep.subr.mxu0 0.0
  %487 = vmatpush1.msra.mxu0 0.0
  %488 = vmatprep.subr.mxu0 0.0
  %489 = vmatpush1.msra.mxu0 0.0
  %490 = vmatprep.subr.mxu0 0.0
  %491 = vmatpush1.msra.mxu0 0.0
  %492 = vmatprep.subr.mxu0 0.0
  %493 = vmatpush1.msra.mxu0 0.0
  %494 = vmatprep.subr.mxu0 0.0
  %495 = vmatpush1.msra.mxu0 0.0
  %496 = vmatprep.subr.mxu0 0.0
  %497 = vmatpush1.msra.mxu0 0.0
  %498 = vmatprep.subr.mxu0 0.0
  %499 = vmatpush1.msra.mxu0 0.0
  %500 = vmatprep.subr.mxu0 0.0
  %501 = vmatpush1.msra.mxu0 0.0
  %502 = vmatprep.subr.mxu0 0.0
  %503 = vmatpush1.msra.mxu0 0.0
  %504 = vmatprep.subr.mxu0 0.0
  %505 = vmatpush1.msra.mxu0 0.0
  %506 = vmatprep.subr.mxu0 0.0
  %507 = vmatpush1.msra.mxu0 0.0
  %508 = vmatprep.subr.mxu0 0.0
  %509 = vmatpush1.msra.mxu0 0.0
  %510 = vmatprep.subr.mxu0 0.0
  %511 = vmatpush1.msra.mxu0 0.0
  %512 = vmatprep.subr.mxu0 0.0
  %513 = vmatpush1.msra.mxu0 0.0
  %514 = vmatprep.subr.mxu0 0.0
  %515 = vmatpush1.msra.mxu0 0.0
  %516 = vmatprep.subr.mxu0 0.0
  %517 = vmatpush1.msra.mxu0 0.0
  %518 = vmatprep.subr.mxu0 0.0
  %519 = vmatpush1.msra.mxu0 0.0
  %520 = vmatprep.mubr.f32.mxu0 0.0
  %v521 = vand.u32 %v61, 4294901760
  %522 = vmatmul.mubr.f32.gmra.mrb[0].mxu0 %v521
  %v523 = vpop.f32.mrb[0].mxu0
  %v524 = vadd.f32 %v208, %v523
  %v525 = vpop.f32.mrb[0].mxu0
  %526 = vmatprep.mubr.f32.mxu0 0.0
  %v527 = vand.u32 %v64, 4294901760
  %528 = vmatmul.mubr.f32.gmra.mrb[0].mxu0 %v527
  %v529 = vpop.f32.mrb[0].mxu0
  %v530 = vadd.f32 %v218, %v529
  %v531 = vpop.f32.mrb[0].mxu0
  %532 = vmatprep.mubr.f32.mxu0 0.0
  %v533 = vand.u32 %v67, 4294901760
  %534 = vmatmul.mubr.f32.gmra.mrb[0].mxu0 %v533
  %v535 = vpop.f32.mrb[0].mxu0
  %v536 = vadd.f32 %v228, %v535
  %v537 = vpop.f32.mrb[0].mxu0
  %538 = vmatprep.mubr.f32.mxu0 0.0
  %v539 = vand.u32 %v70, 4294901760
  %540 = vmatmul.mubr.f32.gmra.mrb[0].mxu0 %v539
  %v541 = vpop.f32.mrb[0].mxu0
  %v542 = vadd.f32 %v238, %v541
  %v543 = vpop.f32.mrb[0].mxu0
  %544 = vmatprep.mubr.f32.mxu0 0.0
  %v545 = vand.u32 %v73, 4294901760
  %546 = vmatmul.mubr.f32.gmra.mrb[0].mxu0 %v545
  %v547 = vpop.f32.mrb[0].mxu0
  %v548 = vadd.f32 %v248, %v547
  %v549 = vpop.f32.mrb[0].mxu0
  %550 = vmatprep.mubr.f32.mxu0 0.0
  %v551 = vand.u32 %v76, 4294901760
  %552 = vmatmul.mubr.f32.gmra.mrb[0].mxu0 %v551
  %v553 = vpop.f32.mrb[0].mxu0
  %v554 = vadd.f32 %v258, %v553
  %v555 = vpop.f32.mrb[0].mxu0
  %556 = vmatprep.mubr.f32.mxu0 0.0
  %v557 = vand.u32 %v79, 4294901760
  %558 = vmatmul.mubr.f32.gmra.mrb[0].mxu0 %v557
  %v559 = vpop.f32.mrb[0].mxu0
  %v560 = vadd.f32 %v268, %v559
  %v561 = vpop.f32.mrb[0].mxu0
  %562 = vmatprep.mubr.f32.mxu0 0.0
  %v563 = vand.u32 %v82, 4294901760
  %564 = vmatmul.mubr.f32.gmra.mrb[0].mxu0 %v563
  %v565 = vpop.f32.mrb[0].mxu0
  %v566 = vadd.f32 %v278, %v565
  %v567 = vpop.f32.mrb[0].mxu0
  %568 = vmatprep.mubr.f32.mxu0 0.0
  %v569 = vand.u32 %v85, 4294901760
  %570 = vmatmul.mubr.f32.gmra.mrb[0].mxu0 %v569
  %v571 = vpop.f32.mrb[0].mxu0
  %v572 = vadd.f32 %v288, %v571
  %v573 = vpop.f32.mrb[0].mxu0
  %574 = vmatprep.mubr.f32.mxu0 0.0
  %v575 = vand.u32 %v88, 4294901760
  %576 = vmatmul.mubr.f32.gmra.mrb[0].mxu0 %v575
  %v577 = vpop.f32.mrb[0].mxu0
  %v578 = vadd.f32 %v298, %v577
  %v579 = vpop.f32.mrb[0].mxu0
  %580 = vmatprep.mubr.f32.mxu0 0.0
  %v581 = vand.u32 %v91, 4294901760
  %582 = vmatmul.mubr.f32.gmra.mrb[0].mxu0 %v581
  %v583 = vpop.f32.mrb[0].mxu0
  %v584 = vadd.f32 %v308, %v583
  %v585 = vpop.f32.mrb[0].mxu0
  %586 = vmatprep.mubr.f32.mxu0 0.0
  %v587 = vand.u32 %v94, 4294901760
  %588 = vmatmul.mubr.f32.gmra.mrb[0].mxu0 %v587
  %v589 = vpop.f32.mrb[0].mxu0
  %v590 = vadd.f32 %v318, %v589
  %v591 = vpop.f32.mrb[0].mxu0
  %592 = vmatprep.mubr.f32.mxu0 0.0
  %v593 = vand.u32 %v97, 4294901760
  %594 = vmatmul.mubr.f32.gmra.mrb[0].mxu0 %v593
  %v595 = vpop.f32.mrb[0].mxu0
  %v596 = vadd.f32 %v328, %v595
  %v597 = vpop.f32.mrb[0].mxu0
  %598 = vmatprep.mubr.f32.mxu0 0.0
  %v599 = vand.u32 %v100, 4294901760
  %600 = vmatmul.mubr.f32.gmra.mrb[0].mxu0 %v599
  %v601 = vpop.f32.mrb[0].mxu0
  %v602 = vadd.f32 %v338, %v601
  %v603 = vpop.f32.mrb[0].mxu0
  %604 = vmatprep.mubr.f32.mxu0 0.0
  %v605 = vand.u32 %v103, 4294901760
  %606 = vmatmul.mubr.f32.gmra.mrb[0].mxu0 %v605
  %v607 = vpop.f32.mrb[0].mxu0
  %v608 = vadd.f32 %v348, %v607
  %v609 = vpop.f32.mrb[0].mxu0
  %610 = vmatprep.mubr.f32.mxu0 0.0
  %v611 = vand.u32 %v106, 4294901760
  %612 = vmatmul.mubr.f32.gmra.mrb[0].mxu0 %v611
  %v613 = vpop.f32.mrb[0].mxu0
  %v614 = vadd.f32 %v358, %v613
  %v615 = vpop.f32.mrb[0].mxu0
  %616 = vmatprep.mubr.f32.mxu0 0.0
  %v617 = vand.u32 %v109, 4294901760
  %618 = vmatmul.mubr.f32.gmra.mrb[0].mxu0 %v617
  %v619 = vpop.f32.mrb[0].mxu0
  %v620 = vadd.f32 %v368, %v619
  %v621 = vpop.f32.mrb[0].mxu0
  %622 = vmatprep.mubr.f32.mxu0 0.0
  %v623 = vand.u32 %v112, 4294901760
  %624 = vmatmul.mubr.f32.gmra.mrb[0].mxu0 %v623
  %v625 = vpop.f32.mrb[0].mxu0
  %v626 = vadd.f32 %v378, %v625
  %v627 = vpop.f32.mrb[0].mxu0
  %628 = vmatprep.mubr.f32.mxu0 0.0
  %v629 = vand.u32 %v115, 4294901760
  %630 = vmatmul.mubr.f32.gmra.mrb[0].mxu0 %v629
  %v631 = vpop.f32.mrb[0].mxu0
  %v632 = vadd.f32 %v388, %v631
  %v633 = vpop.f32.mrb[0].mxu0
  %634 = vmatprep.mubr.f32.mxu0 0.0
  %v635 = vand.u32 %v118, 4294901760
  %636 = vmatmul.mubr.f32.gmra.mrb[0].mxu0 %v635
  %v637 = vpop.f32.mrb[0].mxu0
  %v638 = vadd.f32 %v398, %v637
  %v639 = vpop.f32.mrb[0].mxu0
  %640 = vmatprep.mubr.f32.mxu0 0.0
  %v641 = vand.u32 %v121, 4294901760
  %642 = vmatmul.mubr.f32.gmra.mrb[0].mxu0 %v641
  %v643 = vpop.f32.mrb[0].mxu0
  %v644 = vadd.f32 %v408, %v643
  %v645 = vpop.f32.mrb[0].mxu0
  %646 = vmatprep.mubr.f32.mxu0 0.0
  %v647 = vand.u32 %v124, 4294901760
  %648 = vmatmul.mubr.f32.gmra.mrb[0].mxu0 %v647
  %v649 = vpop.f32.mrb[0].mxu0
  %v650 = vadd.f32 %v418, %v649
  %v651 = vpop.f32.mrb[0].mxu0
  %652 = vmatprep.mubr.f32.mxu0 0.0
  %v653 = vand.u32 %v127, 4294901760
  %654 = vmatmul.mubr.f32.gmra.mrb[0].mxu0 %v653
  %v655 = vpop.f32.mrb[0].mxu0
  %v656 = vadd.f32 %v428, %v655
  %v657 = vpop.f32.mrb[0].mxu0
  %658 = vmatprep.mubr.f32.mxu0 0.0
  %v659 = vand.u32 %v130, 4294901760
  %660 = vmatmul.mubr.f32.gmra.mrb[0].mxu0 %v659
  %v661 = vpop.f32.mrb[0].mxu0
  %v662 = vadd.f32 %v438, %v661
  %v663 = vpop.f32.mrb[0].mxu0
  %664 = vmatprep.mubr.f32.mxu0 0.0
  %v665 = vand.u32 %v133, 4294901760
  %666 = vmatmul.mubr.f32.gmra.mrb[0].mxu0 %v665
  %v667 = vpop.f32.mrb[0].mxu0
  %v668 = vadd.f32 %v448, %v667
  %v669 = vpop.f32.mrb[0].mxu0
  %670 = vdwg.mxu0
  %671 = vmatprep.subr.mxu0 0.0
  %v672 = vand.u32 %v51, 4294901760
  %v673 = vsub.f32 %v51, %v672
  %674 = vmatpush1.msra.mxu0 %v673
  %675 = vmatprep.subr.mxu0 0.0
  %676 = vmatpush1.msra.mxu0 0.0
  %677 = vmatprep.subr.mxu0 0.0
  %678 = vmatpush1.msra.mxu0 0.0
  %679 = vmatprep.subr.mxu0 0.0
  %680 = vmatpush1.msra.mxu0 0.0
  %681 = vmatprep.subr.mxu0 0.0
  %682 = vmatpush1.msra.mxu0 0.0
  %683 = vmatprep.subr.mxu0 0.0
  %684 = vmatpush1.msra.mxu0 0.0
  %685 = vmatprep.subr.mxu0 0.0
  %686 = vmatpush1.msra.mxu0 0.0
  %687 = vmatprep.subr.mxu0 0.0
  %688 = vmatpush1.msra.mxu0 0.0
  %689 = vmatprep.subr.mxu0 0.0
  %690 = vmatpush1.msra.mxu0 0.0
  %691 = vmatprep.subr.mxu0 0.0
  %692 = vmatpush1.msra.mxu0 0.0
  %693 = vmatprep.subr.mxu0 0.0
  %694 = vmatpush1.msra.mxu0 0.0
  %695 = vmatprep.subr.mxu0 0.0
  %696 = vmatpush1.msra.mxu0 0.0
  %697 = vmatprep.subr.mxu0 0.0
  %698 = vmatpush1.msra.mxu0 0.0
  %699 = vmatprep.subr.mxu0 0.0
  %700 = vmatpush1.msra.mxu0 0.0
  %701 = vmatprep.subr.mxu0 0.0
  %702 = vmatpush1.msra.mxu0 0.0
  %703 = vmatprep.subr.mxu0 0.0
  %704 = vmatpush1.msra.mxu0 0.0
  %705 = vmatprep.subr.mxu0 0.0
  %706 = vmatpush1.msra.mxu0 0.0
  %707 = vmatprep.subr.mxu0 0.0
  %708 = vmatpush1.msra.mxu0 0.0
  %709 = vmatprep.subr.mxu0 0.0
  %710 = vmatpush1.msra.mxu0 0.0
  %711 = vmatprep.subr.mxu0 0.0
  %712 = vmatpush1.msra.mxu0 0.0
  %713 = vmatprep.subr.mxu0 0.0
  %714 = vmatpush1.msra.mxu0 0.0
  %715 = vmatprep.subr.mxu0 0.0
  %716 = vmatpush1.msra.mxu0 0.0
  %717 = vmatprep.subr.mxu0 0.0
  %718 = vmatpush1.msra.mxu0 0.0
  %719 = vmatprep.subr.mxu0 0.0
  %720 = vmatpush1.msra.mxu0 0.0
  %721 = vmatprep.subr.mxu0 0.0
  %722 = vmatpush1.msra.mxu0 0.0
  %723 = vmatprep.subr.mxu0 0.0
  %724 = vmatpush1.msra.mxu0 0.0
  %725 = vmatprep.subr.mxu0 0.0
  %726 = vmatpush1.msra.mxu0 0.0
  %727 = vmatprep.subr.mxu0 0.0
  %728 = vmatpush1.msra.mxu0 0.0
  %729 = vmatprep.subr.mxu0 0.0
  %730 = vmatpush1.msra.mxu0 0.0
  %731 = vmatprep.subr.mxu0 0.0
  %732 = vmatpush1.msra.mxu0 0.0
  %733 = vmatprep.subr.mxu0 0.0
  %734 = vmatpush1.msra.mxu0 0.0
  %735 = vmatprep.subr.mxu0 0.0
  %736 = vmatpush1.msra.mxu0 0.0
  %737 = vmatprep.mubr.f32.mxu0 0.0
  %v738 = vand.u32 %v61, 4294901760
  %v739 = vsub.f32 %v61, %v738
  %740 = vmatmul.mubr.f32.gmra.mrb[0].mxu0 %v739
  %v741 = vpop.f32.mrb[0].mxu0
  %v742 = vadd.f32 %v524, %v741
  %v743 = vpop.f32.mrb[0].mxu0
  %744 = vmatprep.mubr.f32.mxu0 0.0
  %v745 = vand.u32 %v64, 4294901760
  %v746 = vsub.f32 %v64, %v745
  %747 = vmatmul.mubr.f32.gmra.mrb[0].mxu0 %v746
  %v748 = vpop.f32.mrb[0].mxu0
  %v749 = vadd.f32 %v530, %v748
  %v750 = vpop.f32.mrb[0].mxu0
  %751 = vmatprep.mubr.f32.mxu0 0.0
  %v752 = vand.u32 %v67, 4294901760
  %v753 = vsub.f32 %v67, %v752
  %754 = vmatmul.mubr.f32.gmra.mrb[0].mxu0 %v753
  %v755 = vpop.f32.mrb[0].mxu0
  %v756 = vadd.f32 %v536, %v755
  %v757 = vpop.f32.mrb[0].mxu0
  %758 = vmatprep.mubr.f32.mxu0 0.0
  %v759 = vand.u32 %v70, 4294901760
  %v760 = vsub.f32 %v70, %v759
  %761 = vmatmul.mubr.f32.gmra.mrb[0].mxu0 %v760
  %v762 = vpop.f32.mrb[0].mxu0
  %v763 = vadd.f32 %v542, %v762
  %v764 = vpop.f32.mrb[0].mxu0
  %765 = vmatprep.mubr.f32.mxu0 0.0
  %v766 = vand.u32 %v73, 4294901760
  %v767 = vsub.f32 %v73, %v766
  %768 = vmatmul.mubr.f32.gmra.mrb[0].mxu0 %v767
  %v769 = vpop.f32.mrb[0].mxu0
  %v770 = vadd.f32 %v548, %v769
  %v771 = vpop.f32.mrb[0].mxu0
  %772 = vmatprep.mubr.f32.mxu0 0.0
  %v773 = vand.u32 %v76, 4294901760
  %v774 = vsub.f32 %v76, %v773
  %775 = vmatmul.mubr.f32.gmra.mrb[0].mxu0 %v774
  %v776 = vpop.f32.mrb[0].mxu0
  %v777 = vadd.f32 %v554, %v776
  %v778 = vpop.f32.mrb[0].mxu0
  %779 = vmatprep.mubr.f32.mxu0 0.0
  %v780 = vand.u32 %v79, 4294901760
  %v781 = vsub.f32 %v79, %v780
  %782 = vmatmul.mubr.f32.gmra.mrb[0].mxu0 %v781
  %v783 = vpop.f32.mrb[0].mxu0
  %v784 = vadd.f32 %v560, %v783
  %v785 = vpop.f32.mrb[0].mxu0
  %786 = vmatprep.mubr.f32.mxu0 0.0
  %v787 = vand.u32 %v82, 4294901760
  %v788 = vsub.f32 %v82, %v787
  %789 = vmatmul.mubr.f32.gmra.mrb[0].mxu0 %v788
  %v790 = vpop.f32.mrb[0].mxu0
  %v791 = vadd.f32 %v566, %v790
  %v792 = vpop.f32.mrb[0].mxu0
  %793 = vmatprep.mubr.f32.mxu0 0.0
  %v794 = vand.u32 %v85, 4294901760
  %v795 = vsub.f32 %v85, %v794
  %796 = vmatmul.mubr.f32.gmra.mrb[0].mxu0 %v795
  %v797 = vpop.f32.mrb[0].mxu0
  %v798 = vadd.f32 %v572, %v797
  %v799 = vpop.f32.mrb[0].mxu0
  %800 = vmatprep.mubr.f32.mxu0 0.0
  %v801 = vand.u32 %v88, 4294901760
  %v802 = vsub.f32 %v88, %v801
  %803 = vmatmul.mubr.f32.gmra.mrb[0].mxu0 %v802
  %v804 = vpop.f32.mrb[0].mxu0
  %v805 = vadd.f32 %v578, %v804
  %v806 = vpop.f32.mrb[0].mxu0
  %807 = vmatprep.mubr.f32.mxu0 0.0
  %v808 = vand.u32 %v91, 4294901760
  %v809 = vsub.f32 %v91, %v808
  %810 = vmatmul.mubr.f32.gmra.mrb[0].mxu0 %v809
  %v811 = vpop.f32.mrb[0].mxu0
  %v812 = vadd.f32 %v584, %v811
  %v813 = vpop.f32.mrb[0].mxu0
  %814 = vmatprep.mubr.f32.mxu0 0.0
  %v815 = vand.u32 %v94, 4294901760
  %v816 = vsub.f32 %v94, %v815
  %817 = vmatmul.mubr.f32.gmra.mrb[0].mxu0 %v816
  %v818 = vpop.f32.mrb[0].mxu0
  %v819 = vadd.f32 %v590, %v818
  %v820 = vpop.f32.mrb[0].mxu0
  %821 = vmatprep.mubr.f32.mxu0 0.0
  %v822 = vand.u32 %v97, 4294901760
  %v823 = vsub.f32 %v97, %v822
  %824 = vmatmul.mubr.f32.gmra.mrb[0].mxu0 %v823
  %v825 = vpop.f32.mrb[0].mxu0
  %v826 = vadd.f32 %v596, %v825
  %v827 = vpop.f32.mrb[0].mxu0
  %828 = vmatprep.mubr.f32.mxu0 0.0
  %v829 = vand.u32 %v100, 4294901760
  %v830 = vsub.f32 %v100, %v829
  %831 = vmatmul.mubr.f32.gmra.mrb[0].mxu0 %v830
  %v832 = vpop.f32.mrb[0].mxu0
  %v833 = vadd.f32 %v602, %v832
  %v834 = vpop.f32.mrb[0].mxu0
  %835 = vmatprep.mubr.f32.mxu0 0.0
  %v836 = vand.u32 %v103, 4294901760
  %v837 = vsub.f32 %v103, %v836
  %838 = vmatmul.mubr.f32.gmra.mrb[0].mxu0 %v837
  %v839 = vpop.f32.mrb[0].mxu0
  %v840 = vadd.f32 %v608, %v839
  %v841 = vpop.f32.mrb[0].mxu0
  %842 = vmatprep.mubr.f32.mxu0 0.0
  %v843 = vand.u32 %v106, 4294901760
  %v844 = vsub.f32 %v106, %v843
  %845 = vmatmul.mubr.f32.gmra.mrb[0].mxu0 %v844
  %v846 = vpop.f32.mrb[0].mxu0
  %v847 = vadd.f32 %v614, %v846
  %v848 = vpop.f32.mrb[0].mxu0
  %849 = vmatprep.mubr.f32.mxu0 0.0
  %v850 = vand.u32 %v109, 4294901760
  %v851 = vsub.f32 %v109, %v850
  %852 = vmatmul.mubr.f32.gmra.mrb[0].mxu0 %v851
  %v853 = vpop.f32.mrb[0].mxu0
  %v854 = vadd.f32 %v620, %v853
  %v855 = vpop.f32.mrb[0].mxu0
  %856 = vmatprep.mubr.f32.mxu0 0.0
  %v857 = vand.u32 %v112, 4294901760
  %v858 = vsub.f32 %v112, %v857
  %859 = vmatmul.mubr.f32.gmra.mrb[0].mxu0 %v858
  %v860 = vpop.f32.mrb[0].mxu0
  %v861 = vadd.f32 %v626, %v860
  %v862 = vpop.f32.mrb[0].mxu0
  %863 = vmatprep.mubr.f32.mxu0 0.0
  %v864 = vand.u32 %v115, 4294901760
  %v865 = vsub.f32 %v115, %v864
  %866 = vmatmul.mubr.f32.gmra.mrb[0].mxu0 %v865
  %v867 = vpop.f32.mrb[0].mxu0
  %v868 = vadd.f32 %v632, %v867
  %v869 = vpop.f32.mrb[0].mxu0
  %870 = vmatprep.mubr.f32.mxu0 0.0
  %v871 = vand.u32 %v118, 4294901760
  %v872 = vsub.f32 %v118, %v871
  %873 = vmatmul.mubr.f32.gmra.mrb[0].mxu0 %v872
  %v874 = vpop.f32.mrb[0].mxu0
  %v875 = vadd.f32 %v638, %v874
  %v876 = vpop.f32.mrb[0].mxu0
  %877 = vmatprep.mubr.f32.mxu0 0.0
  %v878 = vand.u32 %v121, 4294901760
  %v879 = vsub.f32 %v121, %v878
  %880 = vmatmul.mubr.f32.gmra.mrb[0].mxu0 %v879
  %v881 = vpop.f32.mrb[0].mxu0
  %v882 = vadd.f32 %v644, %v881
  %v883 = vpop.f32.mrb[0].mxu0
  %884 = vmatprep.mubr.f32.mxu0 0.0
  %v885 = vand.u32 %v124, 4294901760
  %v886 = vsub.f32 %v124, %v885
  %887 = vmatmul.mubr.f32.gmra.mrb[0].mxu0 %v886
  %v888 = vpop.f32.mrb[0].mxu0
  %v889 = vadd.f32 %v650, %v888
  %v890 = vpop.f32.mrb[0].mxu0
  %891 = vmatprep.mubr.f32.mxu0 0.0
  %v892 = vand.u32 %v127, 4294901760
  %v893 = vsub.f32 %v127, %v892
  %894 = vmatmul.mubr.f32.gmra.mrb[0].mxu0 %v893
  %v895 = vpop.f32.mrb[0].mxu0
  %v896 = vadd.f32 %v656, %v895
  %v897 = vpop.f32.mrb[0].mxu0
  %898 = vmatprep.mubr.f32.mxu0 0.0
  %v899 = vand.u32 %v130, 4294901760
  %v900 = vsub.f32 %v130, %v899
  %901 = vmatmul.mubr.f32.gmra.mrb[0].mxu0 %v900
  %v902 = vpop.f32.mrb[0].mxu0
  %v903 = vadd.f32 %v662, %v902
  %v904 = vpop.f32.mrb[0].mxu0
  %905 = vmatprep.mubr.f32.mxu0 0.0
  %v906 = vand.u32 %v133, 4294901760
  %v907 = vsub.f32 %v133, %v906
  %908 = vmatmul.mubr.f32.gmra.mrb[0].mxu0 %v907
  %v909 = vpop.f32.mrb[0].mxu0
  %v910 = vadd.f32 %v668, %v909
  %v911 = vpop.f32.mrb[0].mxu0
  %912 = vdwg.mxu0
  %913 = vmatprep.subr.mxu0 0.0
  %v914 = vand.u32 %v51, 4294901760
  %915 = vmatpush1.msra.mxu0 %v914
  %916 = vmatprep.subr.mxu0 0.0
  %917 = vmatpush1.msra.mxu0 0.0
  %918 = vmatprep.subr.mxu0 0.0
  %919 = vmatpush1.msra.mxu0 0.0
  %920 = vmatprep.subr.mxu0 0.0
  %921 = vmatpush1.msra.mxu0 0.0
  %922 = vmatprep.subr.mxu0 0.0
  %923 = vmatpush1.msra.mxu0 0.0
  %924 = vmatprep.subr.mxu0 0.0
  %925 = vmatpush1.msra.mxu0 0.0
  %926 = vmatprep.subr.mxu0 0.0
  %927 = vmatpush1.msra.mxu0 0.0
  %928 = vmatprep.subr.mxu0 0.0
  %929 = vmatpush1.msra.mxu0 0.0
  %930 = vmatprep.subr.mxu0 0.0
  %931 = vmatpush1.msra.mxu0 0.0
  %932 = vmatprep.subr.mxu0 0.0
  %933 = vmatpush1.msra.mxu0 0.0
  %934 = vmatprep.subr.mxu0 0.0
  %935 = vmatpush1.msra.mxu0 0.0
  %936 = vmatprep.subr.mxu0 0.0
  %937 = vmatpush1.msra.mxu0 0.0
  %938 = vmatprep.subr.mxu0 0.0
  %939 = vmatpush1.msra.mxu0 0.0
  %940 = vmatprep.subr.mxu0 0.0
  %941 = vmatpush1.msra.mxu0 0.0
  %942 = vmatprep.subr.mxu0 0.0
  %943 = vmatpush1.msra.mxu0 0.0
  %944 = vmatprep.subr.mxu0 0.0
  %945 = vmatpush1.msra.mxu0 0.0
  %946 = vmatprep.subr.mxu0 0.0
  %947 = vmatpush1.msra.mxu0 0.0
  %948 = vmatprep.subr.mxu0 0.0
  %949 = vmatpush1.msra.mxu0 0.0
  %950 = vmatprep.subr.mxu0 0.0
  %951 = vmatpush1.msra.mxu0 0.0
  %952 = vmatprep.subr.mxu0 0.0
  %953 = vmatpush1.msra.mxu0 0.0
  %954 = vmatprep.subr.mxu0 0.0
  %955 = vmatpush1.msra.mxu0 0.0
  %956 = vmatprep.subr.mxu0 0.0
  %957 = vmatpush1.msra.mxu0 0.0
  %958 = vmatprep.subr.mxu0 0.0
  %959 = vmatpush1.msra.mxu0 0.0
  %960 = vmatprep.subr.mxu0 0.0
  %961 = vmatpush1.msra.mxu0 0.0
  %962 = vmatprep.subr.mxu0 0.0
  %963 = vmatpush1.msra.mxu0 0.0
  %964 = vmatprep.subr.mxu0 0.0
  %965 = vmatpush1.msra.mxu0 0.0
  %966 = vmatprep.subr.mxu0 0.0
  %967 = vmatpush1.msra.mxu0 0.0
  %968 = vmatprep.subr.mxu0 0.0
  %969 = vmatpush1.msra.mxu0 0.0
  %970 = vmatprep.subr.mxu0 0.0
  %971 = vmatpush1.msra.mxu0 0.0
  %972 = vmatprep.subr.mxu0 0.0
  %973 = vmatpush1.msra.mxu0 0.0
  %974 = vmatprep.subr.mxu0 0.0
  %975 = vmatpush1.msra.mxu0 0.0
  %976 = vmatprep.subr.mxu0 0.0
  %977 = vmatpush1.msra.mxu0 0.0
  %978 = vmatprep.mubr.f32.mxu0 0.0
  %v979 = vand.u32 %v61, 4294901760
  %v980 = vsub.f32 %v61, %v979
  %v981 = vand.u32 %v980, 4294901760
  %982 = vmatmul.mubr.f32.gmra.mrb[0].mxu0 %v981
  %v983 = vpop.f32.mrb[0].mxu0
  %v984 = vadd.f32 %v742, %v983
  %v985 = vpop.f32.mrb[0].mxu0
  %986 = vmatprep.mubr.f32.mxu0 0.0
  %v987 = vand.u32 %v64, 4294901760
  %v988 = vsub.f32 %v64, %v987
  %v989 = vand.u32 %v988, 4294901760
  %990 = vmatmul.mubr.f32.gmra.mrb[0].mxu0 %v989
  %v991 = vpop.f32.mrb[0].mxu0
  %v992 = vadd.f32 %v749, %v991
  %v993 = vpop.f32.mrb[0].mxu0
  %994 = vmatprep.mubr.f32.mxu0 0.0
  %v995 = vand.u32 %v67, 4294901760
  %v996 = vsub.f32 %v67, %v995
  %v997 = vand.u32 %v996, 4294901760
  %998 = vmatmul.mubr.f32.gmra.mrb[0].mxu0 %v997
  %v999 = vpop.f32.mrb[0].mxu0
  %v1000 = vadd.f32 %v756, %v999
  %v1001 = vpop.f32.mrb[0].mxu0
  %1002 = vmatprep.mubr.f32.mxu0 0.0
  %v1003 = vand.u32 %v70, 4294901760
  %v1004 = vsub.f32 %v70, %v1003
  %v1005 = vand.u32 %v1004, 4294901760
  %1006 = vmatmul.mubr.f32.gmra.mrb[0].mxu0 %v1005
  %v1007 = vpop.f32.mrb[0].mxu0
  %v1008 = vadd.f32 %v763, %v1007
  %v1009 = vpop.f32.mrb[0].mxu0
  %1010 = vmatprep.mubr.f32.mxu0 0.0
  %v1011 = vand.u32 %v73, 4294901760
  %v1012 = vsub.f32 %v73, %v1011
  %v1013 = vand.u32 %v1012, 4294901760
  %1014 = vmatmul.mubr.f32.gmra.mrb[0].mxu0 %v1013
  %v1015 = vpop.f32.mrb[0].mxu0
  %v1016 = vadd.f32 %v770, %v1015
  %v1017 = vpop.f32.mrb[0].mxu0
  %1018 = vmatprep.mubr.f32.mxu0 0.0
  %v1019 = vand.u32 %v76, 4294901760
  %v1020 = vsub.f32 %v76, %v1019
  %v1021 = vand.u32 %v1020, 4294901760
  %1022 = vmatmul.mubr.f32.gmra.mrb[0].mxu0 %v1021
  %v1023 = vpop.f32.mrb[0].mxu0
  %v1024 = vadd.f32 %v777, %v1023
  %v1025 = vpop.f32.mrb[0].mxu0
  %1026 = vmatprep.mubr.f32.mxu0 0.0
  %v1027 = vand.u32 %v79, 4294901760
  %v1028 = vsub.f32 %v79, %v1027
  %v1029 = vand.u32 %v1028, 4294901760
  %1030 = vmatmul.mubr.f32.gmra.mrb[0].mxu0 %v1029
  %v1031 = vpop.f32.mrb[0].mxu0
  %v1032 = vadd.f32 %v784, %v1031
  %v1033 = vpop.f32.mrb[0].mxu0
  %1034 = vmatprep.mubr.f32.mxu0 0.0
  %v1035 = vand.u32 %v82, 4294901760
  %v1036 = vsub.f32 %v82, %v1035
  %v1037 = vand.u32 %v1036, 4294901760
  %1038 = vmatmul.mubr.f32.gmra.mrb[0].mxu0 %v1037
  %v1039 = vpop.f32.mrb[0].mxu0
  %v1040 = vadd.f32 %v791, %v1039
  %v1041 = vpop.f32.mrb[0].mxu0
  %1042 = vmatprep.mubr.f32.mxu0 0.0
  %v1043 = vand.u32 %v85, 4294901760
  %v1044 = vsub.f32 %v85, %v1043
  %v1045 = vand.u32 %v1044, 4294901760
  %1046 = vmatmul.mubr.f32.gmra.mrb[0].mxu0 %v1045
  %v1047 = vpop.f32.mrb[0].mxu0
  %v1048 = vadd.f32 %v798, %v1047
  %v1049 = vpop.f32.mrb[0].mxu0
  %1050 = vmatprep.mubr.f32.mxu0 0.0
  %v1051 = vand.u32 %v88, 4294901760
  %v1052 = vsub.f32 %v88, %v1051
  %v1053 = vand.u32 %v1052, 4294901760
  %1054 = vmatmul.mubr.f32.gmra.mrb[0].mxu0 %v1053
  %v1055 = vpop.f32.mrb[0].mxu0
  %v1056 = vadd.f32 %v805, %v1055
  %v1057 = vpop.f32.mrb[0].mxu0
  %1058 = vmatprep.mubr.f32.mxu0 0.0
  %v1059 = vand.u32 %v91, 4294901760
  %v1060 = vsub.f32 %v91, %v1059
  %v1061 = vand.u32 %v1060, 4294901760
  %1062 = vmatmul.mubr.f32.gmra.mrb[0].mxu0 %v1061
  %v1063 = vpop.f32.mrb[0].mxu0
  %v1064 = vadd.f32 %v812, %v1063
  %v1065 = vpop.f32.mrb[0].mxu0
  %1066 = vmatprep.mubr.f32.mxu0 0.0
  %v1067 = vand.u32 %v94, 4294901760
  %v1068 = vsub.f32 %v94, %v1067
  %v1069 = vand.u32 %v1068, 4294901760
  %1070 = vmatmul.mubr.f32.gmra.mrb[0].mxu0 %v1069
  %v1071 = vpop.f32.mrb[0].mxu0
  %v1072 = vadd.f32 %v819, %v1071
  %v1073 = vpop.f32.mrb[0].mxu0
  %1074 = vmatprep.mubr.f32.mxu0 0.0
  %v1075 = vand.u32 %v97, 4294901760
  %v1076 = vsub.f32 %v97, %v1075
  %v1077 = vand.u32 %v1076, 4294901760
  %1078 = vmatmul.mubr.f32.gmra.mrb[0].mxu0 %v1077
  %v1079 = vpop.f32.mrb[0].mxu0
  %v1080 = vadd.f32 %v826, %v1079
  %v1081 = vpop.f32.mrb[0].mxu0
  %1082 = vmatprep.mubr.f32.mxu0 0.0
  %v1083 = vand.u32 %v100, 4294901760
  %v1084 = vsub.f32 %v100, %v1083
  %v1085 = vand.u32 %v1084, 4294901760
  %1086 = vmatmul.mubr.f32.gmra.mrb[0].mxu0 %v1085
  %v1087 = vpop.f32.mrb[0].mxu0
  %v1088 = vadd.f32 %v833, %v1087
  %v1089 = vpop.f32.mrb[0].mxu0
  %1090 = vmatprep.mubr.f32.mxu0 0.0
  %v1091 = vand.u32 %v103, 4294901760
  %v1092 = vsub.f32 %v103, %v1091
  %v1093 = vand.u32 %v1092, 4294901760
  %1094 = vmatmul.mubr.f32.gmra.mrb[0].mxu0 %v1093
  %v1095 = vpop.f32.mrb[0].mxu0
  %v1096 = vadd.f32 %v840, %v1095
  %v1097 = vpop.f32.mrb[0].mxu0
  %1098 = vmatprep.mubr.f32.mxu0 0.0
  %v1099 = vand.u32 %v106, 4294901760
  %v1100 = vsub.f32 %v106, %v1099
  %v1101 = vand.u32 %v1100, 4294901760
  %1102 = vmatmul.mubr.f32.gmra.mrb[0].mxu0 %v1101
  %v1103 = vpop.f32.mrb[0].mxu0
  %v1104 = vadd.f32 %v847, %v1103
  %v1105 = vpop.f32.mrb[0].mxu0
  %1106 = vmatprep.mubr.f32.mxu0 0.0
  %v1107 = vand.u32 %v109, 4294901760
  %v1108 = vsub.f32 %v109, %v1107
  %v1109 = vand.u32 %v1108, 4294901760
  %1110 = vmatmul.mubr.f32.gmra.mrb[0].mxu0 %v1109
  %v1111 = vpop.f32.mrb[0].mxu0
  %v1112 = vadd.f32 %v854, %v1111
  %v1113 = vpop.f32.mrb[0].mxu0
  %1114 = vmatprep.mubr.f32.mxu0 0.0
  %v1115 = vand.u32 %v112, 4294901760
  %v1116 = vsub.f32 %v112, %v1115
  %v1117 = vand.u32 %v1116, 4294901760
  %1118 = vmatmul.mubr.f32.gmra.mrb[0].mxu0 %v1117
  %v1119 = vpop.f32.mrb[0].mxu0
  %v1120 = vadd.f32 %v861, %v1119
  %v1121 = vpop.f32.mrb[0].mxu0
  %1122 = vmatprep.mubr.f32.mxu0 0.0
  %v1123 = vand.u32 %v115, 4294901760
  %v1124 = vsub.f32 %v115, %v1123
  %v1125 = vand.u32 %v1124, 4294901760
  %1126 = vmatmul.mubr.f32.gmra.mrb[0].mxu0 %v1125
  %v1127 = vpop.f32.mrb[0].mxu0
  %v1128 = vadd.f32 %v868, %v1127
  %v1129 = vpop.f32.mrb[0].mxu0
  %1130 = vmatprep.mubr.f32.mxu0 0.0
  %v1131 = vand.u32 %v118, 4294901760
  %v1132 = vsub.f32 %v118, %v1131
  %v1133 = vand.u32 %v1132, 4294901760
  %1134 = vmatmul.mubr.f32.gmra.mrb[0].mxu0 %v1133
  %v1135 = vpop.f32.mrb[0].mxu0
  %v1136 = vadd.f32 %v875, %v1135
  %v1137 = vpop.f32.mrb[0].mxu0
  %1138 = vmatprep.mubr.f32.mxu0 0.0
  %v1139 = vand.u32 %v121, 4294901760
  %v1140 = vsub.f32 %v121, %v1139
  %v1141 = vand.u32 %v1140, 4294901760
  %1142 = vmatmul.mubr.f32.gmra.mrb[0].mxu0 %v1141
  %v1143 = vpop.f32.mrb[0].mxu0
  %v1144 = vadd.f32 %v882, %v1143
  %v1145 = vpop.f32.mrb[0].mxu0
  %1146 = vmatprep.mubr.f32.mxu0 0.0
  %v1147 = vand.u32 %v124, 4294901760
  %v1148 = vsub.f32 %v124, %v1147
  %v1149 = vand.u32 %v1148, 4294901760
  %1150 = vmatmul.mubr.f32.gmra.mrb[0].mxu0 %v1149
  %v1151 = vpop.f32.mrb[0].mxu0
  %v1152 = vadd.f32 %v889, %v1151
  %v1153 = vpop.f32.mrb[0].mxu0
  %1154 = vmatprep.mubr.f32.mxu0 0.0
  %v1155 = vand.u32 %v127, 4294901760
  %v1156 = vsub.f32 %v127, %v1155
  %v1157 = vand.u32 %v1156, 4294901760
  %1158 = vmatmul.mubr.f32.gmra.mrb[0].mxu0 %v1157
  %v1159 = vpop.f32.mrb[0].mxu0
  %v1160 = vadd.f32 %v896, %v1159
  %v1161 = vpop.f32.mrb[0].mxu0
  %1162 = vmatprep.mubr.f32.mxu0 0.0
  %v1163 = vand.u32 %v130, 4294901760
  %v1164 = vsub.f32 %v130, %v1163
  %v1165 = vand.u32 %v1164, 4294901760
  %1166 = vmatmul.mubr.f32.gmra.mrb[0].mxu0 %v1165
  %v1167 = vpop.f32.mrb[0].mxu0
  %v1168 = vadd.f32 %v903, %v1167
  %v1169 = vpop.f32.mrb[0].mxu0
  %1170 = vmatprep.mubr.f32.mxu0 0.0
  %v1171 = vand.u32 %v133, 4294901760
  %v1172 = vsub.f32 %v133, %v1171
  %v1173 = vand.u32 %v1172, 4294901760
  %1174 = vmatmul.mubr.f32.gmra.mrb[0].mxu0 %v1173
  %v1175 = vpop.f32.mrb[0].mxu0
  %v1176 = vadd.f32 %v910, %v1175
  %v1177 = vpop.f32.mrb[0].mxu0
  %1178 = vdwg.mxu0
  %1179 = vmatprep.subr.mxu0 0.0
  %v1180 = vand.u32 %v51, 4294901760
  %v1181 = vsub.f32 %v51, %v1180
  %v1182 = vand.u32 %v1181, 4294901760
  %1183 = vmatpush1.msra.mxu0 %v1182
  %1184 = vmatprep.subr.mxu0 0.0
  %1185 = vmatpush1.msra.mxu0 0.0
  %1186 = vmatprep.subr.mxu0 0.0
  %1187 = vmatpush1.msra.mxu0 0.0
  %1188 = vmatprep.subr.mxu0 0.0
  %1189 = vmatpush1.msra.mxu0 0.0
  %1190 = vmatprep.subr.mxu0 0.0
  %1191 = vmatpush1.msra.mxu0 0.0
  %1192 = vmatprep.subr.mxu0 0.0
  %1193 = vmatpush1.msra.mxu0 0.0
  %1194 = vmatprep.subr.mxu0 0.0
  %1195 = vmatpush1.msra.mxu0 0.0
  %1196 = vmatprep.subr.mxu0 0.0
  %1197 = vmatpush1.msra.mxu0 0.0
  %1198 = vmatprep.subr.mxu0 0.0
  %1199 = vmatpush1.msra.mxu0 0.0
  %1200 = vmatprep.subr.mxu0 0.0
  %1201 = vmatpush1.msra.mxu0 0.0
  %1202 = vmatprep.subr.mxu0 0.0
  %1203 = vmatpush1.msra.mxu0 0.0
  %1204 = vmatprep.subr.mxu0 0.0
  %1205 = vmatpush1.msra.mxu0 0.0
  %1206 = vmatprep.subr.mxu0 0.0
  %1207 = vmatpush1.msra.mxu0 0.0
  %1208 = vmatprep.subr.mxu0 0.0
  %1209 = vmatpush1.msra.mxu0 0.0
  %1210 = vmatprep.subr.mxu0 0.0
  %1211 = vmatpush1.msra.mxu0 0.0
  %1212 = vmatprep.subr.mxu0 0.0
  %1213 = vmatpush1.msra.mxu0 0.0
  %1214 = vmatprep.subr.mxu0 0.0
  %1215 = vmatpush1.msra.mxu0 0.0
  %1216 = vmatprep.subr.mxu0 0.0
  %1217 = vmatpush1.msra.mxu0 0.0
  %1218 = vmatprep.subr.mxu0 0.0
  %1219 = vmatpush1.msra.mxu0 0.0
  %1220 = vmatprep.subr.mxu0 0.0
  %1221 = vmatpush1.msra.mxu0 0.0
  %1222 = vmatprep.subr.mxu0 0.0
  %1223 = vmatpush1.msra.mxu0 0.0
  %1224 = vmatprep.subr.mxu0 0.0
  %1225 = vmatpush1.msra.mxu0 0.0
  %1226 = vmatprep.subr.mxu0 0.0
  %1227 = vmatpush1.msra.mxu0 0.0
  %1228 = vmatprep.subr.mxu0 0.0
  %1229 = vmatpush1.msra.mxu0 0.0
  %1230 = vmatprep.subr.mxu0 0.0
  %1231 = vmatpush1.msra.mxu0 0.0
  %1232 = vmatprep.subr.mxu0 0.0
  %1233 = vmatpush1.msra.mxu0 0.0
  %1234 = vmatprep.subr.mxu0 0.0
  %1235 = vmatpush1.msra.mxu0 0.0
  %1236 = vmatprep.subr.mxu0 0.0
  %1237 = vmatpush1.msra.mxu0 0.0
  %1238 = vmatprep.subr.mxu0 0.0
  %1239 = vmatpush1.msra.mxu0 0.0
  %1240 = vmatprep.subr.mxu0 0.0
  %1241 = vmatpush1.msra.mxu0 0.0
  %1242 = vmatprep.subr.mxu0 0.0
  %1243 = vmatpush1.msra.mxu0 0.0
  %1244 = vmatprep.subr.mxu0 0.0
  %1245 = vmatpush1.msra.mxu0 0.0
  %1246 = vmatprep.mubr.f32.mxu0 0.0
  %v1247 = vand.u32 %v61, 4294901760
  %1248 = vmatmul.mubr.f32.gmra.mrb[0].mxu0 %v1247
  %v1249 = vpop.f32.mrb[0].mxu0
  %v1250 = vadd.f32 %v984, %v1249
  %v1251 = vpop.f32.mrb[0].mxu0
  %1252 = vmatprep.mubr.f32.mxu0 0.0
  %v1253 = vand.u32 %v64, 4294901760
  %1254 = vmatmul.mubr.f32.gmra.mrb[0].mxu0 %v1253
  %v1255 = vpop.f32.mrb[0].mxu0
  %v1256 = vadd.f32 %v992, %v1255
  %v1257 = vpop.f32.mrb[0].mxu0
  %1258 = vmatprep.mubr.f32.mxu0 0.0
  %v1259 = vand.u32 %v67, 4294901760
  %1260 = vmatmul.mubr.f32.gmra.mrb[0].mxu0 %v1259
  %v1261 = vpop.f32.mrb[0].mxu0
  %v1262 = vadd.f32 %v1000, %v1261
  %v1263 = vpop.f32.mrb[0].mxu0
  %1264 = vmatprep.mubr.f32.mxu0 0.0
  %v1265 = vand.u32 %v70, 4294901760
  %1266 = vmatmul.mubr.f32.gmra.mrb[0].mxu0 %v1265
  %v1267 = vpop.f32.mrb[0].mxu0
  %v1268 = vadd.f32 %v1008, %v1267
  %v1269 = vpop.f32.mrb[0].mxu0
  %1270 = vmatprep.mubr.f32.mxu0 0.0
  %v1271 = vand.u32 %v73, 4294901760
  %1272 = vmatmul.mubr.f32.gmra.mrb[0].mxu0 %v1271
  %v1273 = vpop.f32.mrb[0].mxu0
  %v1274 = vadd.f32 %v1016, %v1273
  %v1275 = vpop.f32.mrb[0].mxu0
  %1276 = vmatprep.mubr.f32.mxu0 0.0
  %v1277 = vand.u32 %v76, 4294901760
  %1278 = vmatmul.mubr.f32.gmra.mrb[0].mxu0 %v1277
  %v1279 = vpop.f32.mrb[0].mxu0
  %v1280 = vadd.f32 %v1024, %v1279
  %v1281 = vpop.f32.mrb[0].mxu0
  %1282 = vmatprep.mubr.f32.mxu0 0.0
  %v1283 = vand.u32 %v79, 4294901760
  %1284 = vmatmul.mubr.f32.gmra.mrb[0].mxu0 %v1283
  %v1285 = vpop.f32.mrb[0].mxu0
  %v1286 = vadd.f32 %v1032, %v1285
  %v1287 = vpop.f32.mrb[0].mxu0
  %1288 = vmatprep.mubr.f32.mxu0 0.0
  %v1289 = vand.u32 %v82, 4294901760
  %1290 = vmatmul.mubr.f32.gmra.mrb[0].mxu0 %v1289
  %v1291 = vpop.f32.mrb[0].mxu0
  %v1292 = vadd.f32 %v1040, %v1291
  %v1293 = vpop.f32.mrb[0].mxu0
  %1294 = vmatprep.mubr.f32.mxu0 0.0
  %v1295 = vand.u32 %v85, 4294901760
  %1296 = vmatmul.mubr.f32.gmra.mrb[0].mxu0 %v1295
  %v1297 = vpop.f32.mrb[0].mxu0
  %v1298 = vadd.f32 %v1048, %v1297
  %v1299 = vpop.f32.mrb[0].mxu0
  %1300 = vmatprep.mubr.f32.mxu0 0.0
  %v1301 = vand.u32 %v88, 4294901760
  %1302 = vmatmul.mubr.f32.gmra.mrb[0].mxu0 %v1301
  %v1303 = vpop.f32.mrb[0].mxu0
  %v1304 = vadd.f32 %v1056, %v1303
  %v1305 = vpop.f32.mrb[0].mxu0
  %1306 = vmatprep.mubr.f32.mxu0 0.0
  %v1307 = vand.u32 %v91, 4294901760
  %1308 = vmatmul.mubr.f32.gmra.mrb[0].mxu0 %v1307
  %v1309 = vpop.f32.mrb[0].mxu0
  %v1310 = vadd.f32 %v1064, %v1309
  %v1311 = vpop.f32.mrb[0].mxu0
  %1312 = vmatprep.mubr.f32.mxu0 0.0
  %v1313 = vand.u32 %v94, 4294901760
  %1314 = vmatmul.mubr.f32.gmra.mrb[0].mxu0 %v1313
  %v1315 = vpop.f32.mrb[0].mxu0
  %v1316 = vadd.f32 %v1072, %v1315
  %v1317 = vpop.f32.mrb[0].mxu0
  %1318 = vmatprep.mubr.f32.mxu0 0.0
  %v1319 = vand.u32 %v97, 4294901760
  %1320 = vmatmul.mubr.f32.gmra.mrb[0].mxu0 %v1319
  %v1321 = vpop.f32.mrb[0].mxu0
  %v1322 = vadd.f32 %v1080, %v1321
  %v1323 = vpop.f32.mrb[0].mxu0
  %1324 = vmatprep.mubr.f32.mxu0 0.0
  %v1325 = vand.u32 %v100, 4294901760
  %1326 = vmatmul.mubr.f32.gmra.mrb[0].mxu0 %v1325
  %v1327 = vpop.f32.mrb[0].mxu0
  %v1328 = vadd.f32 %v1088, %v1327
  %v1329 = vpop.f32.mrb[0].mxu0
  %1330 = vmatprep.mubr.f32.mxu0 0.0
  %v1331 = vand.u32 %v103, 4294901760
  %1332 = vmatmul.mubr.f32.gmra.mrb[0].mxu0 %v1331
  %v1333 = vpop.f32.mrb[0].mxu0
  %v1334 = vadd.f32 %v1096, %v1333
  %v1335 = vpop.f32.mrb[0].mxu0
  %1336 = vmatprep.mubr.f32.mxu0 0.0
  %v1337 = vand.u32 %v106, 4294901760
  %1338 = vmatmul.mubr.f32.gmra.mrb[0].mxu0 %v1337
  %v1339 = vpop.f32.mrb[0].mxu0
  %v1340 = vadd.f32 %v1104, %v1339
  %v1341 = vpop.f32.mrb[0].mxu0
  %1342 = vmatprep.mubr.f32.mxu0 0.0
  %v1343 = vand.u32 %v109, 4294901760
  %1344 = vmatmul.mubr.f32.gmra.mrb[0].mxu0 %v1343
  %v1345 = vpop.f32.mrb[0].mxu0
  %v1346 = vadd.f32 %v1112, %v1345
  %v1347 = vpop.f32.mrb[0].mxu0
  %1348 = vmatprep.mubr.f32.mxu0 0.0
  %v1349 = vand.u32 %v112, 4294901760
  %1350 = vmatmul.mubr.f32.gmra.mrb[0].mxu0 %v1349
  %v1351 = vpop.f32.mrb[0].mxu0
  %v1352 = vadd.f32 %v1120, %v1351
  %v1353 = vpop.f32.mrb[0].mxu0
  %1354 = vmatprep.mubr.f32.mxu0 0.0
  %v1355 = vand.u32 %v115, 4294901760
  %1356 = vmatmul.mubr.f32.gmra.mrb[0].mxu0 %v1355
  %v1357 = vpop.f32.mrb[0].mxu0
  %v1358 = vadd.f32 %v1128, %v1357
  %v1359 = vpop.f32.mrb[0].mxu0
  %1360 = vmatprep.mubr.f32.mxu0 0.0
  %v1361 = vand.u32 %v118, 4294901760
  %1362 = vmatmul.mubr.f32.gmra.mrb[0].mxu0 %v1361
  %v1363 = vpop.f32.mrb[0].mxu0
  %v1364 = vadd.f32 %v1136, %v1363
  %v1365 = vpop.f32.mrb[0].mxu0
  %1366 = vmatprep.mubr.f32.mxu0 0.0
  %v1367 = vand.u32 %v121, 4294901760
  %1368 = vmatmul.mubr.f32.gmra.mrb[0].mxu0 %v1367
  %v1369 = vpop.f32.mrb[0].mxu0
  %v1370 = vadd.f32 %v1144, %v1369
  %v1371 = vpop.f32.mrb[0].mxu0
  %1372 = vmatprep.mubr.f32.mxu0 0.0
  %v1373 = vand.u32 %v124, 4294901760
  %1374 = vmatmul.mubr.f32.gmra.mrb[0].mxu0 %v1373
  %v1375 = vpop.f32.mrb[0].mxu0
  %v1376 = vadd.f32 %v1152, %v1375
  %v1377 = vpop.f32.mrb[0].mxu0
  %1378 = vmatprep.mubr.f32.mxu0 0.0
  %v1379 = vand.u32 %v127, 4294901760
  %1380 = vmatmul.mubr.f32.gmra.mrb[0].mxu0 %v1379
  %v1381 = vpop.f32.mrb[0].mxu0
  %v1382 = vadd.f32 %v1160, %v1381
  %v1383 = vpop.f32.mrb[0].mxu0
  %1384 = vmatprep.mubr.f32.mxu0 0.0
  %v1385 = vand.u32 %v130, 4294901760
  %1386 = vmatmul.mubr.f32.gmra.mrb[0].mxu0 %v1385
  %v1387 = vpop.f32.mrb[0].mxu0
  %v1388 = vadd.f32 %v1168, %v1387
  %v1389 = vpop.f32.mrb[0].mxu0
  %1390 = vmatprep.mubr.f32.mxu0 0.0
  %v1391 = vand.u32 %v133, 4294901760
  %1392 = vmatmul.mubr.f32.gmra.mrb[0].mxu0 %v1391
  %v1393 = vpop.f32.mrb[0].mxu0
  %v1394 = vadd.f32 %v1176, %v1393
  %v1395 = vpop.f32.mrb[0].mxu0
  %1396 = vdwg.mxu0
  %1397 = vmatprep.subr.mxu0 0.0
  %v1398 = vand.u32 %v51, 4294901760
  %1399 = vmatpush1.msra.mxu0 %v1398
  %1400 = vmatprep.subr.mxu0 0.0
  %1401 = vmatpush1.msra.mxu0 0.0
  %1402 = vmatprep.subr.mxu0 0.0
  %1403 = vmatpush1.msra.mxu0 0.0
  %1404 = vmatprep.subr.mxu0 0.0
  %1405 = vmatpush1.msra.mxu0 0.0
  %1406 = vmatprep.subr.mxu0 0.0
  %1407 = vmatpush1.msra.mxu0 0.0
  %1408 = vmatprep.subr.mxu0 0.0
  %1409 = vmatpush1.msra.mxu0 0.0
  %1410 = vmatprep.subr.mxu0 0.0
  %1411 = vmatpush1.msra.mxu0 0.0
  %1412 = vmatprep.subr.mxu0 0.0
  %1413 = vmatpush1.msra.mxu0 0.0
  %1414 = vmatprep.subr.mxu0 0.0
  %1415 = vmatpush1.msra.mxu0 0.0
  %1416 = vmatprep.subr.mxu0 0.0
  %1417 = vmatpush1.msra.mxu0 0.0
  %1418 = vmatprep.subr.mxu0 0.0
  %1419 = vmatpush1.msra.mxu0 0.0
  %1420 = vmatprep.subr.mxu0 0.0
  %1421 = vmatpush1.msra.mxu0 0.0
  %1422 = vmatprep.subr.mxu0 0.0
  %1423 = vmatpush1.msra.mxu0 0.0
  %1424 = vmatprep.subr.mxu0 0.0
  %1425 = vmatpush1.msra.mxu0 0.0
  %1426 = vmatprep.subr.mxu0 0.0
  %1427 = vmatpush1.msra.mxu0 0.0
  %1428 = vmatprep.subr.mxu0 0.0
  %1429 = vmatpush1.msra.mxu0 0.0
  %1430 = vmatprep.subr.mxu0 0.0
  %1431 = vmatpush1.msra.mxu0 0.0
  %1432 = vmatprep.subr.mxu0 0.0
  %1433 = vmatpush1.msra.mxu0 0.0
  %1434 = vmatprep.subr.mxu0 0.0
  %1435 = vmatpush1.msra.mxu0 0.0
  %1436 = vmatprep.subr.mxu0 0.0
  %1437 = vmatpush1.msra.mxu0 0.0
  %1438 = vmatprep.subr.mxu0 0.0
  %1439 = vmatpush1.msra.mxu0 0.0
  %1440 = vmatprep.subr.mxu0 0.0
  %1441 = vmatpush1.msra.mxu0 0.0
  %1442 = vmatprep.subr.mxu0 0.0
  %1443 = vmatpush1.msra.mxu0 0.0
  %1444 = vmatprep.subr.mxu0 0.0
  %1445 = vmatpush1.msra.mxu0 0.0
  %1446 = vmatprep.subr.mxu0 0.0
  %1447 = vmatpush1.msra.mxu0 0.0
  %1448 = vmatprep.subr.mxu0 0.0
  %1449 = vmatpush1.msra.mxu0 0.0
  %1450 = vmatprep.subr.mxu0 0.0
  %1451 = vmatpush1.msra.mxu0 0.0
  %1452 = vmatprep.subr.mxu0 0.0
  %1453 = vmatpush1.msra.mxu0 0.0
  %1454 = vmatprep.subr.mxu0 0.0
  %1455 = vmatpush1.msra.mxu0 0.0
  %1456 = vmatprep.subr.mxu0 0.0
  %1457 = vmatpush1.msra.mxu0 0.0
  %1458 = vmatprep.subr.mxu0 0.0
  %1459 = vmatpush1.msra.mxu0 0.0
  %1460 = vmatprep.subr.mxu0 0.0
  %1461 = vmatpush1.msra.mxu0 0.0
  %1462 = vmatprep.mubr.f32.mxu0 0.0
  %v1463 = vand.u32 %v61, 4294901760
  %1464 = vmatmul.mubr.f32.gmra.mrb[0].mxu0 %v1463
  %v1465 = vpop.f32.mrb[0].mxu0
  %v1466 = vadd.f32 %v1250, %v1465
  %v1467 = vpop.f32.mrb[0].mxu0
  %1468 = vmatprep.mubr.f32.mxu0 0.0
  %v1469 = vand.u32 %v64, 4294901760
  %1470 = vmatmul.mubr.f32.gmra.mrb[0].mxu0 %v1469
  %v1471 = vpop.f32.mrb[0].mxu0
  %v1472 = vadd.f32 %v1256, %v1471
  %v1473 = vpop.f32.mrb[0].mxu0
  %1474 = vmatprep.mubr.f32.mxu0 0.0
  %v1475 = vand.u32 %v67, 4294901760
  %1476 = vmatmul.mubr.f32.gmra.mrb[0].mxu0 %v1475
  %v1477 = vpop.f32.mrb[0].mxu0
  %v1478 = vadd.f32 %v1262, %v1477
  %v1479 = vpop.f32.mrb[0].mxu0
  %1480 = vmatprep.mubr.f32.mxu0 0.0
  %v1481 = vand.u32 %v70, 4294901760
  %1482 = vmatmul.mubr.f32.gmra.mrb[0].mxu0 %v1481
  %v1483 = vpop.f32.mrb[0].mxu0
  %v1484 = vadd.f32 %v1268, %v1483
  %v1485 = vpop.f32.mrb[0].mxu0
  %1486 = vmatprep.mubr.f32.mxu0 0.0
  %v1487 = vand.u32 %v73, 4294901760
  %1488 = vmatmul.mubr.f32.gmra.mrb[0].mxu0 %v1487
  %v1489 = vpop.f32.mrb[0].mxu0
  %v1490 = vadd.f32 %v1274, %v1489
  %v1491 = vpop.f32.mrb[0].mxu0
  %1492 = vmatprep.mubr.f32.mxu0 0.0
  %v1493 = vand.u32 %v76, 4294901760
  %1494 = vmatmul.mubr.f32.gmra.mrb[0].mxu0 %v1493
  %v1495 = vpop.f32.mrb[0].mxu0
  %v1496 = vadd.f32 %v1280, %v1495
  %v1497 = vpop.f32.mrb[0].mxu0
  %1498 = vmatprep.mubr.f32.mxu0 0.0
  %v1499 = vand.u32 %v79, 4294901760
  %1500 = vmatmul.mubr.f32.gmra.mrb[0].mxu0 %v1499
  %v1501 = vpop.f32.mrb[0].mxu0
  %v1502 = vadd.f32 %v1286, %v1501
  %v1503 = vpop.f32.mrb[0].mxu0
  %1504 = vmatprep.mubr.f32.mxu0 0.0
  %v1505 = vand.u32 %v82, 4294901760
  %1506 = vmatmul.mubr.f32.gmra.mrb[0].mxu0 %v1505
  %v1507 = vpop.f32.mrb[0].mxu0
  %v1508 = vadd.f32 %v1292, %v1507
  %v1509 = vpop.f32.mrb[0].mxu0
  %1510 = vmatprep.mubr.f32.mxu0 0.0
  %v1511 = vand.u32 %v85, 4294901760
  %1512 = vmatmul.mubr.f32.gmra.mrb[0].mxu0 %v1511
  %v1513 = vpop.f32.mrb[0].mxu0
  %v1514 = vadd.f32 %v1298, %v1513
  %v1515 = vpop.f32.mrb[0].mxu0
  %1516 = vmatprep.mubr.f32.mxu0 0.0
  %v1517 = vand.u32 %v88, 4294901760
  %1518 = vmatmul.mubr.f32.gmra.mrb[0].mxu0 %v1517
  %v1519 = vpop.f32.mrb[0].mxu0
  %v1520 = vadd.f32 %v1304, %v1519
  %v1521 = vpop.f32.mrb[0].mxu0
  %1522 = vmatprep.mubr.f32.mxu0 0.0
  %v1523 = vand.u32 %v91, 4294901760
  %1524 = vmatmul.mubr.f32.gmra.mrb[0].mxu0 %v1523
  %v1525 = vpop.f32.mrb[0].mxu0
  %v1526 = vadd.f32 %v1310, %v1525
  %v1527 = vpop.f32.mrb[0].mxu0
  %1528 = vmatprep.mubr.f32.mxu0 0.0
  %v1529 = vand.u32 %v94, 4294901760
  %1530 = vmatmul.mubr.f32.gmra.mrb[0].mxu0 %v1529
  %v1531 = vpop.f32.mrb[0].mxu0
  %v1532 = vadd.f32 %v1316, %v1531
  %v1533 = vpop.f32.mrb[0].mxu0
  %1534 = vmatprep.mubr.f32.mxu0 0.0
  %v1535 = vand.u32 %v97, 4294901760
  %1536 = vmatmul.mubr.f32.gmra.mrb[0].mxu0 %v1535
  %v1537 = vpop.f32.mrb[0].mxu0
  %v1538 = vadd.f32 %v1322, %v1537
  %v1539 = vpop.f32.mrb[0].mxu0
  %1540 = vmatprep.mubr.f32.mxu0 0.0
  %v1541 = vand.u32 %v100, 4294901760
  %1542 = vmatmul.mubr.f32.gmra.mrb[0].mxu0 %v1541
  %v1543 = vpop.f32.mrb[0].mxu0
  %v1544 = vadd.f32 %v1328, %v1543
  %v1545 = vpop.f32.mrb[0].mxu0
  %1546 = vmatprep.mubr.f32.mxu0 0.0
  %v1547 = vand.u32 %v103, 4294901760
  %1548 = vmatmul.mubr.f32.gmra.mrb[0].mxu0 %v1547
  %v1549 = vpop.f32.mrb[0].mxu0
  %v1550 = vadd.f32 %v1334, %v1549
  %v1551 = vpop.f32.mrb[0].mxu0
  %1552 = vmatprep.mubr.f32.mxu0 0.0
  %v1553 = vand.u32 %v106, 4294901760
  %1554 = vmatmul.mubr.f32.gmra.mrb[0].mxu0 %v1553
  %v1555 = vpop.f32.mrb[0].mxu0
  %v1556 = vadd.f32 %v1340, %v1555
  %v1557 = vpop.f32.mrb[0].mxu0
  %1558 = vmatprep.mubr.f32.mxu0 0.0
  %v1559 = vand.u32 %v109, 4294901760
  %1560 = vmatmul.mubr.f32.gmra.mrb[0].mxu0 %v1559
  %v1561 = vpop.f32.mrb[0].mxu0
  %v1562 = vadd.f32 %v1346, %v1561
  %v1563 = vpop.f32.mrb[0].mxu0
  %1564 = vmatprep.mubr.f32.mxu0 0.0
  %v1565 = vand.u32 %v112, 4294901760
  %1566 = vmatmul.mubr.f32.gmra.mrb[0].mxu0 %v1565
  %v1567 = vpop.f32.mrb[0].mxu0
  %v1568 = vadd.f32 %v1352, %v1567
  %v1569 = vpop.f32.mrb[0].mxu0
  %1570 = vmatprep.mubr.f32.mxu0 0.0
  %v1571 = vand.u32 %v115, 4294901760
  %1572 = vmatmul.mubr.f32.gmra.mrb[0].mxu0 %v1571
  %v1573 = vpop.f32.mrb[0].mxu0
  %v1574 = vadd.f32 %v1358, %v1573
  %v1575 = vpop.f32.mrb[0].mxu0
  %1576 = vmatprep.mubr.f32.mxu0 0.0
  %v1577 = vand.u32 %v118, 4294901760
  %1578 = vmatmul.mubr.f32.gmra.mrb[0].mxu0 %v1577
  %v1579 = vpop.f32.mrb[0].mxu0
  %v1580 = vadd.f32 %v1364, %v1579
  %v1581 = vpop.f32.mrb[0].mxu0
  %1582 = vmatprep.mubr.f32.mxu0 0.0
  %v1583 = vand.u32 %v121, 4294901760
  %1584 = vmatmul.mubr.f32.gmra.mrb[0].mxu0 %v1583
  %v1585 = vpop.f32.mrb[0].mxu0
  %v1586 = vadd.f32 %v1370, %v1585
  %v1587 = vpop.f32.mrb[0].mxu0
  %1588 = vmatprep.mubr.f32.mxu0 0.0
  %v1589 = vand.u32 %v124, 4294901760
  %1590 = vmatmul.mubr.f32.gmra.mrb[0].mxu0 %v1589
  %v1591 = vpop.f32.mrb[0].mxu0
  %v1592 = vadd.f32 %v1376, %v1591
  %v1593 = vpop.f32.mrb[0].mxu0
  %1594 = vmatprep.mubr.f32.mxu0 0.0
  %v1595 = vand.u32 %v127, 4294901760
  %1596 = vmatmul.mubr.f32.gmra.mrb[0].mxu0 %v1595
  %v1597 = vpop.f32.mrb[0].mxu0
  %v1598 = vadd.f32 %v1382, %v1597
  %v1599 = vpop.f32.mrb[0].mxu0
  %1600 = vmatprep.mubr.f32.mxu0 0.0
  %v1601 = vand.u32 %v130, 4294901760
  %1602 = vmatmul.mubr.f32.gmra.mrb[0].mxu0 %v1601
  %v1603 = vpop.f32.mrb[0].mxu0
  %v1604 = vadd.f32 %v1388, %v1603
  %v1605 = vpop.f32.mrb[0].mxu0
  %1606 = vmatprep.mubr.f32.mxu0 0.0
  %v1607 = vand.u32 %v133, 4294901760
  %1608 = vmatmul.mubr.f32.gmra.mrb[0].mxu0 %v1607
  %v1609 = vpop.f32.mrb[0].mxu0
  %v1610 = vadd.f32 %v1394, %v1609
  %v1611 = vpop.f32.mrb[0].mxu0
  %1612 = vdwg.mxu0
  %v1613 = vtanh.pop %v1466
  %v1614 = vtanh.pop %v1472
  %v1615 = vtanh.pop %v1478
  %v1616 = vtanh.pop %v1484
  %v1617 = vtanh.pop %v1490
  %v1618 = vtanh.pop %v1496
  %v1619 = vtanh.pop %v1502
  %v1620 = vtanh.pop %v1508
  %v1621 = vtanh.pop %v1514
  %v1622 = vtanh.pop %v1520
  %v1623 = vtanh.pop %v1526
  %v1624 = vtanh.pop %v1532
  %v1625 = vtanh.pop %v1538
  %v1626 = vtanh.pop %v1544
  %v1627 = vtanh.pop %v1550
  %v1628 = vtanh.pop %v1556
  %v1629 = vtanh.pop %v1562
  %v1630 = vtanh.pop %v1568
  %v1631 = vtanh.pop %v1574
  %v1632 = vtanh.pop %v1580
  %v1633 = vtanh.pop %v1586
  %v1634 = vtanh.pop %v1592
  %v1635 = vtanh.pop %v1598
  %v1636 = vtanh.pop %v1604
  %v1637 = vtanh.pop %v1610
  %v1638 = vld [vmem:[%s3] sm:$0xff]
  %v1639 = vld [vmem:[%s3 + $0x8] sm:$0xff]
  %v1640 = vld [vmem:[%s3 + $0x10] sm:$0xff]
  %v1641 = vld [vmem:[%s3 + $0x18] sm:$0xff]
  %v1642 = vld [vmem:[%s3 + $0x20] sm:$0xff]
  %v1643 = vld [vmem:[%s3 + $0x28] sm:$0xff]
  %v1644 = vld [vmem:[%s3 + $0x30] sm:$0xff]
  %v1645 = vld [vmem:[%s3 + $0x38] sm:$0xff]
  %v1646 = vld [vmem:[%s3 + $0x40] sm:$0xff]
  %v1647 = vld [vmem:[%s3 + $0x48] sm:$0xff]
  %v1648 = vld [vmem:[%s3 + $0x50] sm:$0xff]
  %v1649 = vld [vmem:[%s3 + $0x58] sm:$0xff]
  %v1650 = vld [vmem:[%s3 + $0x60] sm:$0xff]
  %v1651 = vld [vmem:[%s3 + $0x68] sm:$0xff]
  %v1652 = vld [vmem:[%s3 + $0x70] sm:$0xff]
  %v1653 = vld [vmem:[%s3 + $0x78] sm:$0xff]
  %v1654 = vld [vmem:[%s4] sm:$0x1]
  %v1656 = vlaneseq
  %v1657 = vshrl.u32 %v1656, 7
  %v1658 = vsub.s32 0, %v1657
  %v1659 = vrot.slane %v1654, %v1658
  %1661 = vmatprep.subr.mxu0 0.0
  %v1662 = vand.u32 %v1638, 4294901760
  %1663 = vmatpush1.msra.mxu0 %v1662
  %1664 = vmatprep.subr.mxu0 0.0
  %v1665 = vand.u32 %v1639, 4294901760
  %1666 = vmatpush1.msra.mxu0 %v1665
  %1667 = vmatprep.subr.mxu0 0.0
  %v1668 = vand.u32 %v1640, 4294901760
  %1669 = vmatpush1.msra.mxu0 %v1668
  %1670 = vmatprep.subr.mxu0 0.0
  %v1671 = vand.u32 %v1641, 4294901760
  %1672 = vmatpush1.msra.mxu0 %v1671
  %1673 = vmatprep.subr.mxu0 0.0
  %v1674 = vand.u32 %v1642, 4294901760
  %1675 = vmatpush1.msra.mxu0 %v1674
  %1676 = vmatprep.subr.mxu0 0.0
  %v1677 = vand.u32 %v1643, 4294901760
  %1678 = vmatpush1.msra.mxu0 %v1677
  %1679 = vmatprep.subr.mxu0 0.0
  %v1680 = vand.u32 %v1644, 4294901760
  %1681 = vmatpush1.msra.mxu0 %v1680
  %1682 = vmatprep.subr.mxu0 0.0
  %v1683 = vand.u32 %v1645, 4294901760
  %1684 = vmatpush1.msra.mxu0 %v1683
  %1685 = vmatprep.subr.mxu0 0.0
  %v1686 = vand.u32 %v1646, 4294901760
  %1687 = vmatpush1.msra.mxu0 %v1686
  %1688 = vmatprep.subr.mxu0 0.0
  %v1689 = vand.u32 %v1647, 4294901760
  %1690 = vmatpush1.msra.mxu0 %v1689
  %1691 = vmatprep.subr.mxu0 0.0
  %v1692 = vand.u32 %v1648, 4294901760
  %1693 = vmatpush1.msra.mxu0 %v1692
  %1694 = vmatprep.subr.mxu0 0.0
  %v1695 = vand.u32 %v1649, 4294901760
  %1696 = vmatpush1.msra.mxu0 %v1695
  %1697 = vmatprep.subr.mxu0 0.0
  %v1698 = vand.u32 %v1650, 4294901760
  %1699 = vmatpush1.msra.mxu0 %v1698
  %1700 = vmatprep.subr.mxu0 0.0
  %v1701 = vand.u32 %v1651, 4294901760
  %1702 = vmatpush1.msra.mxu0 %v1701
  %1703 = vmatprep.subr.mxu0 0.0
  %v1704 = vand.u32 %v1652, 4294901760
  %1705 = vmatpush1.msra.mxu0 %v1704
  %1706 = vmatprep.subr.mxu0 0.0
  %v1707 = vand.u32 %v1653, 4294901760
  %1708 = vmatpush1.msra.mxu0 %v1707
  %1709 = vmatprep.subr.mxu0 0.0
  %1710 = vmatpush1.msra.mxu0 0.0
  %1711 = vmatprep.subr.mxu0 0.0
  %1712 = vmatpush1.msra.mxu0 0.0
  %1713 = vmatprep.subr.mxu0 0.0
  %1714 = vmatpush1.msra.mxu0 0.0
  %1715 = vmatprep.subr.mxu0 0.0
  %1716 = vmatpush1.msra.mxu0 0.0
  %1717 = vmatprep.subr.mxu0 0.0
  %1718 = vmatpush1.msra.mxu0 0.0
  %1719 = vmatprep.subr.mxu0 0.0
  %1720 = vmatpush1.msra.mxu0 0.0
  %1721 = vmatprep.subr.mxu0 0.0
  %1722 = vmatpush1.msra.mxu0 0.0
  %1723 = vmatprep.subr.mxu0 0.0
  %1724 = vmatpush1.msra.mxu0 0.0
  %1725 = vmatprep.subr.mxu0 0.0
  %1726 = vmatpush1.msra.mxu0 0.0
  %1727 = vmatprep.subr.mxu0 0.0
  %1728 = vmatpush1.msra.mxu0 0.0
  %1729 = vmatprep.subr.mxu0 0.0
  %1730 = vmatpush1.msra.mxu0 0.0
  %1731 = vmatprep.subr.mxu0 0.0
  %1732 = vmatpush1.msra.mxu0 0.0
  %1733 = vmatprep.subr.mxu0 0.0
  %1734 = vmatpush1.msra.mxu0 0.0
  %1735 = vmatprep.subr.mxu0 0.0
  %1736 = vmatpush1.msra.mxu0 0.0
  %1737 = vmatprep.subr.mxu0 0.0
  %1738 = vmatpush1.msra.mxu0 0.0
  %1739 = vmatprep.subr.mxu0 0.0
  %1740 = vmatpush1.msra.mxu0 0.0
  %1741 = vmatprep.mubr.f32.mxu0 0.0
  %v1742 = vand.u32 %v1613, 4294901760
  %v1743 = vsub.f32 %v1613, %v1742
  %v1744 = vand.u32 %v1743, 4294901760
  %v1745 = vsub.f32 %v1743, %v1744
  %v1746 = vand.u32 %v1745, 4294901760
  %1747 = vmatmul.mubr.f32.gmra.mrb[0].mxu0 %v1746
  %v1748 = vpop.f32.mrb[0].mxu0
  %v1749 = vadd.f32 %v1659, %v1748
  %v1750 = vpop.f32.mrb[0].mxu0
  %1751 = vmatprep.mubr.f32.mxu0 0.0
  %v1752 = vand.u32 %v1614, 4294901760
  %v1753 = vsub.f32 %v1614, %v1752
  %v1754 = vand.u32 %v1753, 4294901760
  %v1755 = vsub.f32 %v1753, %v1754
  %v1756 = vand.u32 %v1755, 4294901760
  %1757 = vmatmul.mubr.f32.gmra.mrb[0].mxu0 %v1756
  %v1758 = vpop.f32.mrb[0].mxu0
  %v1759 = vadd.f32 %v1659, %v1758
  %v1760 = vpop.f32.mrb[0].mxu0
  %1761 = vmatprep.mubr.f32.mxu0 0.0
  %v1762 = vand.u32 %v1615, 4294901760
  %v1763 = vsub.f32 %v1615, %v1762
  %v1764 = vand.u32 %v1763, 4294901760
  %v1765 = vsub.f32 %v1763, %v1764
  %v1766 = vand.u32 %v1765, 4294901760
  %1767 = vmatmul.mubr.f32.gmra.mrb[0].mxu0 %v1766
  %v1768 = vpop.f32.mrb[0].mxu0
  %v1769 = vadd.f32 %v1659, %v1768
  %v1770 = vpop.f32.mrb[0].mxu0
  %1771 = vmatprep.mubr.f32.mxu0 0.0
  %v1772 = vand.u32 %v1616, 4294901760
  %v1773 = vsub.f32 %v1616, %v1772
  %v1774 = vand.u32 %v1773, 4294901760
  %v1775 = vsub.f32 %v1773, %v1774
  %v1776 = vand.u32 %v1775, 4294901760
  %1777 = vmatmul.mubr.f32.gmra.mrb[0].mxu0 %v1776
  %v1778 = vpop.f32.mrb[0].mxu0
  %v1779 = vadd.f32 %v1659, %v1778
  %v1780 = vpop.f32.mrb[0].mxu0
  %1781 = vmatprep.mubr.f32.mxu0 0.0
  %v1782 = vand.u32 %v1617, 4294901760
  %v1783 = vsub.f32 %v1617, %v1782
  %v1784 = vand.u32 %v1783, 4294901760
  %v1785 = vsub.f32 %v1783, %v1784
  %v1786 = vand.u32 %v1785, 4294901760
  %1787 = vmatmul.mubr.f32.gmra.mrb[0].mxu0 %v1786
  %v1788 = vpop.f32.mrb[0].mxu0
  %v1789 = vadd.f32 %v1659, %v1788
  %v1790 = vpop.f32.mrb[0].mxu0
  %1791 = vmatprep.mubr.f32.mxu0 0.0
  %v1792 = vand.u32 %v1618, 4294901760
  %v1793 = vsub.f32 %v1618, %v1792
  %v1794 = vand.u32 %v1793, 4294901760
  %v1795 = vsub.f32 %v1793, %v1794
  %v1796 = vand.u32 %v1795, 4294901760
  %1797 = vmatmul.mubr.f32.gmra.mrb[0].mxu0 %v1796
  %v1798 = vpop.f32.mrb[0].mxu0
  %v1799 = vadd.f32 %v1659, %v1798
  %v1800 = vpop.f32.mrb[0].mxu0
  %1801 = vmatprep.mubr.f32.mxu0 0.0
  %v1802 = vand.u32 %v1619, 4294901760
  %v1803 = vsub.f32 %v1619, %v1802
  %v1804 = vand.u32 %v1803, 4294901760
  %v1805 = vsub.f32 %v1803, %v1804
  %v1806 = vand.u32 %v1805, 4294901760
  %1807 = vmatmul.mubr.f32.gmra.mrb[0].mxu0 %v1806
  %v1808 = vpop.f32.mrb[0].mxu0
  %v1809 = vadd.f32 %v1659, %v1808
  %v1810 = vpop.f32.mrb[0].mxu0
  %1811 = vmatprep.mubr.f32.mxu0 0.0
  %v1812 = vand.u32 %v1620, 4294901760
  %v1813 = vsub.f32 %v1620, %v1812
  %v1814 = vand.u32 %v1813, 4294901760
  %v1815 = vsub.f32 %v1813, %v1814
  %v1816 = vand.u32 %v1815, 4294901760
  %1817 = vmatmul.mubr.f32.gmra.mrb[0].mxu0 %v1816
  %v1818 = vpop.f32.mrb[0].mxu0
  %v1819 = vadd.f32 %v1659, %v1818
  %v1820 = vpop.f32.mrb[0].mxu0
  %1821 = vmatprep.mubr.f32.mxu0 0.0
  %v1822 = vand.u32 %v1621, 4294901760
  %v1823 = vsub.f32 %v1621, %v1822
  %v1824 = vand.u32 %v1823, 4294901760
  %v1825 = vsub.f32 %v1823, %v1824
  %v1826 = vand.u32 %v1825, 4294901760
  %1827 = vmatmul.mubr.f32.gmra.mrb[0].mxu0 %v1826
  %v1828 = vpop.f32.mrb[0].mxu0
  %v1829 = vadd.f32 %v1659, %v1828
  %v1830 = vpop.f32.mrb[0].mxu0
  %1831 = vmatprep.mubr.f32.mxu0 0.0
  %v1832 = vand.u32 %v1622, 4294901760
  %v1833 = vsub.f32 %v1622, %v1832
  %v1834 = vand.u32 %v1833, 4294901760
  %v1835 = vsub.f32 %v1833, %v1834
  %v1836 = vand.u32 %v1835, 4294901760
  %1837 = vmatmul.mubr.f32.gmra.mrb[0].mxu0 %v1836
  %v1838 = vpop.f32.mrb[0].mxu0
  %v1839 = vadd.f32 %v1659, %v1838
  %v1840 = vpop.f32.mrb[0].mxu0
  %1841 = vmatprep.mubr.f32.mxu0 0.0
  %v1842 = vand.u32 %v1623, 4294901760
  %v1843 = vsub.f32 %v1623, %v1842
  %v1844 = vand.u32 %v1843, 4294901760
  %v1845 = vsub.f32 %v1843, %v1844
  %v1846 = vand.u32 %v1845, 4294901760
  %1847 = vmatmul.mubr.f32.gmra.mrb[0].mxu0 %v1846
  %v1848 = vpop.f32.mrb[0].mxu0
  %v1849 = vadd.f32 %v1659, %v1848
  %v1850 = vpop.f32.mrb[0].mxu0
  %1851 = vmatprep.mubr.f32.mxu0 0.0
  %v1852 = vand.u32 %v1624, 4294901760
  %v1853 = vsub.f32 %v1624, %v1852
  %v1854 = vand.u32 %v1853, 4294901760
  %v1855 = vsub.f32 %v1853, %v1854
  %v1856 = vand.u32 %v1855, 4294901760
  %1857 = vmatmul.mubr.f32.gmra.mrb[0].mxu0 %v1856
  %v1858 = vpop.f32.mrb[0].mxu0
  %v1859 = vadd.f32 %v1659, %v1858
  %v1860 = vpop.f32.mrb[0].mxu0
  %1861 = vmatprep.mubr.f32.mxu0 0.0
  %v1862 = vand.u32 %v1625, 4294901760
  %v1863 = vsub.f32 %v1625, %v1862
  %v1864 = vand.u32 %v1863, 4294901760
  %v1865 = vsub.f32 %v1863, %v1864
  %v1866 = vand.u32 %v1865, 4294901760
  %1867 = vmatmul.mubr.f32.gmra.mrb[0].mxu0 %v1866
  %v1868 = vpop.f32.mrb[0].mxu0
  %v1869 = vadd.f32 %v1659, %v1868
  %v1870 = vpop.f32.mrb[0].mxu0
  %1871 = vmatprep.mubr.f32.mxu0 0.0
  %v1872 = vand.u32 %v1626, 4294901760
  %v1873 = vsub.f32 %v1626, %v1872
  %v1874 = vand.u32 %v1873, 4294901760
  %v1875 = vsub.f32 %v1873, %v1874
  %v1876 = vand.u32 %v1875, 4294901760
  %1877 = vmatmul.mubr.f32.gmra.mrb[0].mxu0 %v1876
  %v1878 = vpop.f32.mrb[0].mxu0
  %v1879 = vadd.f32 %v1659, %v1878
  %v1880 = vpop.f32.mrb[0].mxu0
  %1881 = vmatprep.mubr.f32.mxu0 0.0
  %v1882 = vand.u32 %v1627, 4294901760
  %v1883 = vsub.f32 %v1627, %v1882
  %v1884 = vand.u32 %v1883, 4294901760
  %v1885 = vsub.f32 %v1883, %v1884
  %v1886 = vand.u32 %v1885, 4294901760
  %1887 = vmatmul.mubr.f32.gmra.mrb[0].mxu0 %v1886
  %v1888 = vpop.f32.mrb[0].mxu0
  %v1889 = vadd.f32 %v1659, %v1888
  %v1890 = vpop.f32.mrb[0].mxu0
  %1891 = vmatprep.mubr.f32.mxu0 0.0
  %v1892 = vand.u32 %v1628, 4294901760
  %v1893 = vsub.f32 %v1628, %v1892
  %v1894 = vand.u32 %v1893, 4294901760
  %v1895 = vsub.f32 %v1893, %v1894
  %v1896 = vand.u32 %v1895, 4294901760
  %1897 = vmatmul.mubr.f32.gmra.mrb[0].mxu0 %v1896
  %v1898 = vpop.f32.mrb[0].mxu0
  %v1899 = vadd.f32 %v1659, %v1898
  %v1900 = vpop.f32.mrb[0].mxu0
  %1901 = vmatprep.mubr.f32.mxu0 0.0
  %v1902 = vand.u32 %v1629, 4294901760
  %v1903 = vsub.f32 %v1629, %v1902
  %v1904 = vand.u32 %v1903, 4294901760
  %v1905 = vsub.f32 %v1903, %v1904
  %v1906 = vand.u32 %v1905, 4294901760
  %1907 = vmatmul.mubr.f32.gmra.mrb[0].mxu0 %v1906
  %v1908 = vpop.f32.mrb[0].mxu0
  %v1909 = vadd.f32 %v1659, %v1908
  %v1910 = vpop.f32.mrb[0].mxu0
  %1911 = vmatprep.mubr.f32.mxu0 0.0
  %v1912 = vand.u32 %v1630, 4294901760
  %v1913 = vsub.f32 %v1630, %v1912
  %v1914 = vand.u32 %v1913, 4294901760
  %v1915 = vsub.f32 %v1913, %v1914
  %v1916 = vand.u32 %v1915, 4294901760
  %1917 = vmatmul.mubr.f32.gmra.mrb[0].mxu0 %v1916
  %v1918 = vpop.f32.mrb[0].mxu0
  %v1919 = vadd.f32 %v1659, %v1918
  %v1920 = vpop.f32.mrb[0].mxu0
  %1921 = vmatprep.mubr.f32.mxu0 0.0
  %v1922 = vand.u32 %v1631, 4294901760
  %v1923 = vsub.f32 %v1631, %v1922
  %v1924 = vand.u32 %v1923, 4294901760
  %v1925 = vsub.f32 %v1923, %v1924
  %v1926 = vand.u32 %v1925, 4294901760
  %1927 = vmatmul.mubr.f32.gmra.mrb[0].mxu0 %v1926
  %v1928 = vpop.f32.mrb[0].mxu0
  %v1929 = vadd.f32 %v1659, %v1928
  %v1930 = vpop.f32.mrb[0].mxu0
  %1931 = vmatprep.mubr.f32.mxu0 0.0
  %v1932 = vand.u32 %v1632, 4294901760
  %v1933 = vsub.f32 %v1632, %v1932
  %v1934 = vand.u32 %v1933, 4294901760
  %v1935 = vsub.f32 %v1933, %v1934
  %v1936 = vand.u32 %v1935, 4294901760
  %1937 = vmatmul.mubr.f32.gmra.mrb[0].mxu0 %v1936
  %v1938 = vpop.f32.mrb[0].mxu0
  %v1939 = vadd.f32 %v1659, %v1938
  %v1940 = vpop.f32.mrb[0].mxu0
  %1941 = vmatprep.mubr.f32.mxu0 0.0
  %v1942 = vand.u32 %v1633, 4294901760
  %v1943 = vsub.f32 %v1633, %v1942
  %v1944 = vand.u32 %v1943, 4294901760
  %v1945 = vsub.f32 %v1943, %v1944
  %v1946 = vand.u32 %v1945, 4294901760
  %1947 = vmatmul.mubr.f32.gmra.mrb[0].mxu0 %v1946
  %v1948 = vpop.f32.mrb[0].mxu0
  %v1949 = vadd.f32 %v1659, %v1948
  %v1950 = vpop.f32.mrb[0].mxu0
  %1951 = vmatprep.mubr.f32.mxu0 0.0
  %v1952 = vand.u32 %v1634, 4294901760
  %v1953 = vsub.f32 %v1634, %v1952
  %v1954 = vand.u32 %v1953, 4294901760
  %v1955 = vsub.f32 %v1953, %v1954
  %v1956 = vand.u32 %v1955, 4294901760
  %1957 = vmatmul.mubr.f32.gmra.mrb[0].mxu0 %v1956
  %v1958 = vpop.f32.mrb[0].mxu0
  %v1959 = vadd.f32 %v1659, %v1958
  %v1960 = vpop.f32.mrb[0].mxu0
  %1961 = vmatprep.mubr.f32.mxu0 0.0
  %v1962 = vand.u32 %v1635, 4294901760
  %v1963 = vsub.f32 %v1635, %v1962
  %v1964 = vand.u32 %v1963, 4294901760
  %v1965 = vsub.f32 %v1963, %v1964
  %v1966 = vand.u32 %v1965, 4294901760
  %1967 = vmatmul.mubr.f32.gmra.mrb[0].mxu0 %v1966
  %v1968 = vpop.f32.mrb[0].mxu0
  %v1969 = vadd.f32 %v1659, %v1968
  %v1970 = vpop.f32.mrb[0].mxu0
  %1971 = vmatprep.mubr.f32.mxu0 0.0
  %v1972 = vand.u32 %v1636, 4294901760
  %v1973 = vsub.f32 %v1636, %v1972
  %v1974 = vand.u32 %v1973, 4294901760
  %v1975 = vsub.f32 %v1973, %v1974
  %v1976 = vand.u32 %v1975, 4294901760
  %1977 = vmatmul.mubr.f32.gmra.mrb[0].mxu0 %v1976
  %v1978 = vpop.f32.mrb[0].mxu0
  %v1979 = vadd.f32 %v1659, %v1978
  %v1980 = vpop.f32.mrb[0].mxu0
  %1981 = vmatprep.mubr.f32.mxu0 0.0
  %v1982 = vand.u32 %v1637, 4294901760
  %v1983 = vsub.f32 %v1637, %v1982
  %v1984 = vand.u32 %v1983, 4294901760
  %v1985 = vsub.f32 %v1983, %v1984
  %v1986 = vand.u32 %v1985, 4294901760
  %1987 = vmatmul.mubr.f32.gmra.mrb[0].mxu0 %v1986
  %v1988 = vpop.f32.mrb[0].mxu0
  %v1989 = vadd.f32 %v1659, %v1988
  %v1990 = vpop.f32.mrb[0].mxu0
  %1991 = vdwg.mxu0
  %1992 = vmatprep.subr.mxu0 0.0
  %v1993 = vand.u32 %v1638, 4294901760
  %v1994 = vsub.f32 %v1638, %v1993
  %v1995 = vand.u32 %v1994, 4294901760
  %v1996 = vsub.f32 %v1994, %v1995
  %v1997 = vand.u32 %v1996, 4294901760
  %1998 = vmatpush1.msra.mxu0 %v1997
  %1999 = vmatprep.subr.mxu0 0.0
  %v2000 = vand.u32 %v1639, 4294901760
  %v2001 = vsub.f32 %v1639, %v2000
  %v2002 = vand.u32 %v2001, 4294901760
  %v2003 = vsub.f32 %v2001, %v2002
  %v2004 = vand.u32 %v2003, 4294901760
  %2005 = vmatpush1.msra.mxu0 %v2004
  %2006 = vmatprep.subr.mxu0 0.0
  %v2007 = vand.u32 %v1640, 4294901760
  %v2008 = vsub.f32 %v1640, %v2007
  %v2009 = vand.u32 %v2008, 4294901760
  %v2010 = vsub.f32 %v2008, %v2009
  %v2011 = vand.u32 %v2010, 4294901760
  %2012 = vmatpush1.msra.mxu0 %v2011
  %2013 = vmatprep.subr.mxu0 0.0
  %v2014 = vand.u32 %v1641, 4294901760
  %v2015 = vsub.f32 %v1641, %v2014
  %v2016 = vand.u32 %v2015, 4294901760
  %v2017 = vsub.f32 %v2015, %v2016
  %v2018 = vand.u32 %v2017, 4294901760
  %2019 = vmatpush1.msra.mxu0 %v2018
  %2020 = vmatprep.subr.mxu0 0.0
  %v2021 = vand.u32 %v1642, 4294901760
  %v2022 = vsub.f32 %v1642, %v2021
  %v2023 = vand.u32 %v2022, 4294901760
  %v2024 = vsub.f32 %v2022, %v2023
  %v2025 = vand.u32 %v2024, 4294901760
  %2026 = vmatpush1.msra.mxu0 %v2025
  %2027 = vmatprep.subr.mxu0 0.0
  %v2028 = vand.u32 %v1643, 4294901760
  %v2029 = vsub.f32 %v1643, %v2028
  %v2030 = vand.u32 %v2029, 4294901760
  %v2031 = vsub.f32 %v2029, %v2030
  %v2032 = vand.u32 %v2031, 4294901760
  %2033 = vmatpush1.msra.mxu0 %v2032
  %2034 = vmatprep.subr.mxu0 0.0
  %v2035 = vand.u32 %v1644, 4294901760
  %v2036 = vsub.f32 %v1644, %v2035
  %v2037 = vand.u32 %v2036, 4294901760
  %v2038 = vsub.f32 %v2036, %v2037
  %v2039 = vand.u32 %v2038, 4294901760
  %2040 = vmatpush1.msra.mxu0 %v2039
  %2041 = vmatprep.subr.mxu0 0.0
  %v2042 = vand.u32 %v1645, 4294901760
  %v2043 = vsub.f32 %v1645, %v2042
  %v2044 = vand.u32 %v2043, 4294901760
  %v2045 = vsub.f32 %v2043, %v2044
  %v2046 = vand.u32 %v2045, 4294901760
  %2047 = vmatpush1.msra.mxu0 %v2046
  %2048 = vmatprep.subr.mxu0 0.0
  %v2049 = vand.u32 %v1646, 4294901760
  %v2050 = vsub.f32 %v1646, %v2049
  %v2051 = vand.u32 %v2050, 4294901760
  %v2052 = vsub.f32 %v2050, %v2051
  %v2053 = vand.u32 %v2052, 4294901760
  %2054 = vmatpush1.msra.mxu0 %v2053
  %2055 = vmatprep.subr.mxu0 0.0
  %v2056 = vand.u32 %v1647, 4294901760
  %v2057 = vsub.f32 %v1647, %v2056
  %v2058 = vand.u32 %v2057, 4294901760
  %v2059 = vsub.f32 %v2057, %v2058
  %v2060 = vand.u32 %v2059, 4294901760
  %2061 = vmatpush1.msra.mxu0 %v2060
  %2062 = vmatprep.subr.mxu0 0.0
  %v2063 = vand.u32 %v1648, 4294901760
  %v2064 = vsub.f32 %v1648, %v2063
  %v2065 = vand.u32 %v2064, 4294901760
  %v2066 = vsub.f32 %v2064, %v2065
  %v2067 = vand.u32 %v2066, 4294901760
  %2068 = vmatpush1.msra.mxu0 %v2067
  %2069 = vmatprep.subr.mxu0 0.0
  %v2070 = vand.u32 %v1649, 4294901760
  %v2071 = vsub.f32 %v1649, %v2070
  %v2072 = vand.u32 %v2071, 4294901760
  %v2073 = vsub.f32 %v2071, %v2072
  %v2074 = vand.u32 %v2073, 4294901760
  %2075 = vmatpush1.msra.mxu0 %v2074
  %2076 = vmatprep.subr.mxu0 0.0
  %v2077 = vand.u32 %v1650, 4294901760
  %v2078 = vsub.f32 %v1650, %v2077
  %v2079 = vand.u32 %v2078, 4294901760
  %v2080 = vsub.f32 %v2078, %v2079
  %v2081 = vand.u32 %v2080, 4294901760
  %2082 = vmatpush1.msra.mxu0 %v2081
  %2083 = vmatprep.subr.mxu0 0.0
  %v2084 = vand.u32 %v1651, 4294901760
  %v2085 = vsub.f32 %v1651, %v2084
  %v2086 = vand.u32 %v2085, 4294901760
  %v2087 = vsub.f32 %v2085, %v2086
  %v2088 = vand.u32 %v2087, 4294901760
  %2089 = vmatpush1.msra.mxu0 %v2088
  %2090 = vmatprep.subr.mxu0 0.0
  %v2091 = vand.u32 %v1652, 4294901760
  %v2092 = vsub.f32 %v1652, %v2091
  %v2093 = vand.u32 %v2092, 4294901760
  %v2094 = vsub.f32 %v2092, %v2093
  %v2095 = vand.u32 %v2094, 4294901760
  %2096 = vmatpush1.msra.mxu0 %v2095
  %2097 = vmatprep.subr.mxu0 0.0
  %v2098 = vand.u32 %v1653, 4294901760
  %v2099 = vsub.f32 %v1653, %v2098
  %v2100 = vand.u32 %v2099, 4294901760
  %v2101 = vsub.f32 %v2099, %v2100
  %v2102 = vand.u32 %v2101, 4294901760
  %2103 = vmatpush1.msra.mxu0 %v2102
  %2104 = vmatprep.subr.mxu0 0.0
  %2105 = vmatpush1.msra.mxu0 0.0
  %2106 = vmatprep.subr.mxu0 0.0
  %2107 = vmatpush1.msra.mxu0 0.0
  %2108 = vmatprep.subr.mxu0 0.0
  %2109 = vmatpush1.msra.mxu0 0.0
  %2110 = vmatprep.subr.mxu0 0.0
  %2111 = vmatpush1.msra.mxu0 0.0
  %2112 = vmatprep.subr.mxu0 0.0
  %2113 = vmatpush1.msra.mxu0 0.0
  %2114 = vmatprep.subr.mxu0 0.0
  %2115 = vmatpush1.msra.mxu0 0.0
  %2116 = vmatprep.subr.mxu0 0.0
  %2117 = vmatpush1.msra.mxu0 0.0
  %2118 = vmatprep.subr.mxu0 0.0
  %2119 = vmatpush1.msra.mxu0 0.0
  %2120 = vmatprep.subr.mxu0 0.0
  %2121 = vmatpush1.msra.mxu0 0.0
  %2122 = vmatprep.subr.mxu0 0.0
  %2123 = vmatpush1.msra.mxu0 0.0
  %2124 = vmatprep.subr.mxu0 0.0
  %2125 = vmatpush1.msra.mxu0 0.0
  %2126 = vmatprep.subr.mxu0 0.0
  %2127 = vmatpush1.msra.mxu0 0.0
  %2128 = vmatprep.subr.mxu0 0.0
  %2129 = vmatpush1.msra.mxu0 0.0
  %2130 = vmatprep.subr.mxu0 0.0
  %2131 = vmatpush1.msra.mxu0 0.0
  %2132 = vmatprep.subr.mxu0 0.0
  %2133 = vmatpush1.msra.mxu0 0.0
  %2134 = vmatprep.subr.mxu0 0.0
  %2135 = vmatpush1.msra.mxu0 0.0
  %2136 = vmatprep.mubr.f32.mxu0 0.0
  %v2137 = vand.u32 %v1613, 4294901760
  %2138 = vmatmul.mubr.f32.gmra.mrb[0].mxu0 %v2137
  %v2139 = vpop.f32.mrb[0].mxu0
  %v2140 = vadd.f32 %v1749, %v2139
  %v2141 = vpop.f32.mrb[0].mxu0
  %2142 = vmatprep.mubr.f32.mxu0 0.0
  %v2143 = vand.u32 %v1614, 4294901760
  %2144 = vmatmul.mubr.f32.gmra.mrb[0].mxu0 %v2143
  %v2145 = vpop.f32.mrb[0].mxu0
  %v2146 = vadd.f32 %v1759, %v2145
  %v2147 = vpop.f32.mrb[0].mxu0
  %2148 = vmatprep.mubr.f32.mxu0 0.0
  %v2149 = vand.u32 %v1615, 4294901760
  %2150 = vmatmul.mubr.f32.gmra.mrb[0].mxu0 %v2149
  %v2151 = vpop.f32.mrb[0].mxu0
  %v2152 = vadd.f32 %v1769, %v2151
  %v2153 = vpop.f32.mrb[0].mxu0
  %2154 = vmatprep.mubr.f32.mxu0 0.0
  %v2155 = vand.u32 %v1616, 4294901760
  %2156 = vmatmul.mubr.f32.gmra.mrb[0].mxu0 %v2155
  %v2157 = vpop.f32.mrb[0].mxu0
  %v2158 = vadd.f32 %v1779, %v2157
  %v2159 = vpop.f32.mrb[0].mxu0
  %2160 = vmatprep.mubr.f32.mxu0 0.0
  %v2161 = vand.u32 %v1617, 4294901760
  %2162 = vmatmul.mubr.f32.gmra.mrb[0].mxu0 %v2161
  %v2163 = vpop.f32.mrb[0].mxu0
  %v2164 = vadd.f32 %v1789, %v2163
  %v2165 = vpop.f32.mrb[0].mxu0
  %2166 = vmatprep.mubr.f32.mxu0 0.0
  %v2167 = vand.u32 %v1618, 4294901760
  %2168 = vmatmul.mubr.f32.gmra.mrb[0].mxu0 %v2167
  %v2169 = vpop.f32.mrb[0].mxu0
  %v2170 = vadd.f32 %v1799, %v2169
  %v2171 = vpop.f32.mrb[0].mxu0
  %2172 = vmatprep.mubr.f32.mxu0 0.0
  %v2173 = vand.u32 %v1619, 4294901760
  %2174 = vmatmul.mubr.f32.gmra.mrb[0].mxu0 %v2173
  %v2175 = vpop.f32.mrb[0].mxu0
  %v2176 = vadd.f32 %v1809, %v2175
  %v2177 = vpop.f32.mrb[0].mxu0
  %2178 = vmatprep.mubr.f32.mxu0 0.0
  %v2179 = vand.u32 %v1620, 4294901760
  %2180 = vmatmul.mubr.f32.gmra.mrb[0].mxu0 %v2179
  %v2181 = vpop.f32.mrb[0].mxu0
  %v2182 = vadd.f32 %v1819, %v2181
  %v2183 = vpop.f32.mrb[0].mxu0
  %2184 = vmatprep.mubr.f32.mxu0 0.0
  %v2185 = vand.u32 %v1621, 4294901760
  %2186 = vmatmul.mubr.f32.gmra.mrb[0].mxu0 %v2185
  %v2187 = vpop.f32.mrb[0].mxu0
  %v2188 = vadd.f32 %v1829, %v2187
  %v2189 = vpop.f32.mrb[0].mxu0
  %2190 = vmatprep.mubr.f32.mxu0 0.0
  %v2191 = vand.u32 %v1622, 4294901760
  %2192 = vmatmul.mubr.f32.gmra.mrb[0].mxu0 %v2191
  %v2193 = vpop.f32.mrb[0].mxu0
  %v2194 = vadd.f32 %v1839, %v2193
  %v2195 = vpop.f32.mrb[0].mxu0
  %2196 = vmatprep.mubr.f32.mxu0 0.0
  %v2197 = vand.u32 %v1623, 4294901760
  %2198 = vmatmul.mubr.f32.gmra.mrb[0].mxu0 %v2197
  %v2199 = vpop.f32.mrb[0].mxu0
  %v2200 = vadd.f32 %v1849, %v2199
  %v2201 = vpop.f32.mrb[0].mxu0
  %2202 = vmatprep.mubr.f32.mxu0 0.0
  %v2203 = vand.u32 %v1624, 4294901760
  %2204 = vmatmul.mubr.f32.gmra.mrb[0].mxu0 %v2203
  %v2205 = vpop.f32.mrb[0].mxu0
  %v2206 = vadd.f32 %v1859, %v2205
  %v2207 = vpop.f32.mrb[0].mxu0
  %2208 = vmatprep.mubr.f32.mxu0 0.0
  %v2209 = vand.u32 %v1625, 4294901760
  %2210 = vmatmul.mubr.f32.gmra.mrb[0].mxu0 %v2209
  %v2211 = vpop.f32.mrb[0].mxu0
  %v2212 = vadd.f32 %v1869, %v2211
  %v2213 = vpop.f32.mrb[0].mxu0
  %2214 = vmatprep.mubr.f32.mxu0 0.0
  %v2215 = vand.u32 %v1626, 4294901760
  %2216 = vmatmul.mubr.f32.gmra.mrb[0].mxu0 %v2215
  %v2217 = vpop.f32.mrb[0].mxu0
  %v2218 = vadd.f32 %v1879, %v2217
  %v2219 = vpop.f32.mrb[0].mxu0
  %2220 = vmatprep.mubr.f32.mxu0 0.0
  %v2221 = vand.u32 %v1627, 4294901760
  %2222 = vmatmul.mubr.f32.gmra.mrb[0].mxu0 %v2221
  %v2223 = vpop.f32.mrb[0].mxu0
  %v2224 = vadd.f32 %v1889, %v2223
  %v2225 = vpop.f32.mrb[0].mxu0
  %2226 = vmatprep.mubr.f32.mxu0 0.0
  %v2227 = vand.u32 %v1628, 4294901760
  %2228 = vmatmul.mubr.f32.gmra.mrb[0].mxu0 %v2227
  %v2229 = vpop.f32.mrb[0].mxu0
  %v2230 = vadd.f32 %v1899, %v2229
  %v2231 = vpop.f32.mrb[0].mxu0
  %2232 = vmatprep.mubr.f32.mxu0 0.0
  %v2233 = vand.u32 %v1629, 4294901760
  %2234 = vmatmul.mubr.f32.gmra.mrb[0].mxu0 %v2233
  %v2235 = vpop.f32.mrb[0].mxu0
  %v2236 = vadd.f32 %v1909, %v2235
  %v2237 = vpop.f32.mrb[0].mxu0
  %2238 = vmatprep.mubr.f32.mxu0 0.0
  %v2239 = vand.u32 %v1630, 4294901760
  %2240 = vmatmul.mubr.f32.gmra.mrb[0].mxu0 %v2239
  %v2241 = vpop.f32.mrb[0].mxu0
  %v2242 = vadd.f32 %v1919, %v2241
  %v2243 = vpop.f32.mrb[0].mxu0
  %2244 = vmatprep.mubr.f32.mxu0 0.0
  %v2245 = vand.u32 %v1631, 4294901760
  %2246 = vmatmul.mubr.f32.gmra.mrb[0].mxu0 %v2245
  %v2247 = vpop.f32.mrb[0].mxu0
  %v2248 = vadd.f32 %v1929, %v2247
  %v2249 = vpop.f32.mrb[0].mxu0
  %2250 = vmatprep.mubr.f32.mxu0 0.0
  %v2251 = vand.u32 %v1632, 4294901760
  %2252 = vmatmul.mubr.f32.gmra.mrb[0].mxu0 %v2251
  %v2253 = vpop.f32.mrb[0].mxu0
  %v2254 = vadd.f32 %v1939, %v2253
  %v2255 = vpop.f32.mrb[0].mxu0
  %2256 = vmatprep.mubr.f32.mxu0 0.0
  %v2257 = vand.u32 %v1633, 4294901760
  %2258 = vmatmul.mubr.f32.gmra.mrb[0].mxu0 %v2257
  %v2259 = vpop.f32.mrb[0].mxu0
  %v2260 = vadd.f32 %v1949, %v2259
  %v2261 = vpop.f32.mrb[0].mxu0
  %2262 = vmatprep.mubr.f32.mxu0 0.0
  %v2263 = vand.u32 %v1634, 4294901760
  %2264 = vmatmul.mubr.f32.gmra.mrb[0].mxu0 %v2263
  %v2265 = vpop.f32.mrb[0].mxu0
  %v2266 = vadd.f32 %v1959, %v2265
  %v2267 = vpop.f32.mrb[0].mxu0
  %2268 = vmatprep.mubr.f32.mxu0 0.0
  %v2269 = vand.u32 %v1635, 4294901760
  %2270 = vmatmul.mubr.f32.gmra.mrb[0].mxu0 %v2269
  %v2271 = vpop.f32.mrb[0].mxu0
  %v2272 = vadd.f32 %v1969, %v2271
  %v2273 = vpop.f32.mrb[0].mxu0
  %2274 = vmatprep.mubr.f32.mxu0 0.0
  %v2275 = vand.u32 %v1636, 4294901760
  %2276 = vmatmul.mubr.f32.gmra.mrb[0].mxu0 %v2275
  %v2277 = vpop.f32.mrb[0].mxu0
  %v2278 = vadd.f32 %v1979, %v2277
  %v2279 = vpop.f32.mrb[0].mxu0
  %2280 = vmatprep.mubr.f32.mxu0 0.0
  %v2281 = vand.u32 %v1637, 4294901760
  %2282 = vmatmul.mubr.f32.gmra.mrb[0].mxu0 %v2281
  %v2283 = vpop.f32.mrb[0].mxu0
  %v2284 = vadd.f32 %v1989, %v2283
  %v2285 = vpop.f32.mrb[0].mxu0
  %2286 = vdwg.mxu0
  %2287 = vmatprep.subr.mxu0 0.0
  %v2288 = vand.u32 %v1638, 4294901760
  %v2289 = vsub.f32 %v1638, %v2288
  %2290 = vmatpush1.msra.mxu0 %v2289
  %2291 = vmatprep.subr.mxu0 0.0
  %v2292 = vand.u32 %v1639, 4294901760
  %v2293 = vsub.f32 %v1639, %v2292
  %2294 = vmatpush1.msra.mxu0 %v2293
  %2295 = vmatprep.subr.mxu0 0.0
  %v2296 = vand.u32 %v1640, 4294901760
  %v2297 = vsub.f32 %v1640, %v2296
  %2298 = vmatpush1.msra.mxu0 %v2297
  %2299 = vmatprep.subr.mxu0 0.0
  %v2300 = vand.u32 %v1641, 4294901760
  %v2301 = vsub.f32 %v1641, %v2300
  %2302 = vmatpush1.msra.mxu0 %v2301
  %2303 = vmatprep.subr.mxu0 0.0
  %v2304 = vand.u32 %v1642, 4294901760
  %v2305 = vsub.f32 %v1642, %v2304
  %2306 = vmatpush1.msra.mxu0 %v2305
  %2307 = vmatprep.subr.mxu0 0.0
  %v2308 = vand.u32 %v1643, 4294901760
  %v2309 = vsub.f32 %v1643, %v2308
  %2310 = vmatpush1.msra.mxu0 %v2309
  %2311 = vmatprep.subr.mxu0 0.0
  %v2312 = vand.u32 %v1644, 4294901760
  %v2313 = vsub.f32 %v1644, %v2312
  %2314 = vmatpush1.msra.mxu0 %v2313
  %2315 = vmatprep.subr.mxu0 0.0
  %v2316 = vand.u32 %v1645, 4294901760
  %v2317 = vsub.f32 %v1645, %v2316
  %2318 = vmatpush1.msra.mxu0 %v2317
  %2319 = vmatprep.subr.mxu0 0.0
  %v2320 = vand.u32 %v1646, 4294901760
  %v2321 = vsub.f32 %v1646, %v2320
  %2322 = vmatpush1.msra.mxu0 %v2321
  %2323 = vmatprep.subr.mxu0 0.0
  %v2324 = vand.u32 %v1647, 4294901760
  %v2325 = vsub.f32 %v1647, %v2324
  %2326 = vmatpush1.msra.mxu0 %v2325
  %2327 = vmatprep.subr.mxu0 0.0
  %v2328 = vand.u32 %v1648, 4294901760
  %v2329 = vsub.f32 %v1648, %v2328
  %2330 = vmatpush1.msra.mxu0 %v2329
  %2331 = vmatprep.subr.mxu0 0.0
  %v2332 = vand.u32 %v1649, 4294901760
  %v2333 = vsub.f32 %v1649, %v2332
  %2334 = vmatpush1.msra.mxu0 %v2333
  %2335 = vmatprep.subr.mxu0 0.0
  %v2336 = vand.u32 %v1650, 4294901760
  %v2337 = vsub.f32 %v1650, %v2336
  %2338 = vmatpush1.msra.mxu0 %v2337
  %2339 = vmatprep.subr.mxu0 0.0
  %v2340 = vand.u32 %v1651, 4294901760
  %v2341 = vsub.f32 %v1651, %v2340
  %2342 = vmatpush1.msra.mxu0 %v2341
  %2343 = vmatprep.subr.mxu0 0.0
  %v2344 = vand.u32 %v1652, 4294901760
  %v2345 = vsub.f32 %v1652, %v2344
  %2346 = vmatpush1.msra.mxu0 %v2345
  %2347 = vmatprep.subr.mxu0 0.0
  %v2348 = vand.u32 %v1653, 4294901760
  %v2349 = vsub.f32 %v1653, %v2348
  %2350 = vmatpush1.msra.mxu0 %v2349
  %2351 = vmatprep.subr.mxu0 0.0
  %2352 = vmatpush1.msra.mxu0 0.0
  %2353 = vmatprep.subr.mxu0 0.0
  %2354 = vmatpush1.msra.mxu0 0.0
  %2355 = vmatprep.subr.mxu0 0.0
  %2356 = vmatpush1.msra.mxu0 0.0
  %2357 = vmatprep.subr.mxu0 0.0
  %2358 = vmatpush1.msra.mxu0 0.0
  %2359 = vmatprep.subr.mxu0 0.0
  %2360 = vmatpush1.msra.mxu0 0.0
  %2361 = vmatprep.subr.mxu0 0.0
  %2362 = vmatpush1.msra.mxu0 0.0
  %2363 = vmatprep.subr.mxu0 0.0
  %2364 = vmatpush1.msra.mxu0 0.0
  %2365 = vmatprep.subr.mxu0 0.0
  %2366 = vmatpush1.msra.mxu0 0.0
  %2367 = vmatprep.subr.mxu0 0.0
  %2368 = vmatpush1.msra.mxu0 0.0
  %2369 = vmatprep.subr.mxu0 0.0
  %2370 = vmatpush1.msra.mxu0 0.0
  %2371 = vmatprep.subr.mxu0 0.0
  %2372 = vmatpush1.msra.mxu0 0.0
  %2373 = vmatprep.subr.mxu0 0.0
  %2374 = vmatpush1.msra.mxu0 0.0
  %2375 = vmatprep.subr.mxu0 0.0
  %2376 = vmatpush1.msra.mxu0 0.0
  %2377 = vmatprep.subr.mxu0 0.0
  %2378 = vmatpush1.msra.mxu0 0.0
  %2379 = vmatprep.subr.mxu0 0.0
  %2380 = vmatpush1.msra.mxu0 0.0
  %2381 = vmatprep.subr.mxu0 0.0
  %2382 = vmatpush1.msra.mxu0 0.0
  %2383 = vmatprep.mubr.f32.mxu0 0.0
  %v2384 = vand.u32 %v1613, 4294901760
  %v2385 = vsub.f32 %v1613, %v2384
  %2386 = vmatmul.mubr.f32.gmra.mrb[0].mxu0 %v2385
  %v2387 = vpop.f32.mrb[0].mxu0
  %v2388 = vadd.f32 %v2140, %v2387
  %v2389 = vpop.f32.mrb[0].mxu0
  %2390 = vmatprep.mubr.f32.mxu0 0.0
  %v2391 = vand.u32 %v1614, 4294901760
  %v2392 = vsub.f32 %v1614, %v2391
  %2393 = vmatmul.mubr.f32.gmra.mrb[0].mxu0 %v2392
  %v2394 = vpop.f32.mrb[0].mxu0
  %v2395 = vadd.f32 %v2146, %v2394
  %v2396 = vpop.f32.mrb[0].mxu0
  %2397 = vmatprep.mubr.f32.mxu0 0.0
  %v2398 = vand.u32 %v1615, 4294901760
  %v2399 = vsub.f32 %v1615, %v2398
  %2400 = vmatmul.mubr.f32.gmra.mrb[0].mxu0 %v2399
  %v2401 = vpop.f32.mrb[0].mxu0
  %v2402 = vadd.f32 %v2152, %v2401
  %v2403 = vpop.f32.mrb[0].mxu0
  %2404 = vmatprep.mubr.f32.mxu0 0.0
  %v2405 = vand.u32 %v1616, 4294901760
  %v2406 = vsub.f32 %v1616, %v2405
  %2407 = vmatmul.mubr.f32.gmra.mrb[0].mxu0 %v2406
  %v2408 = vpop.f32.mrb[0].mxu0
  %v2409 = vadd.f32 %v2158, %v2408
  %v2410 = vpop.f32.mrb[0].mxu0
  %2411 = vmatprep.mubr.f32.mxu0 0.0
  %v2412 = vand.u32 %v1617, 4294901760
  %v2413 = vsub.f32 %v1617, %v2412
  %2414 = vmatmul.mubr.f32.gmra.mrb[0].mxu0 %v2413
  %v2415 = vpop.f32.mrb[0].mxu0
  %v2416 = vadd.f32 %v2164, %v2415
  %v2417 = vpop.f32.mrb[0].mxu0
  %2418 = vmatprep.mubr.f32.mxu0 0.0
  %v2419 = vand.u32 %v1618, 4294901760
  %v2420 = vsub.f32 %v1618, %v2419
  %2421 = vmatmul.mubr.f32.gmra.mrb[0].mxu0 %v2420
  %v2422 = vpop.f32.mrb[0].mxu0
  %v2423 = vadd.f32 %v2170, %v2422
  %v2424 = vpop.f32.mrb[0].mxu0
  %2425 = vmatprep.mubr.f32.mxu0 0.0
  %v2426 = vand.u32 %v1619, 4294901760
  %v2427 = vsub.f32 %v1619, %v2426
  %2428 = vmatmul.mubr.f32.gmra.mrb[0].mxu0 %v2427
  %v2429 = vpop.f32.mrb[0].mxu0
  %v2430 = vadd.f32 %v2176, %v2429
  %v2431 = vpop.f32.mrb[0].mxu0
  %2432 = vmatprep.mubr.f32.mxu0 0.0
  %v2433 = vand.u32 %v1620, 4294901760
  %v2434 = vsub.f32 %v1620, %v2433
  %2435 = vmatmul.mubr.f32.gmra.mrb[0].mxu0 %v2434
  %v2436 = vpop.f32.mrb[0].mxu0
  %v2437 = vadd.f32 %v2182, %v2436
  %v2438 = vpop.f32.mrb[0].mxu0
  %2439 = vmatprep.mubr.f32.mxu0 0.0
  %v2440 = vand.u32 %v1621, 4294901760
  %v2441 = vsub.f32 %v1621, %v2440
  %2442 = vmatmul.mubr.f32.gmra.mrb[0].mxu0 %v2441
  %v2443 = vpop.f32.mrb[0].mxu0
  %v2444 = vadd.f32 %v2188, %v2443
  %v2445 = vpop.f32.mrb[0].mxu0
  %2446 = vmatprep.mubr.f32.mxu0 0.0
  %v2447 = vand.u32 %v1622, 4294901760
  %v2448 = vsub.f32 %v1622, %v2447
  %2449 = vmatmul.mubr.f32.gmra.mrb[0].mxu0 %v2448
  %v2450 = vpop.f32.mrb[0].mxu0
  %v2451 = vadd.f32 %v2194, %v2450
  %v2452 = vpop.f32.mrb[0].mxu0
  %2453 = vmatprep.mubr.f32.mxu0 0.0
  %v2454 = vand.u32 %v1623, 4294901760
  %v2455 = vsub.f32 %v1623, %v2454
  %2456 = vmatmul.mubr.f32.gmra.mrb[0].mxu0 %v2455
  %v2457 = vpop.f32.mrb[0].mxu0
  %v2458 = vadd.f32 %v2200, %v2457
  %v2459 = vpop.f32.mrb[0].mxu0
  %2460 = vmatprep.mubr.f32.mxu0 0.0
  %v2461 = vand.u32 %v1624, 4294901760
  %v2462 = vsub.f32 %v1624, %v2461
  %2463 = vmatmul.mubr.f32.gmra.mrb[0].mxu0 %v2462
  %v2464 = vpop.f32.mrb[0].mxu0
  %v2465 = vadd.f32 %v2206, %v2464
  %v2466 = vpop.f32.mrb[0].mxu0
  %2467 = vmatprep.mubr.f32.mxu0 0.0
  %v2468 = vand.u32 %v1625, 4294901760
  %v2469 = vsub.f32 %v1625, %v2468
  %2470 = vmatmul.mubr.f32.gmra.mrb[0].mxu0 %v2469
  %v2471 = vpop.f32.mrb[0].mxu0
  %v2472 = vadd.f32 %v2212, %v2471
  %v2473 = vpop.f32.mrb[0].mxu0
  %2474 = vmatprep.mubr.f32.mxu0 0.0
  %v2475 = vand.u32 %v1626, 4294901760
  %v2476 = vsub.f32 %v1626, %v2475
  %2477 = vmatmul.mubr.f32.gmra.mrb[0].mxu0 %v2476
  %v2478 = vpop.f32.mrb[0].mxu0
  %v2479 = vadd.f32 %v2218, %v2478
  %v2480 = vpop.f32.mrb[0].mxu0
  %2481 = vmatprep.mubr.f32.mxu0 0.0
  %v2482 = vand.u32 %v1627, 4294901760
  %v2483 = vsub.f32 %v1627, %v2482
  %2484 = vmatmul.mubr.f32.gmra.mrb[0].mxu0 %v2483
  %v2485 = vpop.f32.mrb[0].mxu0
  %v2486 = vadd.f32 %v2224, %v2485
  %v2487 = vpop.f32.mrb[0].mxu0
  %2488 = vmatprep.mubr.f32.mxu0 0.0
  %v2489 = vand.u32 %v1628, 4294901760
  %v2490 = vsub.f32 %v1628, %v2489
  %2491 = vmatmul.mubr.f32.gmra.mrb[0].mxu0 %v2490
  %v2492 = vpop.f32.mrb[0].mxu0
  %v2493 = vadd.f32 %v2230, %v2492
  %v2494 = vpop.f32.mrb[0].mxu0
  %2495 = vmatprep.mubr.f32.mxu0 0.0
  %v2496 = vand.u32 %v1629, 4294901760
  %v2497 = vsub.f32 %v1629, %v2496
  %2498 = vmatmul.mubr.f32.gmra.mrb[0].mxu0 %v2497
  %v2499 = vpop.f32.mrb[0].mxu0
  %v2500 = vadd.f32 %v2236, %v2499
  %v2501 = vpop.f32.mrb[0].mxu0
  %2502 = vmatprep.mubr.f32.mxu0 0.0
  %v2503 = vand.u32 %v1630, 4294901760
  %v2504 = vsub.f32 %v1630, %v2503
  %2505 = vmatmul.mubr.f32.gmra.mrb[0].mxu0 %v2504
  %v2506 = vpop.f32.mrb[0].mxu0
  %v2507 = vadd.f32 %v2242, %v2506
  %v2508 = vpop.f32.mrb[0].mxu0
  %2509 = vmatprep.mubr.f32.mxu0 0.0
  %v2510 = vand.u32 %v1631, 4294901760
  %v2511 = vsub.f32 %v1631, %v2510
  %2512 = vmatmul.mubr.f32.gmra.mrb[0].mxu0 %v2511
  %v2513 = vpop.f32.mrb[0].mxu0
  %v2514 = vadd.f32 %v2248, %v2513
  %v2515 = vpop.f32.mrb[0].mxu0
  %2516 = vmatprep.mubr.f32.mxu0 0.0
  %v2517 = vand.u32 %v1632, 4294901760
  %v2518 = vsub.f32 %v1632, %v2517
  %2519 = vmatmul.mubr.f32.gmra.mrb[0].mxu0 %v2518
  %v2520 = vpop.f32.mrb[0].mxu0
  %v2521 = vadd.f32 %v2254, %v2520
  %v2522 = vpop.f32.mrb[0].mxu0
  %2523 = vmatprep.mubr.f32.mxu0 0.0
  %v2524 = vand.u32 %v1633, 4294901760
  %v2525 = vsub.f32 %v1633, %v2524
  %2526 = vmatmul.mubr.f32.gmra.mrb[0].mxu0 %v2525
  %v2527 = vpop.f32.mrb[0].mxu0
  %v2528 = vadd.f32 %v2260, %v2527
  %v2529 = vpop.f32.mrb[0].mxu0
  %2530 = vmatprep.mubr.f32.mxu0 0.0
  %v2531 = vand.u32 %v1634, 4294901760
  %v2532 = vsub.f32 %v1634, %v2531
  %2533 = vmatmul.mubr.f32.gmra.mrb[0].mxu0 %v2532
  %v2534 = vpop.f32.mrb[0].mxu0
  %v2535 = vadd.f32 %v2266, %v2534
  %v2536 = vpop.f32.mrb[0].mxu0
  %2537 = vmatprep.mubr.f32.mxu0 0.0
  %v2538 = vand.u32 %v1635, 4294901760
  %v2539 = vsub.f32 %v1635, %v2538
  %2540 = vmatmul.mubr.f32.gmra.mrb[0].mxu0 %v2539
  %v2541 = vpop.f32.mrb[0].mxu0
  %v2542 = vadd.f32 %v2272, %v2541
  %v2543 = vpop.f32.mrb[0].mxu0
  %2544 = vmatprep.mubr.f32.mxu0 0.0
  %v2545 = vand.u32 %v1636, 4294901760
  %v2546 = vsub.f32 %v1636, %v2545
  %2547 = vmatmul.mubr.f32.gmra.mrb[0].mxu0 %v2546
  %v2548 = vpop.f32.mrb[0].mxu0
  %v2549 = vadd.f32 %v2278, %v2548
  %v2550 = vpop.f32.mrb[0].mxu0
  %2551 = vmatprep.mubr.f32.mxu0 0.0
  %v2552 = vand.u32 %v1637, 4294901760
  %v2553 = vsub.f32 %v1637, %v2552
  %2554 = vmatmul.mubr.f32.gmra.mrb[0].mxu0 %v2553
  %v2555 = vpop.f32.mrb[0].mxu0
  %v2556 = vadd.f32 %v2284, %v2555
  %v2557 = vpop.f32.mrb[0].mxu0
  %2558 = vdwg.mxu0
  %2559 = vmatprep.subr.mxu0 0.0
  %v2560 = vand.u32 %v1638, 4294901760
  %2561 = vmatpush1.msra.mxu0 %v2560
  %2562 = vmatprep.subr.mxu0 0.0
  %v2563 = vand.u32 %v1639, 4294901760
  %2564 = vmatpush1.msra.mxu0 %v2563
  %2565 = vmatprep.subr.mxu0 0.0
  %v2566 = vand.u32 %v1640, 4294901760
  %2567 = vmatpush1.msra.mxu0 %v2566
  %2568 = vmatprep.subr.mxu0 0.0
  %v2569 = vand.u32 %v1641, 4294901760
  %2570 = vmatpush1.msra.mxu0 %v2569
  %2571 = vmatprep.subr.mxu0 0.0
  %v2572 = vand.u32 %v1642, 4294901760
  %2573 = vmatpush1.msra.mxu0 %v2572
  %2574 = vmatprep.subr.mxu0 0.0
  %v2575 = vand.u32 %v1643, 4294901760
  %2576 = vmatpush1.msra.mxu0 %v2575
  %2577 = vmatprep.subr.mxu0 0.0
  %v2578 = vand.u32 %v1644, 4294901760
  %2579 = vmatpush1.msra.mxu0 %v2578
  %2580 = vmatprep.subr.mxu0 0.0
  %v2581 = vand.u32 %v1645, 4294901760
  %2582 = vmatpush1.msra.mxu0 %v2581
  %2583 = vmatprep.subr.mxu0 0.0
  %v2584 = vand.u32 %v1646, 4294901760
  %2585 = vmatpush1.msra.mxu0 %v2584
  %2586 = vmatprep.subr.mxu0 0.0
  %v2587 = vand.u32 %v1647, 4294901760
  %2588 = vmatpush1.msra.mxu0 %v2587
  %2589 = vmatprep.subr.mxu0 0.0
  %v2590 = vand.u32 %v1648, 4294901760
  %2591 = vmatpush1.msra.mxu0 %v2590
  %2592 = vmatprep.subr.mxu0 0.0
  %v2593 = vand.u32 %v1649, 4294901760
  %2594 = vmatpush1.msra.mxu0 %v2593
  %2595 = vmatprep.subr.mxu0 0.0
  %v2596 = vand.u32 %v1650, 4294901760
  %2597 = vmatpush1.msra.mxu0 %v2596
  %2598 = vmatprep.subr.mxu0 0.0
  %v2599 = vand.u32 %v1651, 4294901760
  %2600 = vmatpush1.msra.mxu0 %v2599
  %2601 = vmatprep.subr.mxu0 0.0
  %v2602 = vand.u32 %v1652, 4294901760
  %2603 = vmatpush1.msra.mxu0 %v2602
  %2604 = vmatprep.subr.mxu0 0.0
  %v2605 = vand.u32 %v1653, 4294901760
  %2606 = vmatpush1.msra.mxu0 %v2605
  %2607 = vmatprep.subr.mxu0 0.0
  %2608 = vmatpush1.msra.mxu0 0.0
  %2609 = vmatprep.subr.mxu0 0.0
  %2610 = vmatpush1.msra.mxu0 0.0
  %2611 = vmatprep.subr.mxu0 0.0
  %2612 = vmatpush1.msra.mxu0 0.0
  %2613 = vmatprep.subr.mxu0 0.0
  %2614 = vmatpush1.msra.mxu0 0.0
  %2615 = vmatprep.subr.mxu0 0.0
  %2616 = vmatpush1.msra.mxu0 0.0
  %2617 = vmatprep.subr.mxu0 0.0
  %2618 = vmatpush1.msra.mxu0 0.0
  %2619 = vmatprep.subr.mxu0 0.0
  %2620 = vmatpush1.msra.mxu0 0.0
  %2621 = vmatprep.subr.mxu0 0.0
  %2622 = vmatpush1.msra.mxu0 0.0
  %2623 = vmatprep.subr.mxu0 0.0
  %2624 = vmatpush1.msra.mxu0 0.0
  %2625 = vmatprep.subr.mxu0 0.0
  %2626 = vmatpush1.msra.mxu0 0.0
  %2627 = vmatprep.subr.mxu0 0.0
  %2628 = vmatpush1.msra.mxu0 0.0
  %2629 = vmatprep.subr.mxu0 0.0
  %2630 = vmatpush1.msra.mxu0 0.0
  %2631 = vmatprep.subr.mxu0 0.0
  %2632 = vmatpush1.msra.mxu0 0.0
  %2633 = vmatprep.subr.mxu0 0.0
  %2634 = vmatpush1.msra.mxu0 0.0
  %2635 = vmatprep.subr.mxu0 0.0
  %2636 = vmatpush1.msra.mxu0 0.0
  %2637 = vmatprep.subr.mxu0 0.0
  %2638 = vmatpush1.msra.mxu0 0.0
  %2639 = vmatprep.mubr.f32.mxu0 0.0
  %v2640 = vand.u32 %v1613, 4294901760
  %v2641 = vsub.f32 %v1613, %v2640
  %v2642 = vand.u32 %v2641, 4294901760
  %2643 = vmatmul.mubr.f32.gmra.mrb[0].mxu0 %v2642
  %v2644 = vpop.f32.mrb[0].mxu0
  %v2645 = vadd.f32 %v2388, %v2644
  %v2646 = vpop.f32.mrb[0].mxu0
  %2647 = vmatprep.mubr.f32.mxu0 0.0
  %v2648 = vand.u32 %v1614, 4294901760
  %v2649 = vsub.f32 %v1614, %v2648
  %v2650 = vand.u32 %v2649, 4294901760
  %2651 = vmatmul.mubr.f32.gmra.mrb[0].mxu0 %v2650
  %v2652 = vpop.f32.mrb[0].mxu0
  %v2653 = vadd.f32 %v2395, %v2652
  %v2654 = vpop.f32.mrb[0].mxu0
  %2655 = vmatprep.mubr.f32.mxu0 0.0
  %v2656 = vand.u32 %v1615, 4294901760
  %v2657 = vsub.f32 %v1615, %v2656
  %v2658 = vand.u32 %v2657, 4294901760
  %2659 = vmatmul.mubr.f32.gmra.mrb[0].mxu0 %v2658
  %v2660 = vpop.f32.mrb[0].mxu0
  %v2661 = vadd.f32 %v2402, %v2660
  %v2662 = vpop.f32.mrb[0].mxu0
  %2663 = vmatprep.mubr.f32.mxu0 0.0
  %v2664 = vand.u32 %v1616, 4294901760
  %v2665 = vsub.f32 %v1616, %v2664
  %v2666 = vand.u32 %v2665, 4294901760
  %2667 = vmatmul.mubr.f32.gmra.mrb[0].mxu0 %v2666
  %v2668 = vpop.f32.mrb[0].mxu0
  %v2669 = vadd.f32 %v2409, %v2668
  %v2670 = vpop.f32.mrb[0].mxu0
  %2671 = vmatprep.mubr.f32.mxu0 0.0
  %v2672 = vand.u32 %v1617, 4294901760
  %v2673 = vsub.f32 %v1617, %v2672
  %v2674 = vand.u32 %v2673, 4294901760
  %2675 = vmatmul.mubr.f32.gmra.mrb[0].mxu0 %v2674
  %v2676 = vpop.f32.mrb[0].mxu0
  %v2677 = vadd.f32 %v2416, %v2676
  %v2678 = vpop.f32.mrb[0].mxu0
  %2679 = vmatprep.mubr.f32.mxu0 0.0
  %v2680 = vand.u32 %v1618, 4294901760
  %v2681 = vsub.f32 %v1618, %v2680
  %v2682 = vand.u32 %v2681, 4294901760
  %2683 = vmatmul.mubr.f32.gmra.mrb[0].mxu0 %v2682
  %v2684 = vpop.f32.mrb[0].mxu0
  %v2685 = vadd.f32 %v2423, %v2684
  %v2686 = vpop.f32.mrb[0].mxu0
  %2687 = vmatprep.mubr.f32.mxu0 0.0
  %v2688 = vand.u32 %v1619, 4294901760
  %v2689 = vsub.f32 %v1619, %v2688
  %v2690 = vand.u32 %v2689, 4294901760
  %2691 = vmatmul.mubr.f32.gmra.mrb[0].mxu0 %v2690
  %v2692 = vpop.f32.mrb[0].mxu0
  %v2693 = vadd.f32 %v2430, %v2692
  %v2694 = vpop.f32.mrb[0].mxu0
  %2695 = vmatprep.mubr.f32.mxu0 0.0
  %v2696 = vand.u32 %v1620, 4294901760
  %v2697 = vsub.f32 %v1620, %v2696
  %v2698 = vand.u32 %v2697, 4294901760
  %2699 = vmatmul.mubr.f32.gmra.mrb[0].mxu0 %v2698
  %v2700 = vpop.f32.mrb[0].mxu0
  %v2701 = vadd.f32 %v2437, %v2700
  %v2702 = vpop.f32.mrb[0].mxu0
  %2703 = vmatprep.mubr.f32.mxu0 0.0
  %v2704 = vand.u32 %v1621, 4294901760
  %v2705 = vsub.f32 %v1621, %v2704
  %v2706 = vand.u32 %v2705, 4294901760
  %2707 = vmatmul.mubr.f32.gmra.mrb[0].mxu0 %v2706
  %v2708 = vpop.f32.mrb[0].mxu0
  %v2709 = vadd.f32 %v2444, %v2708
  %v2710 = vpop.f32.mrb[0].mxu0
  %2711 = vmatprep.mubr.f32.mxu0 0.0
  %v2712 = vand.u32 %v1622, 4294901760
  %v2713 = vsub.f32 %v1622, %v2712
  %v2714 = vand.u32 %v2713, 4294901760
  %2715 = vmatmul.mubr.f32.gmra.mrb[0].mxu0 %v2714
  %v2716 = vpop.f32.mrb[0].mxu0
  %v2717 = vadd.f32 %v2451, %v2716
  %v2718 = vpop.f32.mrb[0].mxu0
  %2719 = vmatprep.mubr.f32.mxu0 0.0
  %v2720 = vand.u32 %v1623, 4294901760
  %v2721 = vsub.f32 %v1623, %v2720
  %v2722 = vand.u32 %v2721, 4294901760
  %2723 = vmatmul.mubr.f32.gmra.mrb[0].mxu0 %v2722
  %v2724 = vpop.f32.mrb[0].mxu0
  %v2725 = vadd.f32 %v2458, %v2724
  %v2726 = vpop.f32.mrb[0].mxu0
  %2727 = vmatprep.mubr.f32.mxu0 0.0
  %v2728 = vand.u32 %v1624, 4294901760
  %v2729 = vsub.f32 %v1624, %v2728
  %v2730 = vand.u32 %v2729, 4294901760
  %2731 = vmatmul.mubr.f32.gmra.mrb[0].mxu0 %v2730
  %v2732 = vpop.f32.mrb[0].mxu0
  %v2733 = vadd.f32 %v2465, %v2732
  %v2734 = vpop.f32.mrb[0].mxu0
  %2735 = vmatprep.mubr.f32.mxu0 0.0
  %v2736 = vand.u32 %v1625, 4294901760
  %v2737 = vsub.f32 %v1625, %v2736
  %v2738 = vand.u32 %v2737, 4294901760
  %2739 = vmatmul.mubr.f32.gmra.mrb[0].mxu0 %v2738
  %v2740 = vpop.f32.mrb[0].mxu0
  %v2741 = vadd.f32 %v2472, %v2740
  %v2742 = vpop.f32.mrb[0].mxu0
  %2743 = vmatprep.mubr.f32.mxu0 0.0
  %v2744 = vand.u32 %v1626, 4294901760
  %v2745 = vsub.f32 %v1626, %v2744
  %v2746 = vand.u32 %v2745, 4294901760
  %2747 = vmatmul.mubr.f32.gmra.mrb[0].mxu0 %v2746
  %v2748 = vpop.f32.mrb[0].mxu0
  %v2749 = vadd.f32 %v2479, %v2748
  %v2750 = vpop.f32.mrb[0].mxu0
  %2751 = vmatprep.mubr.f32.mxu0 0.0
  %v2752 = vand.u32 %v1627, 4294901760
  %v2753 = vsub.f32 %v1627, %v2752
  %v2754 = vand.u32 %v2753, 4294901760
  %2755 = vmatmul.mubr.f32.gmra.mrb[0].mxu0 %v2754
  %v2756 = vpop.f32.mrb[0].mxu0
  %v2757 = vadd.f32 %v2486, %v2756
  %v2758 = vpop.f32.mrb[0].mxu0
  %2759 = vmatprep.mubr.f32.mxu0 0.0
  %v2760 = vand.u32 %v1628, 4294901760
  %v2761 = vsub.f32 %v1628, %v2760
  %v2762 = vand.u32 %v2761, 4294901760
  %2763 = vmatmul.mubr.f32.gmra.mrb[0].mxu0 %v2762
  %v2764 = vpop.f32.mrb[0].mxu0
  %v2765 = vadd.f32 %v2493, %v2764
  %v2766 = vpop.f32.mrb[0].mxu0
  %2767 = vmatprep.mubr.f32.mxu0 0.0
  %v2768 = vand.u32 %v1629, 4294901760
  %v2769 = vsub.f32 %v1629, %v2768
  %v2770 = vand.u32 %v2769, 4294901760
  %2771 = vmatmul.mubr.f32.gmra.mrb[0].mxu0 %v2770
  %v2772 = vpop.f32.mrb[0].mxu0
  %v2773 = vadd.f32 %v2500, %v2772
  %v2774 = vpop.f32.mrb[0].mxu0
  %2775 = vmatprep.mubr.f32.mxu0 0.0
  %v2776 = vand.u32 %v1630, 4294901760
  %v2777 = vsub.f32 %v1630, %v2776
  %v2778 = vand.u32 %v2777, 4294901760
  %2779 = vmatmul.mubr.f32.gmra.mrb[0].mxu0 %v2778
  %v2780 = vpop.f32.mrb[0].mxu0
  %v2781 = vadd.f32 %v2507, %v2780
  %v2782 = vpop.f32.mrb[0].mxu0
  %2783 = vmatprep.mubr.f32.mxu0 0.0
  %v2784 = vand.u32 %v1631, 4294901760
  %v2785 = vsub.f32 %v1631, %v2784
  %v2786 = vand.u32 %v2785, 4294901760
  %2787 = vmatmul.mubr.f32.gmra.mrb[0].mxu0 %v2786
  %v2788 = vpop.f32.mrb[0].mxu0
  %v2789 = vadd.f32 %v2514, %v2788
  %v2790 = vpop.f32.mrb[0].mxu0
  %2791 = vmatprep.mubr.f32.mxu0 0.0
  %v2792 = vand.u32 %v1632, 4294901760
  %v2793 = vsub.f32 %v1632, %v2792
  %v2794 = vand.u32 %v2793, 4294901760
  %2795 = vmatmul.mubr.f32.gmra.mrb[0].mxu0 %v2794
  %v2796 = vpop.f32.mrb[0].mxu0
  %v2797 = vadd.f32 %v2521, %v2796
  %v2798 = vpop.f32.mrb[0].mxu0
  %2799 = vmatprep.mubr.f32.mxu0 0.0
  %v2800 = vand.u32 %v1633, 4294901760
  %v2801 = vsub.f32 %v1633, %v2800
  %v2802 = vand.u32 %v2801, 4294901760
  %2803 = vmatmul.mubr.f32.gmra.mrb[0].mxu0 %v2802
  %v2804 = vpop.f32.mrb[0].mxu0
  %v2805 = vadd.f32 %v2528, %v2804
  %v2806 = vpop.f32.mrb[0].mxu0
  %2807 = vmatprep.mubr.f32.mxu0 0.0
  %v2808 = vand.u32 %v1634, 4294901760
  %v2809 = vsub.f32 %v1634, %v2808
  %v2810 = vand.u32 %v2809, 4294901760
  %2811 = vmatmul.mubr.f32.gmra.mrb[0].mxu0 %v2810
  %v2812 = vpop.f32.mrb[0].mxu0
  %v2813 = vadd.f32 %v2535, %v2812
  %v2814 = vpop.f32.mrb[0].mxu0
  %2815 = vmatprep.mubr.f32.mxu0 0.0
  %v2816 = vand.u32 %v1635, 4294901760
  %v2817 = vsub.f32 %v1635, %v2816
  %v2818 = vand.u32 %v2817, 4294901760
  %2819 = vmatmul.mubr.f32.gmra.mrb[0].mxu0 %v2818
  %v2820 = vpop.f32.mrb[0].mxu0
  %v2821 = vadd.f32 %v2542, %v2820
  %v2822 = vpop.f32.mrb[0].mxu0
  %2823 = vmatprep.mubr.f32.mxu0 0.0
  %v2824 = vand.u32 %v1636, 4294901760
  %v2825 = vsub.f32 %v1636, %v2824
  %v2826 = vand.u32 %v2825, 4294901760
  %2827 = vmatmul.mubr.f32.gmra.mrb[0].mxu0 %v2826
  %v2828 = vpop.f32.mrb[0].mxu0
  %v2829 = vadd.f32 %v2549, %v2828
  %v2830 = vpop.f32.mrb[0].mxu0
  %2831 = vmatprep.mubr.f32.mxu0 0.0
  %v2832 = vand.u32 %v1637, 4294901760
  %v2833 = vsub.f32 %v1637, %v2832
  %v2834 = vand.u32 %v2833, 4294901760
  %2835 = vmatmul.mubr.f32.gmra.mrb[0].mxu0 %v2834
  %v2836 = vpop.f32.mrb[0].mxu0
  %v2837 = vadd.f32 %v2556, %v2836
  %v2838 = vpop.f32.mrb[0].mxu0
  %2839 = vdwg.mxu0
  %2840 = vmatprep.subr.mxu0 0.0
  %v2841 = vand.u32 %v1638, 4294901760
  %v2842 = vsub.f32 %v1638, %v2841
  %v2843 = vand.u32 %v2842, 4294901760
  %2844 = vmatpush1.msra.mxu0 %v2843
  %2845 = vmatprep.subr.mxu0 0.0
  %v2846 = vand.u32 %v1639, 4294901760
  %v2847 = vsub.f32 %v1639, %v2846
  %v2848 = vand.u32 %v2847, 4294901760
  %2849 = vmatpush1.msra.mxu0 %v2848
  %2850 = vmatprep.subr.mxu0 0.0
  %v2851 = vand.u32 %v1640, 4294901760
  %v2852 = vsub.f32 %v1640, %v2851
  %v2853 = vand.u32 %v2852, 4294901760
  %2854 = vmatpush1.msra.mxu0 %v2853
  %2855 = vmatprep.subr.mxu0 0.0
  %v2856 = vand.u32 %v1641, 4294901760
  %v2857 = vsub.f32 %v1641, %v2856
  %v2858 = vand.u32 %v2857, 4294901760
  %2859 = vmatpush1.msra.mxu0 %v2858
  %2860 = vmatprep.subr.mxu0 0.0
  %v2861 = vand.u32 %v1642, 4294901760
  %v2862 = vsub.f32 %v1642, %v2861
  %v2863 = vand.u32 %v2862, 4294901760
  %2864 = vmatpush1.msra.mxu0 %v2863
  %2865 = vmatprep.subr.mxu0 0.0
  %v2866 = vand.u32 %v1643, 4294901760
  %v2867 = vsub.f32 %v1643, %v2866
  %v2868 = vand.u32 %v2867, 4294901760
  %2869 = vmatpush1.msra.mxu0 %v2868
  %2870 = vmatprep.subr.mxu0 0.0
  %v2871 = vand.u32 %v1644, 4294901760
  %v2872 = vsub.f32 %v1644, %v2871
  %v2873 = vand.u32 %v2872, 4294901760
  %2874 = vmatpush1.msra.mxu0 %v2873
  %2875 = vmatprep.subr.mxu0 0.0
  %v2876 = vand.u32 %v1645, 4294901760
  %v2877 = vsub.f32 %v1645, %v2876
  %v2878 = vand.u32 %v2877, 4294901760
  %2879 = vmatpush1.msra.mxu0 %v2878
  %2880 = vmatprep.subr.mxu0 0.0
  %v2881 = vand.u32 %v1646, 4294901760
  %v2882 = vsub.f32 %v1646, %v2881
  %v2883 = vand.u32 %v2882, 4294901760
  %2884 = vmatpush1.msra.mxu0 %v2883
  %2885 = vmatprep.subr.mxu0 0.0
  %v2886 = vand.u32 %v1647, 4294901760
  %v2887 = vsub.f32 %v1647, %v2886
  %v2888 = vand.u32 %v2887, 4294901760
  %2889 = vmatpush1.msra.mxu0 %v2888
  %2890 = vmatprep.subr.mxu0 0.0
  %v2891 = vand.u32 %v1648, 4294901760
  %v2892 = vsub.f32 %v1648, %v2891
  %v2893 = vand.u32 %v2892, 4294901760
  %2894 = vmatpush1.msra.mxu0 %v2893
  %2895 = vmatprep.subr.mxu0 0.0
  %v2896 = vand.u32 %v1649, 4294901760
  %v2897 = vsub.f32 %v1649, %v2896
  %v2898 = vand.u32 %v2897, 4294901760
  %2899 = vmatpush1.msra.mxu0 %v2898
  %2900 = vmatprep.subr.mxu0 0.0
  %v2901 = vand.u32 %v1650, 4294901760
  %v2902 = vsub.f32 %v1650, %v2901
  %v2903 = vand.u32 %v2902, 4294901760
  %2904 = vmatpush1.msra.mxu0 %v2903
  %2905 = vmatprep.subr.mxu0 0.0
  %v2906 = vand.u32 %v1651, 4294901760
  %v2907 = vsub.f32 %v1651, %v2906
  %v2908 = vand.u32 %v2907, 4294901760
  %2909 = vmatpush1.msra.mxu0 %v2908
  %2910 = vmatprep.subr.mxu0 0.0
  %v2911 = vand.u32 %v1652, 4294901760
  %v2912 = vsub.f32 %v1652, %v2911
  %v2913 = vand.u32 %v2912, 4294901760
  %2914 = vmatpush1.msra.mxu0 %v2913
  %2915 = vmatprep.subr.mxu0 0.0
  %v2916 = vand.u32 %v1653, 4294901760
  %v2917 = vsub.f32 %v1653, %v2916
  %v2918 = vand.u32 %v2917, 4294901760
  %2919 = vmatpush1.msra.mxu0 %v2918
  %2920 = vmatprep.subr.mxu0 0.0
  %2921 = vmatpush1.msra.mxu0 0.0
  %2922 = vmatprep.subr.mxu0 0.0
  %2923 = vmatpush1.msra.mxu0 0.0
  %2924 = vmatprep.subr.mxu0 0.0
  %2925 = vmatpush1.msra.mxu0 0.0
  %2926 = vmatprep.subr.mxu0 0.0
  %2927 = vmatpush1.msra.mxu0 0.0
  %2928 = vmatprep.subr.mxu0 0.0
  %2929 = vmatpush1.msra.mxu0 0.0
  %2930 = vmatprep.subr.mxu0 0.0
  %2931 = vmatpush1.msra.mxu0 0.0
  %2932 = vmatprep.subr.mxu0 0.0
  %2933 = vmatpush1.msra.mxu0 0.0
  %2934 = vmatprep.subr.mxu0 0.0
  %2935 = vmatpush1.msra.mxu0 0.0
  %2936 = vmatprep.subr.mxu0 0.0
  %2937 = vmatpush1.msra.mxu0 0.0
  %2938 = vmatprep.subr.mxu0 0.0
  %2939 = vmatpush1.msra.mxu0 0.0
  %2940 = vmatprep.subr.mxu0 0.0
  %2941 = vmatpush1.msra.mxu0 0.0
  %2942 = vmatprep.subr.mxu0 0.0
  %2943 = vmatpush1.msra.mxu0 0.0
  %2944 = vmatprep.subr.mxu0 0.0
  %2945 = vmatpush1.msra.mxu0 0.0
  %2946 = vmatprep.subr.mxu0 0.0
  %2947 = vmatpush1.msra.mxu0 0.0
  %2948 = vmatprep.subr.mxu0 0.0
  %2949 = vmatpush1.msra.mxu0 0.0
  %2950 = vmatprep.subr.mxu0 0.0
  %2951 = vmatpush1.msra.mxu0 0.0
  %2952 = vmatprep.mubr.f32.mxu0 0.0
  %v2953 = vand.u32 %v1613, 4294901760
  %2954 = vmatmul.mubr.f32.gmra.mrb[0].mxu0 %v2953
  %v2955 = vpop.f32.mrb[0].mxu0
  %v2956 = vadd.f32 %v2645, %v2955
  %v2957 = vpop.f32.mrb[0].mxu0
  %2958 = vmatprep.mubr.f32.mxu0 0.0
  %v2959 = vand.u32 %v1614, 4294901760
  %2960 = vmatmul.mubr.f32.gmra.mrb[0].mxu0 %v2959
  %v2961 = vpop.f32.mrb[0].mxu0
  %v2962 = vadd.f32 %v2653, %v2961
  %v2963 = vpop.f32.mrb[0].mxu0
  %2964 = vmatprep.mubr.f32.mxu0 0.0
  %v2965 = vand.u32 %v1615, 4294901760
  %2966 = vmatmul.mubr.f32.gmra.mrb[0].mxu0 %v2965
  %v2967 = vpop.f32.mrb[0].mxu0
  %v2968 = vadd.f32 %v2661, %v2967
  %v2969 = vpop.f32.mrb[0].mxu0
  %2970 = vmatprep.mubr.f32.mxu0 0.0
  %v2971 = vand.u32 %v1616, 4294901760
  %2972 = vmatmul.mubr.f32.gmra.mrb[0].mxu0 %v2971
  %v2973 = vpop.f32.mrb[0].mxu0
  %v2974 = vadd.f32 %v2669, %v2973
  %v2975 = vpop.f32.mrb[0].mxu0
  %2976 = vmatprep.mubr.f32.mxu0 0.0
  %v2977 = vand.u32 %v1617, 4294901760
  %2978 = vmatmul.mubr.f32.gmra.mrb[0].mxu0 %v2977
  %v2979 = vpop.f32.mrb[0].mxu0
  %v2980 = vadd.f32 %v2677, %v2979
  %v2981 = vpop.f32.mrb[0].mxu0
  %2982 = vmatprep.mubr.f32.mxu0 0.0
  %v2983 = vand.u32 %v1618, 4294901760
  %2984 = vmatmul.mubr.f32.gmra.mrb[0].mxu0 %v2983
  %v2985 = vpop.f32.mrb[0].mxu0
  %v2986 = vadd.f32 %v2685, %v2985
  %v2987 = vpop.f32.mrb[0].mxu0
  %2988 = vmatprep.mubr.f32.mxu0 0.0
  %v2989 = vand.u32 %v1619, 4294901760
  %2990 = vmatmul.mubr.f32.gmra.mrb[0].mxu0 %v2989
  %v2991 = vpop.f32.mrb[0].mxu0
  %v2992 = vadd.f32 %v2693, %v2991
  %v2993 = vpop.f32.mrb[0].mxu0
  %2994 = vmatprep.mubr.f32.mxu0 0.0
  %v2995 = vand.u32 %v1620, 4294901760
  %2996 = vmatmul.mubr.f32.gmra.mrb[0].mxu0 %v2995
  %v2997 = vpop.f32.mrb[0].mxu0
  %v2998 = vadd.f32 %v2701, %v2997
  %v2999 = vpop.f32.mrb[0].mxu0
  %3000 = vmatprep.mubr.f32.mxu0 0.0
  %v3001 = vand.u32 %v1621, 4294901760
  %3002 = vmatmul.mubr.f32.gmra.mrb[0].mxu0 %v3001
  %v3003 = vpop.f32.mrb[0].mxu0
  %v3004 = vadd.f32 %v2709, %v3003
  %v3005 = vpop.f32.mrb[0].mxu0
  %3006 = vmatprep.mubr.f32.mxu0 0.0
  %v3007 = vand.u32 %v1622, 4294901760
  %3008 = vmatmul.mubr.f32.gmra.mrb[0].mxu0 %v3007
  %v3009 = vpop.f32.mrb[0].mxu0
  %v3010 = vadd.f32 %v2717, %v3009
  %v3011 = vpop.f32.mrb[0].mxu0
  %3012 = vmatprep.mubr.f32.mxu0 0.0
  %v3013 = vand.u32 %v1623, 4294901760
  %3014 = vmatmul.mubr.f32.gmra.mrb[0].mxu0 %v3013
  %v3015 = vpop.f32.mrb[0].mxu0
  %v3016 = vadd.f32 %v2725, %v3015
  %v3017 = vpop.f32.mrb[0].mxu0
  %3018 = vmatprep.mubr.f32.mxu0 0.0
  %v3019 = vand.u32 %v1624, 4294901760
  %3020 = vmatmul.mubr.f32.gmra.mrb[0].mxu0 %v3019
  %v3021 = vpop.f32.mrb[0].mxu0
  %v3022 = vadd.f32 %v2733, %v3021
  %v3023 = vpop.f32.mrb[0].mxu0
  %3024 = vmatprep.mubr.f32.mxu0 0.0
  %v3025 = vand.u32 %v1625, 4294901760
  %3026 = vmatmul.mubr.f32.gmra.mrb[0].mxu0 %v3025
  %v3027 = vpop.f32.mrb[0].mxu0
  %v3028 = vadd.f32 %v2741, %v3027
  %v3029 = vpop.f32.mrb[0].mxu0
  %3030 = vmatprep.mubr.f32.mxu0 0.0
  %v3031 = vand.u32 %v1626, 4294901760
  %3032 = vmatmul.mubr.f32.gmra.mrb[0].mxu0 %v3031
  %v3033 = vpop.f32.mrb[0].mxu0
  %v3034 = vadd.f32 %v2749, %v3033
  %v3035 = vpop.f32.mrb[0].mxu0
  %3036 = vmatprep.mubr.f32.mxu0 0.0
  %v3037 = vand.u32 %v1627, 4294901760
  %3038 = vmatmul.mubr.f32.gmra.mrb[0].mxu0 %v3037
  %v3039 = vpop.f32.mrb[0].mxu0
  %v3040 = vadd.f32 %v2757, %v3039
  %v3041 = vpop.f32.mrb[0].mxu0
  %3042 = vmatprep.mubr.f32.mxu0 0.0
  %v3043 = vand.u32 %v1628, 4294901760
  %3044 = vmatmul.mubr.f32.gmra.mrb[0].mxu0 %v3043
  %v3045 = vpop.f32.mrb[0].mxu0
  %v3046 = vadd.f32 %v2765, %v3045
  %v3047 = vpop.f32.mrb[0].mxu0
  %3048 = vmatprep.mubr.f32.mxu0 0.0
  %v3049 = vand.u32 %v1629, 4294901760
  %3050 = vmatmul.mubr.f32.gmra.mrb[0].mxu0 %v3049
  %v3051 = vpop.f32.mrb[0].mxu0
  %v3052 = vadd.f32 %v2773, %v3051
  %v3053 = vpop.f32.mrb[0].mxu0
  %3054 = vmatprep.mubr.f32.mxu0 0.0
  %v3055 = vand.u32 %v1630, 4294901760
  %3056 = vmatmul.mubr.f32.gmra.mrb[0].mxu0 %v3055
  %v3057 = vpop.f32.mrb[0].mxu0
  %v3058 = vadd.f32 %v2781, %v3057
  %v3059 = vpop.f32.mrb[0].mxu0
  %3060 = vmatprep.mubr.f32.mxu0 0.0
  %v3061 = vand.u32 %v1631, 4294901760
  %3062 = vmatmul.mubr.f32.gmra.mrb[0].mxu0 %v3061
  %v3063 = vpop.f32.mrb[0].mxu0
  %v3064 = vadd.f32 %v2789, %v3063
  %v3065 = vpop.f32.mrb[0].mxu0
  %3066 = vmatprep.mubr.f32.mxu0 0.0
  %v3067 = vand.u32 %v1632, 4294901760
  %3068 = vmatmul.mubr.f32.gmra.mrb[0].mxu0 %v3067
  %v3069 = vpop.f32.mrb[0].mxu0
  %v3070 = vadd.f32 %v2797, %v3069
  %v3071 = vpop.f32.mrb[0].mxu0
  %3072 = vmatprep.mubr.f32.mxu0 0.0
  %v3073 = vand.u32 %v1633, 4294901760
  %3074 = vmatmul.mubr.f32.gmra.mrb[0].mxu0 %v3073
  %v3075 = vpop.f32.mrb[0].mxu0
  %v3076 = vadd.f32 %v2805, %v3075
  %v3077 = vpop.f32.mrb[0].mxu0
  %3078 = vmatprep.mubr.f32.mxu0 0.0
  %v3079 = vand.u32 %v1634, 4294901760
  %3080 = vmatmul.mubr.f32.gmra.mrb[0].mxu0 %v3079
  %v3081 = vpop.f32.mrb[0].mxu0
  %v3082 = vadd.f32 %v2813, %v3081
  %v3083 = vpop.f32.mrb[0].mxu0
  %3084 = vmatprep.mubr.f32.mxu0 0.0
  %v3085 = vand.u32 %v1635, 4294901760
  %3086 = vmatmul.mubr.f32.gmra.mrb[0].mxu0 %v3085
  %v3087 = vpop.f32.mrb[0].mxu0
  %v3088 = vadd.f32 %v2821, %v3087
  %v3089 = vpop.f32.mrb[0].mxu0
  %3090 = vmatprep.mubr.f32.mxu0 0.0
  %v3091 = vand.u32 %v1636, 4294901760
  %3092 = vmatmul.mubr.f32.gmra.mrb[0].mxu0 %v3091
  %v3093 = vpop.f32.mrb[0].mxu0
  %v3094 = vadd.f32 %v2829, %v3093
  %v3095 = vpop.f32.mrb[0].mxu0
  %3096 = vmatprep.mubr.f32.mxu0 0.0
  %v3097 = vand.u32 %v1637, 4294901760
  %3098 = vmatmul.mubr.f32.gmra.mrb[0].mxu0 %v3097
  %v3099 = vpop.f32.mrb[0].mxu0
  %v3100 = vadd.f32 %v2837, %v3099
  %v3101 = vpop.f32.mrb[0].mxu0
  %3102 = vdwg.mxu0
  %3103 = vmatprep.subr.mxu0 0.0
  %v3104 = vand.u32 %v1638, 4294901760
  %3105 = vmatpush1.msra.mxu0 %v3104
  %3106 = vmatprep.subr.mxu0 0.0
  %v3107 = vand.u32 %v1639, 4294901760
  %3108 = vmatpush1.msra.mxu0 %v3107
  %3109 = vmatprep.subr.mxu0 0.0
  %v3110 = vand.u32 %v1640, 4294901760
  %3111 = vmatpush1.msra.mxu0 %v3110
  %3112 = vmatprep.subr.mxu0 0.0
  %v3113 = vand.u32 %v1641, 4294901760
  %3114 = vmatpush1.msra.mxu0 %v3113
  %3115 = vmatprep.subr.mxu0 0.0
  %v3116 = vand.u32 %v1642, 4294901760
  %3117 = vmatpush1.msra.mxu0 %v3116
  %3118 = vmatprep.subr.mxu0 0.0
  %v3119 = vand.u32 %v1643, 4294901760
  %3120 = vmatpush1.msra.mxu0 %v3119
  %3121 = vmatprep.subr.mxu0 0.0
  %v3122 = vand.u32 %v1644, 4294901760
  %3123 = vmatpush1.msra.mxu0 %v3122
  %3124 = vmatprep.subr.mxu0 0.0
  %v3125 = vand.u32 %v1645, 4294901760
  %3126 = vmatpush1.msra.mxu0 %v3125
  %3127 = vmatprep.subr.mxu0 0.0
  %v3128 = vand.u32 %v1646, 4294901760
  %3129 = vmatpush1.msra.mxu0 %v3128
  %3130 = vmatprep.subr.mxu0 0.0
  %v3131 = vand.u32 %v1647, 4294901760
  %3132 = vmatpush1.msra.mxu0 %v3131
  %3133 = vmatprep.subr.mxu0 0.0
  %v3134 = vand.u32 %v1648, 4294901760
  %3135 = vmatpush1.msra.mxu0 %v3134
  %3136 = vmatprep.subr.mxu0 0.0
  %v3137 = vand.u32 %v1649, 4294901760
  %3138 = vmatpush1.msra.mxu0 %v3137
  %3139 = vmatprep.subr.mxu0 0.0
  %v3140 = vand.u32 %v1650, 4294901760
  %3141 = vmatpush1.msra.mxu0 %v3140
  %3142 = vmatprep.subr.mxu0 0.0
  %v3143 = vand.u32 %v1651, 4294901760
  %3144 = vmatpush1.msra.mxu0 %v3143
  %3145 = vmatprep.subr.mxu0 0.0
  %v3146 = vand.u32 %v1652, 4294901760
  %3147 = vmatpush1.msra.mxu0 %v3146
  %3148 = vmatprep.subr.mxu0 0.0
  %v3149 = vand.u32 %v1653, 4294901760
  %3150 = vmatpush1.msra.mxu0 %v3149
  %3151 = vmatprep.subr.mxu0 0.0
  %3152 = vmatpush1.msra.mxu0 0.0
  %3153 = vmatprep.subr.mxu0 0.0
  %3154 = vmatpush1.msra.mxu0 0.0
  %3155 = vmatprep.subr.mxu0 0.0
  %3156 = vmatpush1.msra.mxu0 0.0
  %3157 = vmatprep.subr.mxu0 0.0
  %3158 = vmatpush1.msra.mxu0 0.0
  %3159 = vmatprep.subr.mxu0 0.0
  %3160 = vmatpush1.msra.mxu0 0.0
  %3161 = vmatprep.subr.mxu0 0.0
  %3162 = vmatpush1.msra.mxu0 0.0
  %3163 = vmatprep.subr.mxu0 0.0
  %3164 = vmatpush1.msra.mxu0 0.0
  %3165 = vmatprep.subr.mxu0 0.0
  %3166 = vmatpush1.msra.mxu0 0.0
  %3167 = vmatprep.subr.mxu0 0.0
  %3168 = vmatpush1.msra.mxu0 0.0
  %3169 = vmatprep.subr.mxu0 0.0
  %3170 = vmatpush1.msra.mxu0 0.0
  %3171 = vmatprep.subr.mxu0 0.0
  %3172 = vmatpush1.msra.mxu0 0.0
  %3173 = vmatprep.subr.mxu0 0.0
  %3174 = vmatpush1.msra.mxu0 0.0
  %3175 = vmatprep.subr.mxu0 0.0
  %3176 = vmatpush1.msra.mxu0 0.0
  %3177 = vmatprep.subr.mxu0 0.0
  %3178 = vmatpush1.msra.mxu0 0.0
  %3179 = vmatprep.subr.mxu0 0.0
  %3180 = vmatpush1.msra.mxu0 0.0
  %3181 = vmatprep.subr.mxu0 0.0
  %3182 = vmatpush1.msra.mxu0 0.0
  %3183 = vmatprep.mubr.f32.mxu0 0.0
  %v3184 = vand.u32 %v1613, 4294901760
  %3185 = vmatmul.mubr.f32.gmra.mrb[0].mxu0 %v3184
  %v3186 = vpop.f32.mrb[0].mxu0
  %v3187 = vadd.f32 %v2956, %v3186
  %v3188 = vpop.f32.mrb[0].mxu0
  %3189 = vmatprep.mubr.f32.mxu0 0.0
  %v3190 = vand.u32 %v1614, 4294901760
  %3191 = vmatmul.mubr.f32.gmra.mrb[0].mxu0 %v3190
  %v3192 = vpop.f32.mrb[0].mxu0
  %v3193 = vadd.f32 %v2962, %v3192
  %v3194 = vpop.f32.mrb[0].mxu0
  %3195 = vmatprep.mubr.f32.mxu0 0.0
  %v3196 = vand.u32 %v1615, 4294901760
  %3197 = vmatmul.mubr.f32.gmra.mrb[0].mxu0 %v3196
  %v3198 = vpop.f32.mrb[0].mxu0
  %v3199 = vadd.f32 %v2968, %v3198
  %v3200 = vpop.f32.mrb[0].mxu0
  %3201 = vmatprep.mubr.f32.mxu0 0.0
  %v3202 = vand.u32 %v1616, 4294901760
  %3203 = vmatmul.mubr.f32.gmra.mrb[0].mxu0 %v3202
  %v3204 = vpop.f32.mrb[0].mxu0
  %v3205 = vadd.f32 %v2974, %v3204
  %v3206 = vpop.f32.mrb[0].mxu0
  %3207 = vmatprep.mubr.f32.mxu0 0.0
  %v3208 = vand.u32 %v1617, 4294901760
  %3209 = vmatmul.mubr.f32.gmra.mrb[0].mxu0 %v3208
  %v3210 = vpop.f32.mrb[0].mxu0
  %v3211 = vadd.f32 %v2980, %v3210
  %v3212 = vpop.f32.mrb[0].mxu0
  %3213 = vmatprep.mubr.f32.mxu0 0.0
  %v3214 = vand.u32 %v1618, 4294901760
  %3215 = vmatmul.mubr.f32.gmra.mrb[0].mxu0 %v3214
  %v3216 = vpop.f32.mrb[0].mxu0
  %v3217 = vadd.f32 %v2986, %v3216
  %v3218 = vpop.f32.mrb[0].mxu0
  %3219 = vmatprep.mubr.f32.mxu0 0.0
  %v3220 = vand.u32 %v1619, 4294901760
  %3221 = vmatmul.mubr.f32.gmra.mrb[0].mxu0 %v3220
  %v3222 = vpop.f32.mrb[0].mxu0
  %v3223 = vadd.f32 %v2992, %v3222
  %v3224 = vpop.f32.mrb[0].mxu0
  %3225 = vmatprep.mubr.f32.mxu0 0.0
  %v3226 = vand.u32 %v1620, 4294901760
  %3227 = vmatmul.mubr.f32.gmra.mrb[0].mxu0 %v3226
  %v3228 = vpop.f32.mrb[0].mxu0
  %v3229 = vadd.f32 %v2998, %v3228
  %v3230 = vpop.f32.mrb[0].mxu0
  %3231 = vmatprep.mubr.f32.mxu0 0.0
  %v3232 = vand.u32 %v1621, 4294901760
  %3233 = vmatmul.mubr.f32.gmra.mrb[0].mxu0 %v3232
  %v3234 = vpop.f32.mrb[0].mxu0
  %v3235 = vadd.f32 %v3004, %v3234
  %v3236 = vpop.f32.mrb[0].mxu0
  %3237 = vmatprep.mubr.f32.mxu0 0.0
  %v3238 = vand.u32 %v1622, 4294901760
  %3239 = vmatmul.mubr.f32.gmra.mrb[0].mxu0 %v3238
  %v3240 = vpop.f32.mrb[0].mxu0
  %v3241 = vadd.f32 %v3010, %v3240
  %v3242 = vpop.f32.mrb[0].mxu0
  %3243 = vmatprep.mubr.f32.mxu0 0.0
  %v3244 = vand.u32 %v1623, 4294901760
  %3245 = vmatmul.mubr.f32.gmra.mrb[0].mxu0 %v3244
  %v3246 = vpop.f32.mrb[0].mxu0
  %v3247 = vadd.f32 %v3016, %v3246
  %v3248 = vpop.f32.mrb[0].mxu0
  %3249 = vmatprep.mubr.f32.mxu0 0.0
  %v3250 = vand.u32 %v1624, 4294901760
  %3251 = vmatmul.mubr.f32.gmra.mrb[0].mxu0 %v3250
  %v3252 = vpop.f32.mrb[0].mxu0
  %v3253 = vadd.f32 %v3022, %v3252
  %v3254 = vpop.f32.mrb[0].mxu0
  %3255 = vmatprep.mubr.f32.mxu0 0.0
  %v3256 = vand.u32 %v1625, 4294901760
  %3257 = vmatmul.mubr.f32.gmra.mrb[0].mxu0 %v3256
  %v3258 = vpop.f32.mrb[0].mxu0
  %v3259 = vadd.f32 %v3028, %v3258
  %v3260 = vpop.f32.mrb[0].mxu0
  %3261 = vmatprep.mubr.f32.mxu0 0.0
  %v3262 = vand.u32 %v1626, 4294901760
  %3263 = vmatmul.mubr.f32.gmra.mrb[0].mxu0 %v3262
  %v3264 = vpop.f32.mrb[0].mxu0
  %v3265 = vadd.f32 %v3034, %v3264
  %v3266 = vpop.f32.mrb[0].mxu0
  %3267 = vmatprep.mubr.f32.mxu0 0.0
  %v3268 = vand.u32 %v1627, 4294901760
  %3269 = vmatmul.mubr.f32.gmra.mrb[0].mxu0 %v3268
  %v3270 = vpop.f32.mrb[0].mxu0
  %v3271 = vadd.f32 %v3040, %v3270
  %v3272 = vpop.f32.mrb[0].mxu0
  %3273 = vmatprep.mubr.f32.mxu0 0.0
  %v3274 = vand.u32 %v1628, 4294901760
  %3275 = vmatmul.mubr.f32.gmra.mrb[0].mxu0 %v3274
  %v3276 = vpop.f32.mrb[0].mxu0
  %v3277 = vadd.f32 %v3046, %v3276
  %v3278 = vpop.f32.mrb[0].mxu0
  %3279 = vmatprep.mubr.f32.mxu0 0.0
  %v3280 = vand.u32 %v1629, 4294901760
  %3281 = vmatmul.mubr.f32.gmra.mrb[0].mxu0 %v3280
  %v3282 = vpop.f32.mrb[0].mxu0
  %v3283 = vadd.f32 %v3052, %v3282
  %v3284 = vpop.f32.mrb[0].mxu0
  %3285 = vmatprep.mubr.f32.mxu0 0.0
  %v3286 = vand.u32 %v1630, 4294901760
  %3287 = vmatmul.mubr.f32.gmra.mrb[0].mxu0 %v3286
  %v3288 = vpop.f32.mrb[0].mxu0
  %v3289 = vadd.f32 %v3058, %v3288
  %v3290 = vpop.f32.mrb[0].mxu0
  %3291 = vmatprep.mubr.f32.mxu0 0.0
  %v3292 = vand.u32 %v1631, 4294901760
  %3293 = vmatmul.mubr.f32.gmra.mrb[0].mxu0 %v3292
  %v3294 = vpop.f32.mrb[0].mxu0
  %v3295 = vadd.f32 %v3064, %v3294
  %v3296 = vpop.f32.mrb[0].mxu0
  %3297 = vmatprep.mubr.f32.mxu0 0.0
  %v3298 = vand.u32 %v1632, 4294901760
  %3299 = vmatmul.mubr.f32.gmra.mrb[0].mxu0 %v3298
  %v3300 = vpop.f32.mrb[0].mxu0
  %v3301 = vadd.f32 %v3070, %v3300
  %v3302 = vpop.f32.mrb[0].mxu0
  %3303 = vmatprep.mubr.f32.mxu0 0.0
  %v3304 = vand.u32 %v1633, 4294901760
  %3305 = vmatmul.mubr.f32.gmra.mrb[0].mxu0 %v3304
  %v3306 = vpop.f32.mrb[0].mxu0
  %v3307 = vadd.f32 %v3076, %v3306
  %v3308 = vpop.f32.mrb[0].mxu0
  %3309 = vmatprep.mubr.f32.mxu0 0.0
  %v3310 = vand.u32 %v1634, 4294901760
  %3311 = vmatmul.mubr.f32.gmra.mrb[0].mxu0 %v3310
  %v3312 = vpop.f32.mrb[0].mxu0
  %v3313 = vadd.f32 %v3082, %v3312
  %v3314 = vpop.f32.mrb[0].mxu0
  %3315 = vmatprep.mubr.f32.mxu0 0.0
  %v3316 = vand.u32 %v1635, 4294901760
  %3317 = vmatmul.mubr.f32.gmra.mrb[0].mxu0 %v3316
  %v3318 = vpop.f32.mrb[0].mxu0
  %v3319 = vadd.f32 %v3088, %v3318
  %v3320 = vpop.f32.mrb[0].mxu0
  %3321 = vmatprep.mubr.f32.mxu0 0.0
  %v3322 = vand.u32 %v1636, 4294901760
  %3323 = vmatmul.mubr.f32.gmra.mrb[0].mxu0 %v3322
  %v3324 = vpop.f32.mrb[0].mxu0
  %v3325 = vadd.f32 %v3094, %v3324
  %v3326 = vpop.f32.mrb[0].mxu0
  %3327 = vmatprep.mubr.f32.mxu0 0.0
  %v3328 = vand.u32 %v1637, 4294901760
  %3329 = vmatmul.mubr.f32.gmra.mrb[0].mxu0 %v3328
  %v3330 = vpop.f32.mrb[0].mxu0
  %v3331 = vadd.f32 %v3100, %v3330
  %v3332 = vpop.f32.mrb[0].mxu0
  %3333 = vdwg.mxu0
  %v3334 = vtanh.pop %v3187
  %v3335 = vtanh.pop %v3193
  %v3336 = vtanh.pop %v3199
  %v3337 = vtanh.pop %v3205
  %v3338 = vtanh.pop %v3211
  %v3339 = vtanh.pop %v3217
  %v3340 = vtanh.pop %v3223
  %v3341 = vtanh.pop %v3229
  %v3342 = vtanh.pop %v3235
  %v3343 = vtanh.pop %v3241
  %v3344 = vtanh.pop %v3247
  %v3345 = vtanh.pop %v3253
  %v3346 = vtanh.pop %v3259
  %v3347 = vtanh.pop %v3265
  %v3348 = vtanh.pop %v3271
  %v3349 = vtanh.pop %v3277
  %v3350 = vtanh.pop %v3283
  %v3351 = vtanh.pop %v3289
  %v3352 = vtanh.pop %v3295
  %v3353 = vtanh.pop %v3301
  %v3354 = vtanh.pop %v3307
  %v3355 = vtanh.pop %v3313
  %v3356 = vtanh.pop %v3319
  %v3357 = vtanh.pop %v3325
  %v3358 = vtanh.pop %v3331
  %v3359 = vld [vmem:[%s5] sm:$0xff]
  %v3360 = vld [vmem:[%s5 + $0x8] sm:$0xff]
  %v3361 = vld [vmem:[%s5 + $0x10] sm:$0xff]
  %v3362 = vld [vmem:[%s5 + $0x18] sm:$0xff]
  %v3363 = vld [vmem:[%s5 + $0x20] sm:$0xff]
  %v3364 = vld [vmem:[%s5 + $0x28] sm:$0xff]
  %v3365 = vld [vmem:[%s5 + $0x30] sm:$0xff]
  %v3366 = vld [vmem:[%s5 + $0x38] sm:$0xff]
  %v3367 = vld [vmem:[%s5 + $0x40] sm:$0xff]
  %v3368 = vld [vmem:[%s5 + $0x48] sm:$0xff]
  %v3369 = vld [vmem:[%s5 + $0x50] sm:$0xff]
  %v3370 = vld [vmem:[%s5 + $0x58] sm:$0xff]
  %v3371 = vld [vmem:[%s5 + $0x60] sm:$0xff]
  %v3372 = vld [vmem:[%s5 + $0x68] sm:$0xff]
  %v3373 = vld [vmem:[%s5 + $0x70] sm:$0xff]
  %v3374 = vld [vmem:[%s5 + $0x78] sm:$0xff]
  %v3375 = vld [vmem:[%s6] sm:$0x1]
  %v3377 = vlaneseq
  %v3378 = vshrl.u32 %v3377, 7
  %v3379 = vsub.s32 0, %v3378
  %v3380 = vrot.slane %v3375, %v3379
  %3382 = vmatprep.subr.mxu0 0.0
  %v3383 = vand.u32 %v3359, 4294901760
  %3384 = vmatpush1.msra.mxu0 %v3383
  %3385 = vmatprep.subr.mxu0 0.0
  %v3386 = vand.u32 %v3360, 4294901760
  %3387 = vmatpush1.msra.mxu0 %v3386
  %3388 = vmatprep.subr.mxu0 0.0
  %v3389 = vand.u32 %v3361, 4294901760
  %3390 = vmatpush1.msra.mxu0 %v3389
  %3391 = vmatprep.subr.mxu0 0.0
  %v3392 = vand.u32 %v3362, 4294901760
  %3393 = vmatpush1.msra.mxu0 %v3392
  %3394 = vmatprep.subr.mxu0 0.0
  %v3395 = vand.u32 %v3363, 4294901760
  %3396 = vmatpush1.msra.mxu0 %v3395
  %3397 = vmatprep.subr.mxu0 0.0
  %v3398 = vand.u32 %v3364, 4294901760
  %3399 = vmatpush1.msra.mxu0 %v3398
  %3400 = vmatprep.subr.mxu0 0.0
  %v3401 = vand.u32 %v3365, 4294901760
  %3402 = vmatpush1.msra.mxu0 %v3401
  %3403 = vmatprep.subr.mxu0 0.0
  %v3404 = vand.u32 %v3366, 4294901760
  %3405 = vmatpush1.msra.mxu0 %v3404
  %3406 = vmatprep.subr.mxu0 0.0
  %v3407 = vand.u32 %v3367, 4294901760
  %3408 = vmatpush1.msra.mxu0 %v3407
  %3409 = vmatprep.subr.mxu0 0.0
  %v3410 = vand.u32 %v3368, 4294901760
  %3411 = vmatpush1.msra.mxu0 %v3410
  %3412 = vmatprep.subr.mxu0 0.0
  %v3413 = vand.u32 %v3369, 4294901760
  %3414 = vmatpush1.msra.mxu0 %v3413
  %3415 = vmatprep.subr.mxu0 0.0
  %v3416 = vand.u32 %v3370, 4294901760
  %3417 = vmatpush1.msra.mxu0 %v3416
  %3418 = vmatprep.subr.mxu0 0.0
  %v3419 = vand.u32 %v3371, 4294901760
  %3420 = vmatpush1.msra.mxu0 %v3419
  %3421 = vmatprep.subr.mxu0 0.0
  %v3422 = vand.u32 %v3372, 4294901760
  %3423 = vmatpush1.msra.mxu0 %v3422
  %3424 = vmatprep.subr.mxu0 0.0
  %v3425 = vand.u32 %v3373, 4294901760
  %3426 = vmatpush1.msra.mxu0 %v3425
  %3427 = vmatprep.subr.mxu0 0.0
  %v3428 = vand.u32 %v3374, 4294901760
  %3429 = vmatpush1.msra.mxu0 %v3428
  %3430 = vmatprep.subr.mxu0 0.0
  %3431 = vmatpush1.msra.mxu0 0.0
  %3432 = vmatprep.subr.mxu0 0.0
  %3433 = vmatpush1.msra.mxu0 0.0
  %3434 = vmatprep.subr.mxu0 0.0
  %3435 = vmatpush1.msra.mxu0 0.0
  %3436 = vmatprep.subr.mxu0 0.0
  %3437 = vmatpush1.msra.mxu0 0.0
  %3438 = vmatprep.subr.mxu0 0.0
  %3439 = vmatpush1.msra.mxu0 0.0
  %3440 = vmatprep.subr.mxu0 0.0
  %3441 = vmatpush1.msra.mxu0 0.0
  %3442 = vmatprep.subr.mxu0 0.0
  %3443 = vmatpush1.msra.mxu0 0.0
  %3444 = vmatprep.subr.mxu0 0.0
  %3445 = vmatpush1.msra.mxu0 0.0
  %3446 = vmatprep.subr.mxu0 0.0
  %3447 = vmatpush1.msra.mxu0 0.0
  %3448 = vmatprep.subr.mxu0 0.0
  %3449 = vmatpush1.msra.mxu0 0.0
  %3450 = vmatprep.subr.mxu0 0.0
  %3451 = vmatpush1.msra.mxu0 0.0
  %3452 = vmatprep.subr.mxu0 0.0
  %3453 = vmatpush1.msra.mxu0 0.0
  %3454 = vmatprep.subr.mxu0 0.0
  %3455 = vmatpush1.msra.mxu0 0.0
  %3456 = vmatprep.subr.mxu0 0.0
  %3457 = vmatpush1.msra.mxu0 0.0
  %3458 = vmatprep.subr.mxu0 0.0
  %3459 = vmatpush1.msra.mxu0 0.0
  %3460 = vmatprep.subr.mxu0 0.0
  %3461 = vmatpush1.msra.mxu0 0.0
  %3462 = vmatprep.mubr.f32.mxu0 0.0
  %v3463 = vand.u32 %v3334, 4294901760
  %v3464 = vsub.f32 %v3334, %v3463
  %v3465 = vand.u32 %v3464, 4294901760
  %v3466 = vsub.f32 %v3464, %v3465
  %v3467 = vand.u32 %v3466, 4294901760
  %3468 = vmatmul.mubr.f32.gmra.mrb[0].mxu0 %v3467
  %v3469 = vpop.f32.mrb[0].mxu0
  %v3470 = vadd.f32 %v3380, %v3469
  %v3471 = vpop.f32.mrb[0].mxu0
  %3472 = vmatprep.mubr.f32.mxu0 0.0
  %v3473 = vand.u32 %v3335, 4294901760
  %v3474 = vsub.f32 %v3335, %v3473
  %v3475 = vand.u32 %v3474, 4294901760
  %v3476 = vsub.f32 %v3474, %v3475
  %v3477 = vand.u32 %v3476, 4294901760
  %3478 = vmatmul.mubr.f32.gmra.mrb[0].mxu0 %v3477
  %v3479 = vpop.f32.mrb[0].mxu0
  %v3480 = vadd.f32 %v3380, %v3479
  %v3481 = vpop.f32.mrb[0].mxu0
  %3482 = vmatprep.mubr.f32.mxu0 0.0
  %v3483 = vand.u32 %v3336, 4294901760
  %v3484 = vsub.f32 %v3336, %v3483
  %v3485 = vand.u32 %v3484, 4294901760
  %v3486 = vsub.f32 %v3484, %v3485
  %v3487 = vand.u32 %v3486, 4294901760
  %3488 = vmatmul.mubr.f32.gmra.mrb[0].mxu0 %v3487
  %v3489 = vpop.f32.mrb[0].mxu0
  %v3490 = vadd.f32 %v3380, %v3489
  %v3491 = vpop.f32.mrb[0].mxu0
  %3492 = vmatprep.mubr.f32.mxu0 0.0
  %v3493 = vand.u32 %v3337, 4294901760
  %v3494 = vsub.f32 %v3337, %v3493
  %v3495 = vand.u32 %v3494, 4294901760
  %v3496 = vsub.f32 %v3494, %v3495
  %v3497 = vand.u32 %v3496, 4294901760
  %3498 = vmatmul.mubr.f32.gmra.mrb[0].mxu0 %v3497
  %v3499 = vpop.f32.mrb[0].mxu0
  %v3500 = vadd.f32 %v3380, %v3499
  %v3501 = vpop.f32.mrb[0].mxu0
  %3502 = vmatprep.mubr.f32.mxu0 0.0
  %v3503 = vand.u32 %v3338, 4294901760
  %v3504 = vsub.f32 %v3338, %v3503
  %v3505 = vand.u32 %v3504, 4294901760
  %v3506 = vsub.f32 %v3504, %v3505
  %v3507 = vand.u32 %v3506, 4294901760
  %3508 = vmatmul.mubr.f32.gmra.mrb[0].mxu0 %v3507
  %v3509 = vpop.f32.mrb[0].mxu0
  %v3510 = vadd.f32 %v3380, %v3509
  %v3511 = vpop.f32.mrb[0].mxu0
  %3512 = vmatprep.mubr.f32.mxu0 0.0
  %v3513 = vand.u32 %v3339, 4294901760
  %v3514 = vsub.f32 %v3339, %v3513
  %v3515 = vand.u32 %v3514, 4294901760
  %v3516 = vsub.f32 %v3514, %v3515
  %v3517 = vand.u32 %v3516, 4294901760
  %3518 = vmatmul.mubr.f32.gmra.mrb[0].mxu0 %v3517
  %v3519 = vpop.f32.mrb[0].mxu0
  %v3520 = vadd.f32 %v3380, %v3519
  %v3521 = vpop.f32.mrb[0].mxu0
  %3522 = vmatprep.mubr.f32.mxu0 0.0
  %v3523 = vand.u32 %v3340, 4294901760
  %v3524 = vsub.f32 %v3340, %v3523
  %v3525 = vand.u32 %v3524, 4294901760
  %v3526 = vsub.f32 %v3524, %v3525
  %v3527 = vand.u32 %v3526, 4294901760
  %3528 = vmatmul.mubr.f32.gmra.mrb[0].mxu0 %v3527
  %v3529 = vpop.f32.mrb[0].mxu0
  %v3530 = vadd.f32 %v3380, %v3529
  %v3531 = vpop.f32.mrb[0].mxu0
  %3532 = vmatprep.mubr.f32.mxu0 0.0
  %v3533 = vand.u32 %v3341, 4294901760
  %v3534 = vsub.f32 %v3341, %v3533
  %v3535 = vand.u32 %v3534, 4294901760
  %v3536 = vsub.f32 %v3534, %v3535
  %v3537 = vand.u32 %v3536, 4294901760
  %3538 = vmatmul.mubr.f32.gmra.mrb[0].mxu0 %v3537
  %v3539 = vpop.f32.mrb[0].mxu0
  %v3540 = vadd.f32 %v3380, %v3539
  %v3541 = vpop.f32.mrb[0].mxu0
  %3542 = vmatprep.mubr.f32.mxu0 0.0
  %v3543 = vand.u32 %v3342, 4294901760
  %v3544 = vsub.f32 %v3342, %v3543
  %v3545 = vand.u32 %v3544, 4294901760
  %v3546 = vsub.f32 %v3544, %v3545
  %v3547 = vand.u32 %v3546, 4294901760
  %3548 = vmatmul.mubr.f32.gmra.mrb[0].mxu0 %v3547
  %v3549 = vpop.f32.mrb[0].mxu0
  %v3550 = vadd.f32 %v3380, %v3549
  %v3551 = vpop.f32.mrb[0].mxu0
  %3552 = vmatprep.mubr.f32.mxu0 0.0
  %v3553 = vand.u32 %v3343, 4294901760
  %v3554 = vsub.f32 %v3343, %v3553
  %v3555 = vand.u32 %v3554, 4294901760
  %v3556 = vsub.f32 %v3554, %v3555
  %v3557 = vand.u32 %v3556, 4294901760
  %3558 = vmatmul.mubr.f32.gmra.mrb[0].mxu0 %v3557
  %v3559 = vpop.f32.mrb[0].mxu0
  %v3560 = vadd.f32 %v3380, %v3559
  %v3561 = vpop.f32.mrb[0].mxu0
  %3562 = vmatprep.mubr.f32.mxu0 0.0
  %v3563 = vand.u32 %v3344, 4294901760
  %v3564 = vsub.f32 %v3344, %v3563
  %v3565 = vand.u32 %v3564, 4294901760
  %v3566 = vsub.f32 %v3564, %v3565
  %v3567 = vand.u32 %v3566, 4294901760
  %3568 = vmatmul.mubr.f32.gmra.mrb[0].mxu0 %v3567
  %v3569 = vpop.f32.mrb[0].mxu0
  %v3570 = vadd.f32 %v3380, %v3569
  %v3571 = vpop.f32.mrb[0].mxu0
  %3572 = vmatprep.mubr.f32.mxu0 0.0
  %v3573 = vand.u32 %v3345, 4294901760
  %v3574 = vsub.f32 %v3345, %v3573
  %v3575 = vand.u32 %v3574, 4294901760
  %v3576 = vsub.f32 %v3574, %v3575
  %v3577 = vand.u32 %v3576, 4294901760
  %3578 = vmatmul.mubr.f32.gmra.mrb[0].mxu0 %v3577
  %v3579 = vpop.f32.mrb[0].mxu0
  %v3580 = vadd.f32 %v3380, %v3579
  %v3581 = vpop.f32.mrb[0].mxu0
  %3582 = vmatprep.mubr.f32.mxu0 0.0
  %v3583 = vand.u32 %v3346, 4294901760
  %v3584 = vsub.f32 %v3346, %v3583
  %v3585 = vand.u32 %v3584, 4294901760
  %v3586 = vsub.f32 %v3584, %v3585
  %v3587 = vand.u32 %v3586, 4294901760
  %3588 = vmatmul.mubr.f32.gmra.mrb[0].mxu0 %v3587
  %v3589 = vpop.f32.mrb[0].mxu0
  %v3590 = vadd.f32 %v3380, %v3589
  %v3591 = vpop.f32.mrb[0].mxu0
  %3592 = vmatprep.mubr.f32.mxu0 0.0
  %v3593 = vand.u32 %v3347, 4294901760
  %v3594 = vsub.f32 %v3347, %v3593
  %v3595 = vand.u32 %v3594, 4294901760
  %v3596 = vsub.f32 %v3594, %v3595
  %v3597 = vand.u32 %v3596, 4294901760
  %3598 = vmatmul.mubr.f32.gmra.mrb[0].mxu0 %v3597
  %v3599 = vpop.f32.mrb[0].mxu0
  %v3600 = vadd.f32 %v3380, %v3599
  %v3601 = vpop.f32.mrb[0].mxu0
  %3602 = vmatprep.mubr.f32.mxu0 0.0
  %v3603 = vand.u32 %v3348, 4294901760
  %v3604 = vsub.f32 %v3348, %v3603
  %v3605 = vand.u32 %v3604, 4294901760
  %v3606 = vsub.f32 %v3604, %v3605
  %v3607 = vand.u32 %v3606, 4294901760
  %3608 = vmatmul.mubr.f32.gmra.mrb[0].mxu0 %v3607
  %v3609 = vpop.f32.mrb[0].mxu0
  %v3610 = vadd.f32 %v3380, %v3609
  %v3611 = vpop.f32.mrb[0].mxu0
  %3612 = vmatprep.mubr.f32.mxu0 0.0
  %v3613 = vand.u32 %v3349, 4294901760
  %v3614 = vsub.f32 %v3349, %v3613
  %v3615 = vand.u32 %v3614, 4294901760
  %v3616 = vsub.f32 %v3614, %v3615
  %v3617 = vand.u32 %v3616, 4294901760
  %3618 = vmatmul.mubr.f32.gmra.mrb[0].mxu0 %v3617
  %v3619 = vpop.f32.mrb[0].mxu0
  %v3620 = vadd.f32 %v3380, %v3619
  %v3621 = vpop.f32.mrb[0].mxu0
  %3622 = vmatprep.mubr.f32.mxu0 0.0
  %v3623 = vand.u32 %v3350, 4294901760
  %v3624 = vsub.f32 %v3350, %v3623
  %v3625 = vand.u32 %v3624, 4294901760
  %v3626 = vsub.f32 %v3624, %v3625
  %v3627 = vand.u32 %v3626, 4294901760
  %3628 = vmatmul.mubr.f32.gmra.mrb[0].mxu0 %v3627
  %v3629 = vpop.f32.mrb[0].mxu0
  %v3630 = vadd.f32 %v3380, %v3629
  %v3631 = vpop.f32.mrb[0].mxu0
  %3632 = vmatprep.mubr.f32.mxu0 0.0
  %v3633 = vand.u32 %v3351, 4294901760
  %v3634 = vsub.f32 %v3351, %v3633
  %v3635 = vand.u32 %v3634, 4294901760
  %v3636 = vsub.f32 %v3634, %v3635
  %v3637 = vand.u32 %v3636, 4294901760
  %3638 = vmatmul.mubr.f32.gmra.mrb[0].mxu0 %v3637
  %v3639 = vpop.f32.mrb[0].mxu0
  %v3640 = vadd.f32 %v3380, %v3639
  %v3641 = vpop.f32.mrb[0].mxu0
  %3642 = vmatprep.mubr.f32.mxu0 0.0
  %v3643 = vand.u32 %v3352, 4294901760
  %v3644 = vsub.f32 %v3352, %v3643
  %v3645 = vand.u32 %v3644, 4294901760
  %v3646 = vsub.f32 %v3644, %v3645
  %v3647 = vand.u32 %v3646, 4294901760
  %3648 = vmatmul.mubr.f32.gmra.mrb[0].mxu0 %v3647
  %v3649 = vpop.f32.mrb[0].mxu0
  %v3650 = vadd.f32 %v3380, %v3649
  %v3651 = vpop.f32.mrb[0].mxu0
  %3652 = vmatprep.mubr.f32.mxu0 0.0
  %v3653 = vand.u32 %v3353, 4294901760
  %v3654 = vsub.f32 %v3353, %v3653
  %v3655 = vand.u32 %v3654, 4294901760
  %v3656 = vsub.f32 %v3654, %v3655
  %v3657 = vand.u32 %v3656, 4294901760
  %3658 = vmatmul.mubr.f32.gmra.mrb[0].mxu0 %v3657
  %v3659 = vpop.f32.mrb[0].mxu0
  %v3660 = vadd.f32 %v3380, %v3659
  %v3661 = vpop.f32.mrb[0].mxu0
  %3662 = vmatprep.mubr.f32.mxu0 0.0
  %v3663 = vand.u32 %v3354, 4294901760
  %v3664 = vsub.f32 %v3354, %v3663
  %v3665 = vand.u32 %v3664, 4294901760
  %v3666 = vsub.f32 %v3664, %v3665
  %v3667 = vand.u32 %v3666, 4294901760
  %3668 = vmatmul.mubr.f32.gmra.mrb[0].mxu0 %v3667
  %v3669 = vpop.f32.mrb[0].mxu0
  %v3670 = vadd.f32 %v3380, %v3669
  %v3671 = vpop.f32.mrb[0].mxu0
  %3672 = vmatprep.mubr.f32.mxu0 0.0
  %v3673 = vand.u32 %v3355, 4294901760
  %v3674 = vsub.f32 %v3355, %v3673
  %v3675 = vand.u32 %v3674, 4294901760
  %v3676 = vsub.f32 %v3674, %v3675
  %v3677 = vand.u32 %v3676, 4294901760
  %3678 = vmatmul.mubr.f32.gmra.mrb[0].mxu0 %v3677
  %v3679 = vpop.f32.mrb[0].mxu0
  %v3680 = vadd.f32 %v3380, %v3679
  %v3681 = vpop.f32.mrb[0].mxu0
  %3682 = vmatprep.mubr.f32.mxu0 0.0
  %v3683 = vand.u32 %v3356, 4294901760
  %v3684 = vsub.f32 %v3356, %v3683
  %v3685 = vand.u32 %v3684, 4294901760
  %v3686 = vsub.f32 %v3684, %v3685
  %v3687 = vand.u32 %v3686, 4294901760
  %3688 = vmatmul.mubr.f32.gmra.mrb[0].mxu0 %v3687
  %v3689 = vpop.f32.mrb[0].mxu0
  %v3690 = vadd.f32 %v3380, %v3689
  %v3691 = vpop.f32.mrb[0].mxu0
  %3692 = vmatprep.mubr.f32.mxu0 0.0
  %v3693 = vand.u32 %v3357, 4294901760
  %v3694 = vsub.f32 %v3357, %v3693
  %v3695 = vand.u32 %v3694, 4294901760
  %v3696 = vsub.f32 %v3694, %v3695
  %v3697 = vand.u32 %v3696, 4294901760
  %3698 = vmatmul.mubr.f32.gmra.mrb[0].mxu0 %v3697
  %v3699 = vpop.f32.mrb[0].mxu0
  %v3700 = vadd.f32 %v3380, %v3699
  %v3701 = vpop.f32.mrb[0].mxu0
  %3702 = vmatprep.mubr.f32.mxu0 0.0
  %v3703 = vand.u32 %v3358, 4294901760
  %v3704 = vsub.f32 %v3358, %v3703
  %v3705 = vand.u32 %v3704, 4294901760
  %v3706 = vsub.f32 %v3704, %v3705
  %v3707 = vand.u32 %v3706, 4294901760
  %3708 = vmatmul.mubr.f32.gmra.mrb[0].mxu0 %v3707
  %v3709 = vpop.f32.mrb[0].mxu0
  %v3710 = vadd.f32 %v3380, %v3709
  %v3711 = vpop.f32.mrb[0].mxu0
  %3712 = vdwg.mxu0
  %3713 = vmatprep.subr.mxu0 0.0
  %v3714 = vand.u32 %v3359, 4294901760
  %v3715 = vsub.f32 %v3359, %v3714
  %v3716 = vand.u32 %v3715, 4294901760
  %v3717 = vsub.f32 %v3715, %v3716
  %v3718 = vand.u32 %v3717, 4294901760
  %3719 = vmatpush1.msra.mxu0 %v3718
  %3720 = vmatprep.subr.mxu0 0.0
  %v3721 = vand.u32 %v3360, 4294901760
  %v3722 = vsub.f32 %v3360, %v3721
  %v3723 = vand.u32 %v3722, 4294901760
  %v3724 = vsub.f32 %v3722, %v3723
  %v3725 = vand.u32 %v3724, 4294901760
  %3726 = vmatpush1.msra.mxu0 %v3725
  %3727 = vmatprep.subr.mxu0 0.0
  %v3728 = vand.u32 %v3361, 4294901760
  %v3729 = vsub.f32 %v3361, %v3728
  %v3730 = vand.u32 %v3729, 4294901760
  %v3731 = vsub.f32 %v3729, %v3730
  %v3732 = vand.u32 %v3731, 4294901760
  %3733 = vmatpush1.msra.mxu0 %v3732
  %3734 = vmatprep.subr.mxu0 0.0
  %v3735 = vand.u32 %v3362, 4294901760
  %v3736 = vsub.f32 %v3362, %v3735
  %v3737 = vand.u32 %v3736, 4294901760
  %v3738 = vsub.f32 %v3736, %v3737
  %v3739 = vand.u32 %v3738, 4294901760
  %3740 = vmatpush1.msra.mxu0 %v3739
  %3741 = vmatprep.subr.mxu0 0.0
  %v3742 = vand.u32 %v3363, 4294901760
  %v3743 = vsub.f32 %v3363, %v3742
  %v3744 = vand.u32 %v3743, 4294901760
  %v3745 = vsub.f32 %v3743, %v3744
  %v3746 = vand.u32 %v3745, 4294901760
  %3747 = vmatpush1.msra.mxu0 %v3746
  %3748 = vmatprep.subr.mxu0 0.0
  %v3749 = vand.u32 %v3364, 4294901760
  %v3750 = vsub.f32 %v3364, %v3749
  %v3751 = vand.u32 %v3750, 4294901760
  %v3752 = vsub.f32 %v3750, %v3751
  %v3753 = vand.u32 %v3752, 4294901760
  %3754 = vmatpush1.msra.mxu0 %v3753
  %3755 = vmatprep.subr.mxu0 0.0
  %v3756 = vand.u32 %v3365, 4294901760
  %v3757 = vsub.f32 %v3365, %v3756
  %v3758 = vand.u32 %v3757, 4294901760
  %v3759 = vsub.f32 %v3757, %v3758
  %v3760 = vand.u32 %v3759, 4294901760
  %3761 = vmatpush1.msra.mxu0 %v3760
  %3762 = vmatprep.subr.mxu0 0.0
  %v3763 = vand.u32 %v3366, 4294901760
  %v3764 = vsub.f32 %v3366, %v3763
  %v3765 = vand.u32 %v3764, 4294901760
  %v3766 = vsub.f32 %v3764, %v3765
  %v3767 = vand.u32 %v3766, 4294901760
  %3768 = vmatpush1.msra.mxu0 %v3767
  %3769 = vmatprep.subr.mxu0 0.0
  %v3770 = vand.u32 %v3367, 4294901760
  %v3771 = vsub.f32 %v3367, %v3770
  %v3772 = vand.u32 %v3771, 4294901760
  %v3773 = vsub.f32 %v3771, %v3772
  %v3774 = vand.u32 %v3773, 4294901760
  %3775 = vmatpush1.msra.mxu0 %v3774
  %3776 = vmatprep.subr.mxu0 0.0
  %v3777 = vand.u32 %v3368, 4294901760
  %v3778 = vsub.f32 %v3368, %v3777
  %v3779 = vand.u32 %v3778, 4294901760
  %v3780 = vsub.f32 %v3778, %v3779
  %v3781 = vand.u32 %v3780, 4294901760
  %3782 = vmatpush1.msra.mxu0 %v3781
  %3783 = vmatprep.subr.mxu0 0.0
  %v3784 = vand.u32 %v3369, 4294901760
  %v3785 = vsub.f32 %v3369, %v3784
  %v3786 = vand.u32 %v3785, 4294901760
  %v3787 = vsub.f32 %v3785, %v3786
  %v3788 = vand.u32 %v3787, 4294901760
  %3789 = vmatpush1.msra.mxu0 %v3788
  %3790 = vmatprep.subr.mxu0 0.0
  %v3791 = vand.u32 %v3370, 4294901760
  %v3792 = vsub.f32 %v3370, %v3791
  %v3793 = vand.u32 %v3792, 4294901760
  %v3794 = vsub.f32 %v3792, %v3793
  %v3795 = vand.u32 %v3794, 4294901760
  %3796 = vmatpush1.msra.mxu0 %v3795
  %3797 = vmatprep.subr.mxu0 0.0
  %v3798 = vand.u32 %v3371, 4294901760
  %v3799 = vsub.f32 %v3371, %v3798
  %v3800 = vand.u32 %v3799, 4294901760
  %v3801 = vsub.f32 %v3799, %v3800
  %v3802 = vand.u32 %v3801, 4294901760
  %3803 = vmatpush1.msra.mxu0 %v3802
  %3804 = vmatprep.subr.mxu0 0.0
  %v3805 = vand.u32 %v3372, 4294901760
  %v3806 = vsub.f32 %v3372, %v3805
  %v3807 = vand.u32 %v3806, 4294901760
  %v3808 = vsub.f32 %v3806, %v3807
  %v3809 = vand.u32 %v3808, 4294901760
  %3810 = vmatpush1.msra.mxu0 %v3809
  %3811 = vmatprep.subr.mxu0 0.0
  %v3812 = vand.u32 %v3373, 4294901760
  %v3813 = vsub.f32 %v3373, %v3812
  %v3814 = vand.u32 %v3813, 4294901760
  %v3815 = vsub.f32 %v3813, %v3814
  %v3816 = vand.u32 %v3815, 4294901760
  %3817 = vmatpush1.msra.mxu0 %v3816
  %3818 = vmatprep.subr.mxu0 0.0
  %v3819 = vand.u32 %v3374, 4294901760
  %v3820 = vsub.f32 %v3374, %v3819
  %v3821 = vand.u32 %v3820, 4294901760
  %v3822 = vsub.f32 %v3820, %v3821
  %v3823 = vand.u32 %v3822, 4294901760
  %3824 = vmatpush1.msra.mxu0 %v3823
  %3825 = vmatprep.subr.mxu0 0.0
  %3826 = vmatpush1.msra.mxu0 0.0
  %3827 = vmatprep.subr.mxu0 0.0
  %3828 = vmatpush1.msra.mxu0 0.0
  %3829 = vmatprep.subr.mxu0 0.0
  %3830 = vmatpush1.msra.mxu0 0.0
  %3831 = vmatprep.subr.mxu0 0.0
  %3832 = vmatpush1.msra.mxu0 0.0
  %3833 = vmatprep.subr.mxu0 0.0
  %3834 = vmatpush1.msra.mxu0 0.0
  %3835 = vmatprep.subr.mxu0 0.0
  %3836 = vmatpush1.msra.mxu0 0.0
  %3837 = vmatprep.subr.mxu0 0.0
  %3838 = vmatpush1.msra.mxu0 0.0
  %3839 = vmatprep.subr.mxu0 0.0
  %3840 = vmatpush1.msra.mxu0 0.0
  %3841 = vmatprep.subr.mxu0 0.0
  %3842 = vmatpush1.msra.mxu0 0.0
  %3843 = vmatprep.subr.mxu0 0.0
  %3844 = vmatpush1.msra.mxu0 0.0
  %3845 = vmatprep.subr.mxu0 0.0
  %3846 = vmatpush1.msra.mxu0 0.0
  %3847 = vmatprep.subr.mxu0 0.0
  %3848 = vmatpush1.msra.mxu0 0.0
  %3849 = vmatprep.subr.mxu0 0.0
  %3850 = vmatpush1.msra.mxu0 0.0
  %3851 = vmatprep.subr.mxu0 0.0
  %3852 = vmatpush1.msra.mxu0 0.0
  %3853 = vmatprep.subr.mxu0 0.0
  %3854 = vmatpush1.msra.mxu0 0.0
  %3855 = vmatprep.subr.mxu0 0.0
  %3856 = vmatpush1.msra.mxu0 0.0
  %3857 = vmatprep.mubr.f32.mxu0 0.0
  %v3858 = vand.u32 %v3334, 4294901760
  %3859 = vmatmul.mubr.f32.gmra.mrb[0].mxu0 %v3858
  %v3860 = vpop.f32.mrb[0].mxu0
  %v3861 = vadd.f32 %v3470, %v3860
  %v3862 = vpop.f32.mrb[0].mxu0
  %3863 = vmatprep.mubr.f32.mxu0 0.0
  %v3864 = vand.u32 %v3335, 4294901760
  %3865 = vmatmul.mubr.f32.gmra.mrb[0].mxu0 %v3864
  %v3866 = vpop.f32.mrb[0].mxu0
  %v3867 = vadd.f32 %v3480, %v3866
  %v3868 = vpop.f32.mrb[0].mxu0
  %3869 = vmatprep.mubr.f32.mxu0 0.0
  %v3870 = vand.u32 %v3336, 4294901760
  %3871 = vmatmul.mubr.f32.gmra.mrb[0].mxu0 %v3870
  %v3872 = vpop.f32.mrb[0].mxu0
  %v3873 = vadd.f32 %v3490, %v3872
  %v3874 = vpop.f32.mrb[0].mxu0
  %3875 = vmatprep.mubr.f32.mxu0 0.0
  %v3876 = vand.u32 %v3337, 4294901760
  %3877 = vmatmul.mubr.f32.gmra.mrb[0].mxu0 %v3876
  %v3878 = vpop.f32.mrb[0].mxu0
  %v3879 = vadd.f32 %v3500, %v3878
  %v3880 = vpop.f32.mrb[0].mxu0
  %3881 = vmatprep.mubr.f32.mxu0 0.0
  %v3882 = vand.u32 %v3338, 4294901760
  %3883 = vmatmul.mubr.f32.gmra.mrb[0].mxu0 %v3882
  %v3884 = vpop.f32.mrb[0].mxu0
  %v3885 = vadd.f32 %v3510, %v3884
  %v3886 = vpop.f32.mrb[0].mxu0
  %3887 = vmatprep.mubr.f32.mxu0 0.0
  %v3888 = vand.u32 %v3339, 4294901760
  %3889 = vmatmul.mubr.f32.gmra.mrb[0].mxu0 %v3888
  %v3890 = vpop.f32.mrb[0].mxu0
  %v3891 = vadd.f32 %v3520, %v3890
  %v3892 = vpop.f32.mrb[0].mxu0
  %3893 = vmatprep.mubr.f32.mxu0 0.0
  %v3894 = vand.u32 %v3340, 4294901760
  %3895 = vmatmul.mubr.f32.gmra.mrb[0].mxu0 %v3894
  %v3896 = vpop.f32.mrb[0].mxu0
  %v3897 = vadd.f32 %v3530, %v3896
  %v3898 = vpop.f32.mrb[0].mxu0
  %3899 = vmatprep.mubr.f32.mxu0 0.0
  %v3900 = vand.u32 %v3341, 4294901760
  %3901 = vmatmul.mubr.f32.gmra.mrb[0].mxu0 %v3900
  %v3902 = vpop.f32.mrb[0].mxu0
  %v3903 = vadd.f32 %v3540, %v3902
  %v3904 = vpop.f32.mrb[0].mxu0
  %3905 = vmatprep.mubr.f32.mxu0 0.0
  %v3906 = vand.u32 %v3342, 4294901760
  %3907 = vmatmul.mubr.f32.gmra.mrb[0].mxu0 %v3906
  %v3908 = vpop.f32.mrb[0].mxu0
  %v3909 = vadd.f32 %v3550, %v3908
  %v3910 = vpop.f32.mrb[0].mxu0
  %3911 = vmatprep.mubr.f32.mxu0 0.0
  %v3912 = vand.u32 %v3343, 4294901760
  %3913 = vmatmul.mubr.f32.gmra.mrb[0].mxu0 %v3912
  %v3914 = vpop.f32.mrb[0].mxu0
  %v3915 = vadd.f32 %v3560, %v3914
  %v3916 = vpop.f32.mrb[0].mxu0
  %3917 = vmatprep.mubr.f32.mxu0 0.0
  %v3918 = vand.u32 %v3344, 4294901760
  %3919 = vmatmul.mubr.f32.gmra.mrb[0].mxu0 %v3918
  %v3920 = vpop.f32.mrb[0].mxu0
  %v3921 = vadd.f32 %v3570, %v3920
  %v3922 = vpop.f32.mrb[0].mxu0
  %3923 = vmatprep.mubr.f32.mxu0 0.0
  %v3924 = vand.u32 %v3345, 4294901760
  %3925 = vmatmul.mubr.f32.gmra.mrb[0].mxu0 %v3924
  %v3926 = vpop.f32.mrb[0].mxu0
  %v3927 = vadd.f32 %v3580, %v3926
  %v3928 = vpop.f32.mrb[0].mxu0
  %3929 = vmatprep.mubr.f32.mxu0 0.0
  %v3930 = vand.u32 %v3346, 4294901760
  %3931 = vmatmul.mubr.f32.gmra.mrb[0].mxu0 %v3930
  %v3932 = vpop.f32.mrb[0].mxu0
  %v3933 = vadd.f32 %v3590, %v3932
  %v3934 = vpop.f32.mrb[0].mxu0
  %3935 = vmatprep.mubr.f32.mxu0 0.0
  %v3936 = vand.u32 %v3347, 4294901760
  %3937 = vmatmul.mubr.f32.gmra.mrb[0].mxu0 %v3936
  %v3938 = vpop.f32.mrb[0].mxu0
  %v3939 = vadd.f32 %v3600, %v3938
  %v3940 = vpop.f32.mrb[0].mxu0
  %3941 = vmatprep.mubr.f32.mxu0 0.0
  %v3942 = vand.u32 %v3348, 4294901760
  %3943 = vmatmul.mubr.f32.gmra.mrb[0].mxu0 %v3942
  %v3944 = vpop.f32.mrb[0].mxu0
  %v3945 = vadd.f32 %v3610, %v3944
  %v3946 = vpop.f32.mrb[0].mxu0
  %3947 = vmatprep.mubr.f32.mxu0 0.0
  %v3948 = vand.u32 %v3349, 4294901760
  %3949 = vmatmul.mubr.f32.gmra.mrb[0].mxu0 %v3948
  %v3950 = vpop.f32.mrb[0].mxu0
  %v3951 = vadd.f32 %v3620, %v3950
  %v3952 = vpop.f32.mrb[0].mxu0
  %3953 = vmatprep.mubr.f32.mxu0 0.0
  %v3954 = vand.u32 %v3350, 4294901760
  %3955 = vmatmul.mubr.f32.gmra.mrb[0].mxu0 %v3954
  %v3956 = vpop.f32.mrb[0].mxu0
  %v3957 = vadd.f32 %v3630, %v3956
  %v3958 = vpop.f32.mrb[0].mxu0
  %3959 = vmatprep.mubr.f32.mxu0 0.0
  %v3960 = vand.u32 %v3351, 4294901760
  %3961 = vmatmul.mubr.f32.gmra.mrb[0].mxu0 %v3960
  %v3962 = vpop.f32.mrb[0].mxu0
  %v3963 = vadd.f32 %v3640, %v3962
  %v3964 = vpop.f32.mrb[0].mxu0
  %3965 = vmatprep.mubr.f32.mxu0 0.0
  %v3966 = vand.u32 %v3352, 4294901760
  %3967 = vmatmul.mubr.f32.gmra.mrb[0].mxu0 %v3966
  %v3968 = vpop.f32.mrb[0].mxu0
  %v3969 = vadd.f32 %v3650, %v3968
  %v3970 = vpop.f32.mrb[0].mxu0
  %3971 = vmatprep.mubr.f32.mxu0 0.0
  %v3972 = vand.u32 %v3353, 4294901760
  %3973 = vmatmul.mubr.f32.gmra.mrb[0].mxu0 %v3972
  %v3974 = vpop.f32.mrb[0].mxu0
  %v3975 = vadd.f32 %v3660, %v3974
  %v3976 = vpop.f32.mrb[0].mxu0
  %3977 = vmatprep.mubr.f32.mxu0 0.0
  %v3978 = vand.u32 %v3354, 4294901760
  %3979 = vmatmul.mubr.f32.gmra.mrb[0].mxu0 %v3978
  %v3980 = vpop.f32.mrb[0].mxu0
  %v3981 = vadd.f32 %v3670, %v3980
  %v3982 = vpop.f32.mrb[0].mxu0
  %3983 = vmatprep.mubr.f32.mxu0 0.0
  %v3984 = vand.u32 %v3355, 4294901760
  %3985 = vmatmul.mubr.f32.gmra.mrb[0].mxu0 %v3984
  %v3986 = vpop.f32.mrb[0].mxu0
  %v3987 = vadd.f32 %v3680, %v3986
  %v3988 = vpop.f32.mrb[0].mxu0
  %3989 = vmatprep.mubr.f32.mxu0 0.0
  %v3990 = vand.u32 %v3356, 4294901760
  %3991 = vmatmul.mubr.f32.gmra.mrb[0].mxu0 %v3990
  %v3992 = vpop.f32.mrb[0].mxu0
  %v3993 = vadd.f32 %v3690, %v3992
  %v3994 = vpop.f32.mrb[0].mxu0
  %3995 = vmatprep.mubr.f32.mxu0 0.0
  %v3996 = vand.u32 %v3357, 4294901760
  %3997 = vmatmul.mubr.f32.gmra.mrb[0].mxu0 %v3996
  %v3998 = vpop.f32.mrb[0].mxu0
  %v3999 = vadd.f32 %v3700, %v3998
  %v4000 = vpop.f32.mrb[0].mxu0
  %4001 = vmatprep.mubr.f32.mxu0 0.0
  %v4002 = vand.u32 %v3358, 4294901760
  %4003 = vmatmul.mubr.f32.gmra.mrb[0].mxu0 %v4002
  %v4004 = vpop.f32.mrb[0].mxu0
  %v4005 = vadd.f32 %v3710, %v4004
  %v4006 = vpop.f32.mrb[0].mxu0
  %4007 = vdwg.mxu0
  %4008 = vmatprep.subr.mxu0 0.0
  %v4009 = vand.u32 %v3359, 4294901760
  %v4010 = vsub.f32 %v3359, %v4009
  %4011 = vmatpush1.msra.mxu0 %v4010
  %4012 = vmatprep.subr.mxu0 0.0
  %v4013 = vand.u32 %v3360, 4294901760
  %v4014 = vsub.f32 %v3360, %v4013
  %4015 = vmatpush1.msra.mxu0 %v4014
  %4016 = vmatprep.subr.mxu0 0.0
  %v4017 = vand.u32 %v3361, 4294901760
  %v4018 = vsub.f32 %v3361, %v4017
  %4019 = vmatpush1.msra.mxu0 %v4018
  %4020 = vmatprep.subr.mxu0 0.0
  %v4021 = vand.u32 %v3362, 4294901760
  %v4022 = vsub.f32 %v3362, %v4021
  %4023 = vmatpush1.msra.mxu0 %v4022
  %4024 = vmatprep.subr.mxu0 0.0
  %v4025 = vand.u32 %v3363, 4294901760
  %v4026 = vsub.f32 %v3363, %v4025
  %4027 = vmatpush1.msra.mxu0 %v4026
  %4028 = vmatprep.subr.mxu0 0.0
  %v4029 = vand.u32 %v3364, 4294901760
  %v4030 = vsub.f32 %v3364, %v4029
  %4031 = vmatpush1.msra.mxu0 %v4030
  %4032 = vmatprep.subr.mxu0 0.0
  %v4033 = vand.u32 %v3365, 4294901760
  %v4034 = vsub.f32 %v3365, %v4033
  %4035 = vmatpush1.msra.mxu0 %v4034
  %4036 = vmatprep.subr.mxu0 0.0
  %v4037 = vand.u32 %v3366, 4294901760
  %v4038 = vsub.f32 %v3366, %v4037
  %4039 = vmatpush1.msra.mxu0 %v4038
  %4040 = vmatprep.subr.mxu0 0.0
  %v4041 = vand.u32 %v3367, 4294901760
  %v4042 = vsub.f32 %v3367, %v4041
  %4043 = vmatpush1.msra.mxu0 %v4042
  %4044 = vmatprep.subr.mxu0 0.0
  %v4045 = vand.u32 %v3368, 4294901760
  %v4046 = vsub.f32 %v3368, %v4045
  %4047 = vmatpush1.msra.mxu0 %v4046
  %4048 = vmatprep.subr.mxu0 0.0
  %v4049 = vand.u32 %v3369, 4294901760
  %v4050 = vsub.f32 %v3369, %v4049
  %4051 = vmatpush1.msra.mxu0 %v4050
  %4052 = vmatprep.subr.mxu0 0.0
  %v4053 = vand.u32 %v3370, 4294901760
  %v4054 = vsub.f32 %v3370, %v4053
  %4055 = vmatpush1.msra.mxu0 %v4054
  %4056 = vmatprep.subr.mxu0 0.0
  %v4057 = vand.u32 %v3371, 4294901760
  %v4058 = vsub.f32 %v3371, %v4057
  %4059 = vmatpush1.msra.mxu0 %v4058
  %4060 = vmatprep.subr.mxu0 0.0
  %v4061 = vand.u32 %v3372, 4294901760
  %v4062 = vsub.f32 %v3372, %v4061
  %4063 = vmatpush1.msra.mxu0 %v4062
  %4064 = vmatprep.subr.mxu0 0.0
  %v4065 = vand.u32 %v3373, 4294901760
  %v4066 = vsub.f32 %v3373, %v4065
  %4067 = vmatpush1.msra.mxu0 %v4066
  %4068 = vmatprep.subr.mxu0 0.0
  %v4069 = vand.u32 %v3374, 4294901760
  %v4070 = vsub.f32 %v3374, %v4069
  %4071 = vmatpush1.msra.mxu0 %v4070
  %4072 = vmatprep.subr.mxu0 0.0
  %4073 = vmatpush1.msra.mxu0 0.0
  %4074 = vmatprep.subr.mxu0 0.0
  %4075 = vmatpush1.msra.mxu0 0.0
  %4076 = vmatprep.subr.mxu0 0.0
  %4077 = vmatpush1.msra.mxu0 0.0
  %4078 = vmatprep.subr.mxu0 0.0
  %4079 = vmatpush1.msra.mxu0 0.0
  %4080 = vmatprep.subr.mxu0 0.0
  %4081 = vmatpush1.msra.mxu0 0.0
  %4082 = vmatprep.subr.mxu0 0.0
  %4083 = vmatpush1.msra.mxu0 0.0
  %4084 = vmatprep.subr.mxu0 0.0
  %4085 = vmatpush1.msra.mxu0 0.0
  %4086 = vmatprep.subr.mxu0 0.0
  %4087 = vmatpush1.msra.mxu0 0.0
  %4088 = vmatprep.subr.mxu0 0.0
  %4089 = vmatpush1.msra.mxu0 0.0
  %4090 = vmatprep.subr.mxu0 0.0
  %4091 = vmatpush1.msra.mxu0 0.0
  %4092 = vmatprep.subr.mxu0 0.0
  %4093 = vmatpush1.msra.mxu0 0.0
  %4094 = vmatprep.subr.mxu0 0.0
  %4095 = vmatpush1.msra.mxu0 0.0
  %4096 = vmatprep.subr.mxu0 0.0
  %4097 = vmatpush1.msra.mxu0 0.0
  %4098 = vmatprep.subr.mxu0 0.0
  %4099 = vmatpush1.msra.mxu0 0.0
  %4100 = vmatprep.subr.mxu0 0.0
  %4101 = vmatpush1.msra.mxu0 0.0
  %4102 = vmatprep.subr.mxu0 0.0
  %4103 = vmatpush1.msra.mxu0 0.0
  %4104 = vmatprep.mubr.f32.mxu0 0.0
  %v4105 = vand.u32 %v3334, 4294901760
  %v4106 = vsub.f32 %v3334, %v4105
  %4107 = vmatmul.mubr.f32.gmra.mrb[0].mxu0 %v4106
  %v4108 = vpop.f32.mrb[0].mxu0
  %v4109 = vadd.f32 %v3861, %v4108
  %v4110 = vpop.f32.mrb[0].mxu0
  %4111 = vmatprep.mubr.f32.mxu0 0.0
  %v4112 = vand.u32 %v3335, 4294901760
  %v4113 = vsub.f32 %v3335, %v4112
  %4114 = vmatmul.mubr.f32.gmra.mrb[0].mxu0 %v4113
  %v4115 = vpop.f32.mrb[0].mxu0
  %v4116 = vadd.f32 %v3867, %v4115
  %v4117 = vpop.f32.mrb[0].mxu0
  %4118 = vmatprep.mubr.f32.mxu0 0.0
  %v4119 = vand.u32 %v3336, 4294901760
  %v4120 = vsub.f32 %v3336, %v4119
  %4121 = vmatmul.mubr.f32.gmra.mrb[0].mxu0 %v4120
  %v4122 = vpop.f32.mrb[0].mxu0
  %v4123 = vadd.f32 %v3873, %v4122
  %v4124 = vpop.f32.mrb[0].mxu0
  %4125 = vmatprep.mubr.f32.mxu0 0.0
  %v4126 = vand.u32 %v3337, 4294901760
  %v4127 = vsub.f32 %v3337, %v4126
  %4128 = vmatmul.mubr.f32.gmra.mrb[0].mxu0 %v4127
  %v4129 = vpop.f32.mrb[0].mxu0
  %v4130 = vadd.f32 %v3879, %v4129
  %v4131 = vpop.f32.mrb[0].mxu0
  %4132 = vmatprep.mubr.f32.mxu0 0.0
  %v4133 = vand.u32 %v3338, 4294901760
  %v4134 = vsub.f32 %v3338, %v4133
  %4135 = vmatmul.mubr.f32.gmra.mrb[0].mxu0 %v4134
  %v4136 = vpop.f32.mrb[0].mxu0
  %v4137 = vadd.f32 %v3885, %v4136
  %v4138 = vpop.f32.mrb[0].mxu0
  %4139 = vmatprep.mubr.f32.mxu0 0.0
  %v4140 = vand.u32 %v3339, 4294901760
  %v4141 = vsub.f32 %v3339, %v4140
  %4142 = vmatmul.mubr.f32.gmra.mrb[0].mxu0 %v4141
  %v4143 = vpop.f32.mrb[0].mxu0
  %v4144 = vadd.f32 %v3891, %v4143
  %v4145 = vpop.f32.mrb[0].mxu0
  %4146 = vmatprep.mubr.f32.mxu0 0.0
  %v4147 = vand.u32 %v3340, 4294901760
  %v4148 = vsub.f32 %v3340, %v4147
  %4149 = vmatmul.mubr.f32.gmra.mrb[0].mxu0 %v4148
  %v4150 = vpop.f32.mrb[0].mxu0
  %v4151 = vadd.f32 %v3897, %v4150
  %v4152 = vpop.f32.mrb[0].mxu0
  %4153 = vmatprep.mubr.f32.mxu0 0.0
  %v4154 = vand.u32 %v3341, 4294901760
  %v4155 = vsub.f32 %v3341, %v4154
  %4156 = vmatmul.mubr.f32.gmra.mrb[0].mxu0 %v4155
  %v4157 = vpop.f32.mrb[0].mxu0
  %v4158 = vadd.f32 %v3903, %v4157
  %v4159 = vpop.f32.mrb[0].mxu0
  %4160 = vmatprep.mubr.f32.mxu0 0.0
  %v4161 = vand.u32 %v3342, 4294901760
  %v4162 = vsub.f32 %v3342, %v4161
  %4163 = vmatmul.mubr.f32.gmra.mrb[0].mxu0 %v4162
  %v4164 = vpop.f32.mrb[0].mxu0
  %v4165 = vadd.f32 %v3909, %v4164
  %v4166 = vpop.f32.mrb[0].mxu0
  %4167 = vmatprep.mubr.f32.mxu0 0.0
  %v4168 = vand.u32 %v3343, 4294901760
  %v4169 = vsub.f32 %v3343, %v4168
  %4170 = vmatmul.mubr.f32.gmra.mrb[0].mxu0 %v4169
  %v4171 = vpop.f32.mrb[0].mxu0
  %v4172 = vadd.f32 %v3915, %v4171
  %v4173 = vpop.f32.mrb[0].mxu0
  %4174 = vmatprep.mubr.f32.mxu0 0.0
  %v4175 = vand.u32 %v3344, 4294901760
  %v4176 = vsub.f32 %v3344, %v4175
  %4177 = vmatmul.mubr.f32.gmra.mrb[0].mxu0 %v4176
  %v4178 = vpop.f32.mrb[0].mxu0
  %v4179 = vadd.f32 %v3921, %v4178
  %v4180 = vpop.f32.mrb[0].mxu0
  %4181 = vmatprep.mubr.f32.mxu0 0.0
  %v4182 = vand.u32 %v3345, 4294901760
  %v4183 = vsub.f32 %v3345, %v4182
  %4184 = vmatmul.mubr.f32.gmra.mrb[0].mxu0 %v4183
  %v4185 = vpop.f32.mrb[0].mxu0
  %v4186 = vadd.f32 %v3927, %v4185
  %v4187 = vpop.f32.mrb[0].mxu0
  %4188 = vmatprep.mubr.f32.mxu0 0.0
  %v4189 = vand.u32 %v3346, 4294901760
  %v4190 = vsub.f32 %v3346, %v4189
  %4191 = vmatmul.mubr.f32.gmra.mrb[0].mxu0 %v4190
  %v4192 = vpop.f32.mrb[0].mxu0
  %v4193 = vadd.f32 %v3933, %v4192
  %v4194 = vpop.f32.mrb[0].mxu0
  %4195 = vmatprep.mubr.f32.mxu0 0.0
  %v4196 = vand.u32 %v3347, 4294901760
  %v4197 = vsub.f32 %v3347, %v4196
  %4198 = vmatmul.mubr.f32.gmra.mrb[0].mxu0 %v4197
  %v4199 = vpop.f32.mrb[0].mxu0
  %v4200 = vadd.f32 %v3939, %v4199
  %v4201 = vpop.f32.mrb[0].mxu0
  %4202 = vmatprep.mubr.f32.mxu0 0.0
  %v4203 = vand.u32 %v3348, 4294901760
  %v4204 = vsub.f32 %v3348, %v4203
  %4205 = vmatmul.mubr.f32.gmra.mrb[0].mxu0 %v4204
  %v4206 = vpop.f32.mrb[0].mxu0
  %v4207 = vadd.f32 %v3945, %v4206
  %v4208 = vpop.f32.mrb[0].mxu0
  %4209 = vmatprep.mubr.f32.mxu0 0.0
  %v4210 = vand.u32 %v3349, 4294901760
  %v4211 = vsub.f32 %v3349, %v4210
  %4212 = vmatmul.mubr.f32.gmra.mrb[0].mxu0 %v4211
  %v4213 = vpop.f32.mrb[0].mxu0
  %v4214 = vadd.f32 %v3951, %v4213
  %v4215 = vpop.f32.mrb[0].mxu0
  %4216 = vmatprep.mubr.f32.mxu0 0.0
  %v4217 = vand.u32 %v3350, 4294901760
  %v4218 = vsub.f32 %v3350, %v4217
  %4219 = vmatmul.mubr.f32.gmra.mrb[0].mxu0 %v4218
  %v4220 = vpop.f32.mrb[0].mxu0
  %v4221 = vadd.f32 %v3957, %v4220
  %v4222 = vpop.f32.mrb[0].mxu0
  %4223 = vmatprep.mubr.f32.mxu0 0.0
  %v4224 = vand.u32 %v3351, 4294901760
  %v4225 = vsub.f32 %v3351, %v4224
  %4226 = vmatmul.mubr.f32.gmra.mrb[0].mxu0 %v4225
  %v4227 = vpop.f32.mrb[0].mxu0
  %v4228 = vadd.f32 %v3963, %v4227
  %v4229 = vpop.f32.mrb[0].mxu0
  %4230 = vmatprep.mubr.f32.mxu0 0.0
  %v4231 = vand.u32 %v3352, 4294901760
  %v4232 = vsub.f32 %v3352, %v4231
  %4233 = vmatmul.mubr.f32.gmra.mrb[0].mxu0 %v4232
  %v4234 = vpop.f32.mrb[0].mxu0
  %v4235 = vadd.f32 %v3969, %v4234
  %v4236 = vpop.f32.mrb[0].mxu0
  %4237 = vmatprep.mubr.f32.mxu0 0.0
  %v4238 = vand.u32 %v3353, 4294901760
  %v4239 = vsub.f32 %v3353, %v4238
  %4240 = vmatmul.mubr.f32.gmra.mrb[0].mxu0 %v4239
  %v4241 = vpop.f32.mrb[0].mxu0
  %v4242 = vadd.f32 %v3975, %v4241
  %v4243 = vpop.f32.mrb[0].mxu0
  %4244 = vmatprep.mubr.f32.mxu0 0.0
  %v4245 = vand.u32 %v3354, 4294901760
  %v4246 = vsub.f32 %v3354, %v4245
  %4247 = vmatmul.mubr.f32.gmra.mrb[0].mxu0 %v4246
  %v4248 = vpop.f32.mrb[0].mxu0
  %v4249 = vadd.f32 %v3981, %v4248
  %v4250 = vpop.f32.mrb[0].mxu0
  %4251 = vmatprep.mubr.f32.mxu0 0.0
  %v4252 = vand.u32 %v3355, 4294901760
  %v4253 = vsub.f32 %v3355, %v4252
  %4254 = vmatmul.mubr.f32.gmra.mrb[0].mxu0 %v4253
  %v4255 = vpop.f32.mrb[0].mxu0
  %v4256 = vadd.f32 %v3987, %v4255
  %v4257 = vpop.f32.mrb[0].mxu0
  %4258 = vmatprep.mubr.f32.mxu0 0.0
  %v4259 = vand.u32 %v3356, 4294901760
  %v4260 = vsub.f32 %v3356, %v4259
  %4261 = vmatmul.mubr.f32.gmra.mrb[0].mxu0 %v4260
  %v4262 = vpop.f32.mrb[0].mxu0
  %v4263 = vadd.f32 %v3993, %v4262
  %v4264 = vpop.f32.mrb[0].mxu0
  %4265 = vmatprep.mubr.f32.mxu0 0.0
  %v4266 = vand.u32 %v3357, 4294901760
  %v4267 = vsub.f32 %v3357, %v4266
  %4268 = vmatmul.mubr.f32.gmra.mrb[0].mxu0 %v4267
  %v4269 = vpop.f32.mrb[0].mxu0
  %v4270 = vadd.f32 %v3999, %v4269
  %v4271 = vpop.f32.mrb[0].mxu0
  %4272 = vmatprep.mubr.f32.mxu0 0.0
  %v4273 = vand.u32 %v3358, 4294901760
  %v4274 = vsub.f32 %v3358, %v4273
  %4275 = vmatmul.mubr.f32.gmra.mrb[0].mxu0 %v4274
  %v4276 = vpop.f32.mrb[0].mxu0
  %v4277 = vadd.f32 %v4005, %v4276
  %v4278 = vpop.f32.mrb[0].mxu0
  %4279 = vdwg.mxu0
  %4280 = vmatprep.subr.mxu0 0.0
  %v4281 = vand.u32 %v3359, 4294901760
  %4282 = vmatpush1.msra.mxu0 %v4281
  %4283 = vmatprep.subr.mxu0 0.0
  %v4284 = vand.u32 %v3360, 4294901760
  %4285 = vmatpush1.msra.mxu0 %v4284
  %4286 = vmatprep.subr.mxu0 0.0
  %v4287 = vand.u32 %v3361, 4294901760
  %4288 = vmatpush1.msra.mxu0 %v4287
  %4289 = vmatprep.subr.mxu0 0.0
  %v4290 = vand.u32 %v3362, 4294901760
  %4291 = vmatpush1.msra.mxu0 %v4290
  %4292 = vmatprep.subr.mxu0 0.0
  %v4293 = vand.u32 %v3363, 4294901760
  %4294 = vmatpush1.msra.mxu0 %v4293
  %4295 = vmatprep.subr.mxu0 0.0
  %v4296 = vand.u32 %v3364, 4294901760
  %4297 = vmatpush1.msra.mxu0 %v4296
  %4298 = vmatprep.subr.mxu0 0.0
  %v4299 = vand.u32 %v3365, 4294901760
  %4300 = vmatpush1.msra.mxu0 %v4299
  %4301 = vmatprep.subr.mxu0 0.0
  %v4302 = vand.u32 %v3366, 4294901760
  %4303 = vmatpush1.msra.mxu0 %v4302
  %4304 = vmatprep.subr.mxu0 0.0
  %v4305 = vand.u32 %v3367, 4294901760
  %4306 = vmatpush1.msra.mxu0 %v4305
  %4307 = vmatprep.subr.mxu0 0.0
  %v4308 = vand.u32 %v3368, 4294901760
  %4309 = vmatpush1.msra.mxu0 %v4308
  %4310 = vmatprep.subr.mxu0 0.0
  %v4311 = vand.u32 %v3369, 4294901760
  %4312 = vmatpush1.msra.mxu0 %v4311
  %4313 = vmatprep.subr.mxu0 0.0
  %v4314 = vand.u32 %v3370, 4294901760
  %4315 = vmatpush1.msra.mxu0 %v4314
  %4316 = vmatprep.subr.mxu0 0.0
  %v4317 = vand.u32 %v3371, 4294901760
  %4318 = vmatpush1.msra.mxu0 %v4317
  %4319 = vmatprep.subr.mxu0 0.0
  %v4320 = vand.u32 %v3372, 4294901760
  %4321 = vmatpush1.msra.mxu0 %v4320
  %4322 = vmatprep.subr.mxu0 0.0
  %v4323 = vand.u32 %v3373, 4294901760
  %4324 = vmatpush1.msra.mxu0 %v4323
  %4325 = vmatprep.subr.mxu0 0.0
  %v4326 = vand.u32 %v3374, 4294901760
  %4327 = vmatpush1.msra.mxu0 %v4326
  %4328 = vmatprep.subr.mxu0 0.0
  %4329 = vmatpush1.msra.mxu0 0.0
  %4330 = vmatprep.subr.mxu0 0.0
  %4331 = vmatpush1.msra.mxu0 0.0
  %4332 = vmatprep.subr.mxu0 0.0
  %4333 = vmatpush1.msra.mxu0 0.0
  %4334 = vmatprep.subr.mxu0 0.0
  %4335 = vmatpush1.msra.mxu0 0.0
  %4336 = vmatprep.subr.mxu0 0.0
  %4337 = vmatpush1.msra.mxu0 0.0
  %4338 = vmatprep.subr.mxu0 0.0
  %4339 = vmatpush1.msra.mxu0 0.0
  %4340 = vmatprep.subr.mxu0 0.0
  %4341 = vmatpush1.msra.mxu0 0.0
  %4342 = vmatprep.subr.mxu0 0.0
  %4343 = vmatpush1.msra.mxu0 0.0
  %4344 = vmatprep.subr.mxu0 0.0
  %4345 = vmatpush1.msra.mxu0 0.0
  %4346 = vmatprep.subr.mxu0 0.0
  %4347 = vmatpush1.msra.mxu0 0.0
  %4348 = vmatprep.subr.mxu0 0.0
  %4349 = vmatpush1.msra.mxu0 0.0
  %4350 = vmatprep.subr.mxu0 0.0
  %4351 = vmatpush1.msra.mxu0 0.0
  %4352 = vmatprep.subr.mxu0 0.0
  %4353 = vmatpush1.msra.mxu0 0.0
  %4354 = vmatprep.subr.mxu0 0.0
  %4355 = vmatpush1.msra.mxu0 0.0
  %4356 = vmatprep.subr.mxu0 0.0
  %4357 = vmatpush1.msra.mxu0 0.0
  %4358 = vmatprep.subr.mxu0 0.0
  %4359 = vmatpush1.msra.mxu0 0.0
  %4360 = vmatprep.mubr.f32.mxu0 0.0
  %v4361 = vand.u32 %v3334, 4294901760
  %v4362 = vsub.f32 %v3334, %v4361
  %v4363 = vand.u32 %v4362, 4294901760
  %4364 = vmatmul.mubr.f32.gmra.mrb[0].mxu0 %v4363
  %v4365 = vpop.f32.mrb[0].mxu0
  %v4366 = vadd.f32 %v4109, %v4365
  %v4367 = vpop.f32.mrb[0].mxu0
  %4368 = vmatprep.mubr.f32.mxu0 0.0
  %v4369 = vand.u32 %v3335, 4294901760
  %v4370 = vsub.f32 %v3335, %v4369
  %v4371 = vand.u32 %v4370, 4294901760
  %4372 = vmatmul.mubr.f32.gmra.mrb[0].mxu0 %v4371
  %v4373 = vpop.f32.mrb[0].mxu0
  %v4374 = vadd.f32 %v4116, %v4373
  %v4375 = vpop.f32.mrb[0].mxu0
  %4376 = vmatprep.mubr.f32.mxu0 0.0
  %v4377 = vand.u32 %v3336, 4294901760
  %v4378 = vsub.f32 %v3336, %v4377
  %v4379 = vand.u32 %v4378, 4294901760
  %4380 = vmatmul.mubr.f32.gmra.mrb[0].mxu0 %v4379
  %v4381 = vpop.f32.mrb[0].mxu0
  %v4382 = vadd.f32 %v4123, %v4381
  %v4383 = vpop.f32.mrb[0].mxu0
  %4384 = vmatprep.mubr.f32.mxu0 0.0
  %v4385 = vand.u32 %v3337, 4294901760
  %v4386 = vsub.f32 %v3337, %v4385
  %v4387 = vand.u32 %v4386, 4294901760
  %4388 = vmatmul.mubr.f32.gmra.mrb[0].mxu0 %v4387
  %v4389 = vpop.f32.mrb[0].mxu0
  %v4390 = vadd.f32 %v4130, %v4389
  %v4391 = vpop.f32.mrb[0].mxu0
  %4392 = vmatprep.mubr.f32.mxu0 0.0
  %v4393 = vand.u32 %v3338, 4294901760
  %v4394 = vsub.f32 %v3338, %v4393
  %v4395 = vand.u32 %v4394, 4294901760
  %4396 = vmatmul.mubr.f32.gmra.mrb[0].mxu0 %v4395
  %v4397 = vpop.f32.mrb[0].mxu0
  %v4398 = vadd.f32 %v4137, %v4397
  %v4399 = vpop.f32.mrb[0].mxu0
  %4400 = vmatprep.mubr.f32.mxu0 0.0
  %v4401 = vand.u32 %v3339, 4294901760
  %v4402 = vsub.f32 %v3339, %v4401
  %v4403 = vand.u32 %v4402, 4294901760
  %4404 = vmatmul.mubr.f32.gmra.mrb[0].mxu0 %v4403
  %v4405 = vpop.f32.mrb[0].mxu0
  %v4406 = vadd.f32 %v4144, %v4405
  %v4407 = vpop.f32.mrb[0].mxu0
  %4408 = vmatprep.mubr.f32.mxu0 0.0
  %v4409 = vand.u32 %v3340, 4294901760
  %v4410 = vsub.f32 %v3340, %v4409
  %v4411 = vand.u32 %v4410, 4294901760
  %4412 = vmatmul.mubr.f32.gmra.mrb[0].mxu0 %v4411
  %v4413 = vpop.f32.mrb[0].mxu0
  %v4414 = vadd.f32 %v4151, %v4413
  %v4415 = vpop.f32.mrb[0].mxu0
  %4416 = vmatprep.mubr.f32.mxu0 0.0
  %v4417 = vand.u32 %v3341, 4294901760
  %v4418 = vsub.f32 %v3341, %v4417
  %v4419 = vand.u32 %v4418, 4294901760
  %4420 = vmatmul.mubr.f32.gmra.mrb[0].mxu0 %v4419
  %v4421 = vpop.f32.mrb[0].mxu0
  %v4422 = vadd.f32 %v4158, %v4421
  %v4423 = vpop.f32.mrb[0].mxu0
  %4424 = vmatprep.mubr.f32.mxu0 0.0
  %v4425 = vand.u32 %v3342, 4294901760
  %v4426 = vsub.f32 %v3342, %v4425
  %v4427 = vand.u32 %v4426, 4294901760
  %4428 = vmatmul.mubr.f32.gmra.mrb[0].mxu0 %v4427
  %v4429 = vpop.f32.mrb[0].mxu0
  %v4430 = vadd.f32 %v4165, %v4429
  %v4431 = vpop.f32.mrb[0].mxu0
  %4432 = vmatprep.mubr.f32.mxu0 0.0
  %v4433 = vand.u32 %v3343, 4294901760
  %v4434 = vsub.f32 %v3343, %v4433
  %v4435 = vand.u32 %v4434, 4294901760
  %4436 = vmatmul.mubr.f32.gmra.mrb[0].mxu0 %v4435
  %v4437 = vpop.f32.mrb[0].mxu0
  %v4438 = vadd.f32 %v4172, %v4437
  %v4439 = vpop.f32.mrb[0].mxu0
  %4440 = vmatprep.mubr.f32.mxu0 0.0
  %v4441 = vand.u32 %v3344, 4294901760
  %v4442 = vsub.f32 %v3344, %v4441
  %v4443 = vand.u32 %v4442, 4294901760
  %4444 = vmatmul.mubr.f32.gmra.mrb[0].mxu0 %v4443
  %v4445 = vpop.f32.mrb[0].mxu0
  %v4446 = vadd.f32 %v4179, %v4445
  %v4447 = vpop.f32.mrb[0].mxu0
  %4448 = vmatprep.mubr.f32.mxu0 0.0
  %v4449 = vand.u32 %v3345, 4294901760
  %v4450 = vsub.f32 %v3345, %v4449
  %v4451 = vand.u32 %v4450, 4294901760
  %4452 = vmatmul.mubr.f32.gmra.mrb[0].mxu0 %v4451
  %v4453 = vpop.f32.mrb[0].mxu0
  %v4454 = vadd.f32 %v4186, %v4453
  %v4455 = vpop.f32.mrb[0].mxu0
  %4456 = vmatprep.mubr.f32.mxu0 0.0
  %v4457 = vand.u32 %v3346, 4294901760
  %v4458 = vsub.f32 %v3346, %v4457
  %v4459 = vand.u32 %v4458, 4294901760
  %4460 = vmatmul.mubr.f32.gmra.mrb[0].mxu0 %v4459
  %v4461 = vpop.f32.mrb[0].mxu0
  %v4462 = vadd.f32 %v4193, %v4461
  %v4463 = vpop.f32.mrb[0].mxu0
  %4464 = vmatprep.mubr.f32.mxu0 0.0
  %v4465 = vand.u32 %v3347, 4294901760
  %v4466 = vsub.f32 %v3347, %v4465
  %v4467 = vand.u32 %v4466, 4294901760
  %4468 = vmatmul.mubr.f32.gmra.mrb[0].mxu0 %v4467
  %v4469 = vpop.f32.mrb[0].mxu0
  %v4470 = vadd.f32 %v4200, %v4469
  %v4471 = vpop.f32.mrb[0].mxu0
  %4472 = vmatprep.mubr.f32.mxu0 0.0
  %v4473 = vand.u32 %v3348, 4294901760
  %v4474 = vsub.f32 %v3348, %v4473
  %v4475 = vand.u32 %v4474, 4294901760
  %4476 = vmatmul.mubr.f32.gmra.mrb[0].mxu0 %v4475
  %v4477 = vpop.f32.mrb[0].mxu0
  %v4478 = vadd.f32 %v4207, %v4477
  %v4479 = vpop.f32.mrb[0].mxu0
  %4480 = vmatprep.mubr.f32.mxu0 0.0
  %v4481 = vand.u32 %v3349, 4294901760
  %v4482 = vsub.f32 %v3349, %v4481
  %v4483 = vand.u32 %v4482, 4294901760
  %4484 = vmatmul.mubr.f32.gmra.mrb[0].mxu0 %v4483
  %v4485 = vpop.f32.mrb[0].mxu0
  %v4486 = vadd.f32 %v4214, %v4485
  %v4487 = vpop.f32.mrb[0].mxu0
  %4488 = vmatprep.mubr.f32.mxu0 0.0
  %v4489 = vand.u32 %v3350, 4294901760
  %v4490 = vsub.f32 %v3350, %v4489
  %v4491 = vand.u32 %v4490, 4294901760
  %4492 = vmatmul.mubr.f32.gmra.mrb[0].mxu0 %v4491
  %v4493 = vpop.f32.mrb[0].mxu0
  %v4494 = vadd.f32 %v4221, %v4493
  %v4495 = vpop.f32.mrb[0].mxu0
  %4496 = vmatprep.mubr.f32.mxu0 0.0
  %v4497 = vand.u32 %v3351, 4294901760
  %v4498 = vsub.f32 %v3351, %v4497
  %v4499 = vand.u32 %v4498, 4294901760
  %4500 = vmatmul.mubr.f32.gmra.mrb[0].mxu0 %v4499
  %v4501 = vpop.f32.mrb[0].mxu0
  %v4502 = vadd.f32 %v4228, %v4501
  %v4503 = vpop.f32.mrb[0].mxu0
  %4504 = vmatprep.mubr.f32.mxu0 0.0
  %v4505 = vand.u32 %v3352, 4294901760
  %v4506 = vsub.f32 %v3352, %v4505
  %v4507 = vand.u32 %v4506, 4294901760
  %4508 = vmatmul.mubr.f32.gmra.mrb[0].mxu0 %v4507
  %v4509 = vpop.f32.mrb[0].mxu0
  %v4510 = vadd.f32 %v4235, %v4509
  %v4511 = vpop.f32.mrb[0].mxu0
  %4512 = vmatprep.mubr.f32.mxu0 0.0
  %v4513 = vand.u32 %v3353, 4294901760
  %v4514 = vsub.f32 %v3353, %v4513
  %v4515 = vand.u32 %v4514, 4294901760
  %4516 = vmatmul.mubr.f32.gmra.mrb[0].mxu0 %v4515
  %v4517 = vpop.f32.mrb[0].mxu0
  %v4518 = vadd.f32 %v4242, %v4517
  %v4519 = vpop.f32.mrb[0].mxu0
  %4520 = vmatprep.mubr.f32.mxu0 0.0
  %v4521 = vand.u32 %v3354, 4294901760
  %v4522 = vsub.f32 %v3354, %v4521
  %v4523 = vand.u32 %v4522, 4294901760
  %4524 = vmatmul.mubr.f32.gmra.mrb[0].mxu0 %v4523
  %v4525 = vpop.f32.mrb[0].mxu0
  %v4526 = vadd.f32 %v4249, %v4525
  %v4527 = vpop.f32.mrb[0].mxu0
  %4528 = vmatprep.mubr.f32.mxu0 0.0
  %v4529 = vand.u32 %v3355, 4294901760
  %v4530 = vsub.f32 %v3355, %v4529
  %v4531 = vand.u32 %v4530, 4294901760
  %4532 = vmatmul.mubr.f32.gmra.mrb[0].mxu0 %v4531
  %v4533 = vpop.f32.mrb[0].mxu0
  %v4534 = vadd.f32 %v4256, %v4533
  %v4535 = vpop.f32.mrb[0].mxu0
  %4536 = vmatprep.mubr.f32.mxu0 0.0
  %v4537 = vand.u32 %v3356, 4294901760
  %v4538 = vsub.f32 %v3356, %v4537
  %v4539 = vand.u32 %v4538, 4294901760
  %4540 = vmatmul.mubr.f32.gmra.mrb[0].mxu0 %v4539
  %v4541 = vpop.f32.mrb[0].mxu0
  %v4542 = vadd.f32 %v4263, %v4541
  %v4543 = vpop.f32.mrb[0].mxu0
  %4544 = vmatprep.mubr.f32.mxu0 0.0
  %v4545 = vand.u32 %v3357, 4294901760
  %v4546 = vsub.f32 %v3357, %v4545
  %v4547 = vand.u32 %v4546, 4294901760
  %4548 = vmatmul.mubr.f32.gmra.mrb[0].mxu0 %v4547
  %v4549 = vpop.f32.mrb[0].mxu0
  %v4550 = vadd.f32 %v4270, %v4549
  %v4551 = vpop.f32.mrb[0].mxu0
  %4552 = vmatprep.mubr.f32.mxu0 0.0
  %v4553 = vand.u32 %v3358, 4294901760
  %v4554 = vsub.f32 %v3358, %v4553
  %v4555 = vand.u32 %v4554, 4294901760
  %4556 = vmatmul.mubr.f32.gmra.mrb[0].mxu0 %v4555
  %v4557 = vpop.f32.mrb[0].mxu0
  %v4558 = vadd.f32 %v4277, %v4557
  %v4559 = vpop.f32.mrb[0].mxu0
  %4560 = vdwg.mxu0
  %4561 = vmatprep.subr.mxu0 0.0
  %v4562 = vand.u32 %v3359, 4294901760
  %v4563 = vsub.f32 %v3359, %v4562
  %v4564 = vand.u32 %v4563, 4294901760
  %4565 = vmatpush1.msra.mxu0 %v4564
  %4566 = vmatprep.subr.mxu0 0.0
  %v4567 = vand.u32 %v3360, 4294901760
  %v4568 = vsub.f32 %v3360, %v4567
  %v4569 = vand.u32 %v4568, 4294901760
  %4570 = vmatpush1.msra.mxu0 %v4569
  %4571 = vmatprep.subr.mxu0 0.0
  %v4572 = vand.u32 %v3361, 4294901760
  %v4573 = vsub.f32 %v3361, %v4572
  %v4574 = vand.u32 %v4573, 4294901760
  %4575 = vmatpush1.msra.mxu0 %v4574
  %4576 = vmatprep.subr.mxu0 0.0
  %v4577 = vand.u32 %v3362, 4294901760
  %v4578 = vsub.f32 %v3362, %v4577
  %v4579 = vand.u32 %v4578, 4294901760
  %4580 = vmatpush1.msra.mxu0 %v4579
  %4581 = vmatprep.subr.mxu0 0.0
  %v4582 = vand.u32 %v3363, 4294901760
  %v4583 = vsub.f32 %v3363, %v4582
  %v4584 = vand.u32 %v4583, 4294901760
  %4585 = vmatpush1.msra.mxu0 %v4584
  %4586 = vmatprep.subr.mxu0 0.0
  %v4587 = vand.u32 %v3364, 4294901760
  %v4588 = vsub.f32 %v3364, %v4587
  %v4589 = vand.u32 %v4588, 4294901760
  %4590 = vmatpush1.msra.mxu0 %v4589
  %4591 = vmatprep.subr.mxu0 0.0
  %v4592 = vand.u32 %v3365, 4294901760
  %v4593 = vsub.f32 %v3365, %v4592
  %v4594 = vand.u32 %v4593, 4294901760
  %4595 = vmatpush1.msra.mxu0 %v4594
  %4596 = vmatprep.subr.mxu0 0.0
  %v4597 = vand.u32 %v3366, 4294901760
  %v4598 = vsub.f32 %v3366, %v4597
  %v4599 = vand.u32 %v4598, 4294901760
  %4600 = vmatpush1.msra.mxu0 %v4599
  %4601 = vmatprep.subr.mxu0 0.0
  %v4602 = vand.u32 %v3367, 4294901760
  %v4603 = vsub.f32 %v3367, %v4602
  %v4604 = vand.u32 %v4603, 4294901760
  %4605 = vmatpush1.msra.mxu0 %v4604
  %4606 = vmatprep.subr.mxu0 0.0
  %v4607 = vand.u32 %v3368, 4294901760
  %v4608 = vsub.f32 %v3368, %v4607
  %v4609 = vand.u32 %v4608, 4294901760
  %4610 = vmatpush1.msra.mxu0 %v4609
  %4611 = vmatprep.subr.mxu0 0.0
  %v4612 = vand.u32 %v3369, 4294901760
  %v4613 = vsub.f32 %v3369, %v4612
  %v4614 = vand.u32 %v4613, 4294901760
  %4615 = vmatpush1.msra.mxu0 %v4614
  %4616 = vmatprep.subr.mxu0 0.0
  %v4617 = vand.u32 %v3370, 4294901760
  %v4618 = vsub.f32 %v3370, %v4617
  %v4619 = vand.u32 %v4618, 4294901760
  %4620 = vmatpush1.msra.mxu0 %v4619
  %4621 = vmatprep.subr.mxu0 0.0
  %v4622 = vand.u32 %v3371, 4294901760
  %v4623 = vsub.f32 %v3371, %v4622
  %v4624 = vand.u32 %v4623, 4294901760
  %4625 = vmatpush1.msra.mxu0 %v4624
  %4626 = vmatprep.subr.mxu0 0.0
  %v4627 = vand.u32 %v3372, 4294901760
  %v4628 = vsub.f32 %v3372, %v4627
  %v4629 = vand.u32 %v4628, 4294901760
  %4630 = vmatpush1.msra.mxu0 %v4629
  %4631 = vmatprep.subr.mxu0 0.0
  %v4632 = vand.u32 %v3373, 4294901760
  %v4633 = vsub.f32 %v3373, %v4632
  %v4634 = vand.u32 %v4633, 4294901760
  %4635 = vmatpush1.msra.mxu0 %v4634
  %4636 = vmatprep.subr.mxu0 0.0
  %v4637 = vand.u32 %v3374, 4294901760
  %v4638 = vsub.f32 %v3374, %v4637
  %v4639 = vand.u32 %v4638, 4294901760
  %4640 = vmatpush1.msra.mxu0 %v4639
  %4641 = vmatprep.subr.mxu0 0.0
  %4642 = vmatpush1.msra.mxu0 0.0
  %4643 = vmatprep.subr.mxu0 0.0
  %4644 = vmatpush1.msra.mxu0 0.0
  %4645 = vmatprep.subr.mxu0 0.0
  %4646 = vmatpush1.msra.mxu0 0.0
  %4647 = vmatprep.subr.mxu0 0.0
  %4648 = vmatpush1.msra.mxu0 0.0
  %4649 = vmatprep.subr.mxu0 0.0
  %4650 = vmatpush1.msra.mxu0 0.0
  %4651 = vmatprep.subr.mxu0 0.0
  %4652 = vmatpush1.msra.mxu0 0.0
  %4653 = vmatprep.subr.mxu0 0.0
  %4654 = vmatpush1.msra.mxu0 0.0
  %4655 = vmatprep.subr.mxu0 0.0
  %4656 = vmatpush1.msra.mxu0 0.0
  %4657 = vmatprep.subr.mxu0 0.0
  %4658 = vmatpush1.msra.mxu0 0.0
  %4659 = vmatprep.subr.mxu0 0.0
  %4660 = vmatpush1.msra.mxu0 0.0
  %4661 = vmatprep.subr.mxu0 0.0
  %4662 = vmatpush1.msra.mxu0 0.0
  %4663 = vmatprep.subr.mxu0 0.0
  %4664 = vmatpush1.msra.mxu0 0.0
  %4665 = vmatprep.subr.mxu0 0.0
  %4666 = vmatpush1.msra.mxu0 0.0
  %4667 = vmatprep.subr.mxu0 0.0
  %4668 = vmatpush1.msra.mxu0 0.0
  %4669 = vmatprep.subr.mxu0 0.0
  %4670 = vmatpush1.msra.mxu0 0.0
  %4671 = vmatprep.subr.mxu0 0.0
  %4672 = vmatpush1.msra.mxu0 0.0
  %4673 = vmatprep.mubr.f32.mxu0 0.0
  %v4674 = vand.u32 %v3334, 4294901760
  %4675 = vmatmul.mubr.f32.gmra.mrb[0].mxu0 %v4674
  %v4676 = vpop.f32.mrb[0].mxu0
  %v4677 = vadd.f32 %v4366, %v4676
  %v4678 = vpop.f32.mrb[0].mxu0
  %4679 = vmatprep.mubr.f32.mxu0 0.0
  %v4680 = vand.u32 %v3335, 4294901760
  %4681 = vmatmul.mubr.f32.gmra.mrb[0].mxu0 %v4680
  %v4682 = vpop.f32.mrb[0].mxu0
  %v4683 = vadd.f32 %v4374, %v4682
  %v4684 = vpop.f32.mrb[0].mxu0
  %4685 = vmatprep.mubr.f32.mxu0 0.0
  %v4686 = vand.u32 %v3336, 4294901760
  %4687 = vmatmul.mubr.f32.gmra.mrb[0].mxu0 %v4686
  %v4688 = vpop.f32.mrb[0].mxu0
  %v4689 = vadd.f32 %v4382, %v4688
  %v4690 = vpop.f32.mrb[0].mxu0
  %4691 = vmatprep.mubr.f32.mxu0 0.0
  %v4692 = vand.u32 %v3337, 4294901760
  %4693 = vmatmul.mubr.f32.gmra.mrb[0].mxu0 %v4692
  %v4694 = vpop.f32.mrb[0].mxu0
  %v4695 = vadd.f32 %v4390, %v4694
  %v4696 = vpop.f32.mrb[0].mxu0
  %4697 = vmatprep.mubr.f32.mxu0 0.0
  %v4698 = vand.u32 %v3338, 4294901760
  %4699 = vmatmul.mubr.f32.gmra.mrb[0].mxu0 %v4698
  %v4700 = vpop.f32.mrb[0].mxu0
  %v4701 = vadd.f32 %v4398, %v4700
  %v4702 = vpop.f32.mrb[0].mxu0
  %4703 = vmatprep.mubr.f32.mxu0 0.0
  %v4704 = vand.u32 %v3339, 4294901760
  %4705 = vmatmul.mubr.f32.gmra.mrb[0].mxu0 %v4704
  %v4706 = vpop.f32.mrb[0].mxu0
  %v4707 = vadd.f32 %v4406, %v4706
  %v4708 = vpop.f32.mrb[0].mxu0
  %4709 = vmatprep.mubr.f32.mxu0 0.0
  %v4710 = vand.u32 %v3340, 4294901760
  %4711 = vmatmul.mubr.f32.gmra.mrb[0].mxu0 %v4710
  %v4712 = vpop.f32.mrb[0].mxu0
  %v4713 = vadd.f32 %v4414, %v4712
  %v4714 = vpop.f32.mrb[0].mxu0
  %4715 = vmatprep.mubr.f32.mxu0 0.0
  %v4716 = vand.u32 %v3341, 4294901760
  %4717 = vmatmul.mubr.f32.gmra.mrb[0].mxu0 %v4716
  %v4718 = vpop.f32.mrb[0].mxu0
  %v4719 = vadd.f32 %v4422, %v4718
  %v4720 = vpop.f32.mrb[0].mxu0
  %4721 = vmatprep.mubr.f32.mxu0 0.0
  %v4722 = vand.u32 %v3342, 4294901760
  %4723 = vmatmul.mubr.f32.gmra.mrb[0].mxu0 %v4722
  %v4724 = vpop.f32.mrb[0].mxu0
  %v4725 = vadd.f32 %v4430, %v4724
  %v4726 = vpop.f32.mrb[0].mxu0
  %4727 = vmatprep.mubr.f32.mxu0 0.0
  %v4728 = vand.u32 %v3343, 4294901760
  %4729 = vmatmul.mubr.f32.gmra.mrb[0].mxu0 %v4728
  %v4730 = vpop.f32.mrb[0].mxu0
  %v4731 = vadd.f32 %v4438, %v4730
  %v4732 = vpop.f32.mrb[0].mxu0
  %4733 = vmatprep.mubr.f32.mxu0 0.0
  %v4734 = vand.u32 %v3344, 4294901760
  %4735 = vmatmul.mubr.f32.gmra.mrb[0].mxu0 %v4734
  %v4736 = vpop.f32.mrb[0].mxu0
  %v4737 = vadd.f32 %v4446, %v4736
  %v4738 = vpop.f32.mrb[0].mxu0
  %4739 = vmatprep.mubr.f32.mxu0 0.0
  %v4740 = vand.u32 %v3345, 4294901760
  %4741 = vmatmul.mubr.f32.gmra.mrb[0].mxu0 %v4740
  %v4742 = vpop.f32.mrb[0].mxu0
  %v4743 = vadd.f32 %v4454, %v4742
  %v4744 = vpop.f32.mrb[0].mxu0
  %4745 = vmatprep.mubr.f32.mxu0 0.0
  %v4746 = vand.u32 %v3346, 4294901760
  %4747 = vmatmul.mubr.f32.gmra.mrb[0].mxu0 %v4746
  %v4748 = vpop.f32.mrb[0].mxu0
  %v4749 = vadd.f32 %v4462, %v4748
  %v4750 = vpop.f32.mrb[0].mxu0
  %4751 = vmatprep.mubr.f32.mxu0 0.0
  %v4752 = vand.u32 %v3347, 4294901760
  %4753 = vmatmul.mubr.f32.gmra.mrb[0].mxu0 %v4752
  %v4754 = vpop.f32.mrb[0].mxu0
  %v4755 = vadd.f32 %v4470, %v4754
  %v4756 = vpop.f32.mrb[0].mxu0
  %4757 = vmatprep.mubr.f32.mxu0 0.0
  %v4758 = vand.u32 %v3348, 4294901760
  %4759 = vmatmul.mubr.f32.gmra.mrb[0].mxu0 %v4758
  %v4760 = vpop.f32.mrb[0].mxu0
  %v4761 = vadd.f32 %v4478, %v4760
  %v4762 = vpop.f32.mrb[0].mxu0
  %4763 = vmatprep.mubr.f32.mxu0 0.0
  %v4764 = vand.u32 %v3349, 4294901760
  %4765 = vmatmul.mubr.f32.gmra.mrb[0].mxu0 %v4764
  %v4766 = vpop.f32.mrb[0].mxu0
  %v4767 = vadd.f32 %v4486, %v4766
  %v4768 = vpop.f32.mrb[0].mxu0
  %4769 = vmatprep.mubr.f32.mxu0 0.0
  %v4770 = vand.u32 %v3350, 4294901760
  %4771 = vmatmul.mubr.f32.gmra.mrb[0].mxu0 %v4770
  %v4772 = vpop.f32.mrb[0].mxu0
  %v4773 = vadd.f32 %v4494, %v4772
  %v4774 = vpop.f32.mrb[0].mxu0
  %4775 = vmatprep.mubr.f32.mxu0 0.0
  %v4776 = vand.u32 %v3351, 4294901760
  %4777 = vmatmul.mubr.f32.gmra.mrb[0].mxu0 %v4776
  %v4778 = vpop.f32.mrb[0].mxu0
  %v4779 = vadd.f32 %v4502, %v4778
  %v4780 = vpop.f32.mrb[0].mxu0
  %4781 = vmatprep.mubr.f32.mxu0 0.0
  %v4782 = vand.u32 %v3352, 4294901760
  %4783 = vmatmul.mubr.f32.gmra.mrb[0].mxu0 %v4782
  %v4784 = vpop.f32.mrb[0].mxu0
  %v4785 = vadd.f32 %v4510, %v4784
  %v4786 = vpop.f32.mrb[0].mxu0
  %4787 = vmatprep.mubr.f32.mxu0 0.0
  %v4788 = vand.u32 %v3353, 4294901760
  %4789 = vmatmul.mubr.f32.gmra.mrb[0].mxu0 %v4788
  %v4790 = vpop.f32.mrb[0].mxu0
  %v4791 = vadd.f32 %v4518, %v4790
  %v4792 = vpop.f32.mrb[0].mxu0
  %4793 = vmatprep.mubr.f32.mxu0 0.0
  %v4794 = vand.u32 %v3354, 4294901760
  %4795 = vmatmul.mubr.f32.gmra.mrb[0].mxu0 %v4794
  %v4796 = vpop.f32.mrb[0].mxu0
  %v4797 = vadd.f32 %v4526, %v4796
  %v4798 = vpop.f32.mrb[0].mxu0
  %4799 = vmatprep.mubr.f32.mxu0 0.0
  %v4800 = vand.u32 %v3355, 4294901760
  %4801 = vmatmul.mubr.f32.gmra.mrb[0].mxu0 %v4800
  %v4802 = vpop.f32.mrb[0].mxu0
  %v4803 = vadd.f32 %v4534, %v4802
  %v4804 = vpop.f32.mrb[0].mxu0
  %4805 = vmatprep.mubr.f32.mxu0 0.0
  %v4806 = vand.u32 %v3356, 4294901760
  %4807 = vmatmul.mubr.f32.gmra.mrb[0].mxu0 %v4806
  %v4808 = vpop.f32.mrb[0].mxu0
  %v4809 = vadd.f32 %v4542, %v4808
  %v4810 = vpop.f32.mrb[0].mxu0
  %4811 = vmatprep.mubr.f32.mxu0 0.0
  %v4812 = vand.u32 %v3357, 4294901760
  %4813 = vmatmul.mubr.f32.gmra.mrb[0].mxu0 %v4812
  %v4814 = vpop.f32.mrb[0].mxu0
  %v4815 = vadd.f32 %v4550, %v4814
  %v4816 = vpop.f32.mrb[0].mxu0
  %4817 = vmatprep.mubr.f32.mxu0 0.0
  %v4818 = vand.u32 %v3358, 4294901760
  %4819 = vmatmul.mubr.f32.gmra.mrb[0].mxu0 %v4818
  %v4820 = vpop.f32.mrb[0].mxu0
  %v4821 = vadd.f32 %v4558, %v4820
  %v4822 = vpop.f32.mrb[0].mxu0
  %4823 = vdwg.mxu0
  %4824 = vmatprep.subr.mxu0 0.0
  %v4825 = vand.u32 %v3359, 4294901760
  %4826 = vmatpush1.msra.mxu0 %v4825
  %4827 = vmatprep.subr.mxu0 0.0
  %v4828 = vand.u32 %v3360, 4294901760
  %4829 = vmatpush1.msra.mxu0 %v4828
  %4830 = vmatprep.subr.mxu0 0.0
  %v4831 = vand.u32 %v3361, 4294901760
  %4832 = vmatpush1.msra.mxu0 %v4831
  %4833 = vmatprep.subr.mxu0 0.0
  %v4834 = vand.u32 %v3362, 4294901760
  %4835 = vmatpush1.msra.mxu0 %v4834
  %4836 = vmatprep.subr.mxu0 0.0
  %v4837 = vand.u32 %v3363, 4294901760
  %4838 = vmatpush1.msra.mxu0 %v4837
  %4839 = vmatprep.subr.mxu0 0.0
  %v4840 = vand.u32 %v3364, 4294901760
  %4841 = vmatpush1.msra.mxu0 %v4840
  %4842 = vmatprep.subr.mxu0 0.0
  %v4843 = vand.u32 %v3365, 4294901760
  %4844 = vmatpush1.msra.mxu0 %v4843
  %4845 = vmatprep.subr.mxu0 0.0
  %v4846 = vand.u32 %v3366, 4294901760
  %4847 = vmatpush1.msra.mxu0 %v4846
  %4848 = vmatprep.subr.mxu0 0.0
  %v4849 = vand.u32 %v3367, 4294901760
  %4850 = vmatpush1.msra.mxu0 %v4849
  %4851 = vmatprep.subr.mxu0 0.0
  %v4852 = vand.u32 %v3368, 4294901760
  %4853 = vmatpush1.msra.mxu0 %v4852
  %4854 = vmatprep.subr.mxu0 0.0
  %v4855 = vand.u32 %v3369, 4294901760
  %4856 = vmatpush1.msra.mxu0 %v4855
  %4857 = vmatprep.subr.mxu0 0.0
  %v4858 = vand.u32 %v3370, 4294901760
  %4859 = vmatpush1.msra.mxu0 %v4858
  %4860 = vmatprep.subr.mxu0 0.0
  %v4861 = vand.u32 %v3371, 4294901760
  %4862 = vmatpush1.msra.mxu0 %v4861
  %4863 = vmatprep.subr.mxu0 0.0
  %v4864 = vand.u32 %v3372, 4294901760
  %4865 = vmatpush1.msra.mxu0 %v4864
  %4866 = vmatprep.subr.mxu0 0.0
  %v4867 = vand.u32 %v3373, 4294901760
  %4868 = vmatpush1.msra.mxu0 %v4867
  %4869 = vmatprep.subr.mxu0 0.0
  %v4870 = vand.u32 %v3374, 4294901760
  %4871 = vmatpush1.msra.mxu0 %v4870
  %4872 = vmatprep.subr.mxu0 0.0
  %4873 = vmatpush1.msra.mxu0 0.0
  %4874 = vmatprep.subr.mxu0 0.0
  %4875 = vmatpush1.msra.mxu0 0.0
  %4876 = vmatprep.subr.mxu0 0.0
  %4877 = vmatpush1.msra.mxu0 0.0
  %4878 = vmatprep.subr.mxu0 0.0
  %4879 = vmatpush1.msra.mxu0 0.0
  %4880 = vmatprep.subr.mxu0 0.0
  %4881 = vmatpush1.msra.mxu0 0.0
  %4882 = vmatprep.subr.mxu0 0.0
  %4883 = vmatpush1.msra.mxu0 0.0
  %4884 = vmatprep.subr.mxu0 0.0
  %4885 = vmatpush1.msra.mxu0 0.0
  %4886 = vmatprep.subr.mxu0 0.0
  %4887 = vmatpush1.msra.mxu0 0.0
  %4888 = vmatprep.subr.mxu0 0.0
  %4889 = vmatpush1.msra.mxu0 0.0
  %4890 = vmatprep.subr.mxu0 0.0
  %4891 = vmatpush1.msra.mxu0 0.0
  %4892 = vmatprep.subr.mxu0 0.0
  %4893 = vmatpush1.msra.mxu0 0.0
  %4894 = vmatprep.subr.mxu0 0.0
  %4895 = vmatpush1.msra.mxu0 0.0
  %4896 = vmatprep.subr.mxu0 0.0
  %4897 = vmatpush1.msra.mxu0 0.0
  %4898 = vmatprep.subr.mxu0 0.0
  %4899 = vmatpush1.msra.mxu0 0.0
  %4900 = vmatprep.subr.mxu0 0.0
  %4901 = vmatpush1.msra.mxu0 0.0
  %4902 = vmatprep.subr.mxu0 0.0
  %4903 = vmatpush1.msra.mxu0 0.0
  %4904 = vmatprep.mubr.f32.mxu0 0.0
  %v4905 = vand.u32 %v3334, 4294901760
  %4906 = vmatmul.mubr.f32.gmra.mrb[0].mxu0 %v4905
  %v4907 = vpop.f32.mrb[0].mxu0
  %v4908 = vadd.f32 %v4677, %v4907
  %v4909 = vpop.f32.mrb[0].mxu0
  %4910 = vmatprep.mubr.f32.mxu0 0.0
  %v4911 = vand.u32 %v3335, 4294901760
  %4912 = vmatmul.mubr.f32.gmra.mrb[0].mxu0 %v4911
  %v4913 = vpop.f32.mrb[0].mxu0
  %v4914 = vadd.f32 %v4683, %v4913
  %v4915 = vpop.f32.mrb[0].mxu0
  %4916 = vmatprep.mubr.f32.mxu0 0.0
  %v4917 = vand.u32 %v3336, 4294901760
  %4918 = vmatmul.mubr.f32.gmra.mrb[0].mxu0 %v4917
  %v4919 = vpop.f32.mrb[0].mxu0
  %v4920 = vadd.f32 %v4689, %v4919
  %v4921 = vpop.f32.mrb[0].mxu0
  %4922 = vmatprep.mubr.f32.mxu0 0.0
  %v4923 = vand.u32 %v3337, 4294901760
  %4924 = vmatmul.mubr.f32.gmra.mrb[0].mxu0 %v4923
  %v4925 = vpop.f32.mrb[0].mxu0
  %v4926 = vadd.f32 %v4695, %v4925
  %v4927 = vpop.f32.mrb[0].mxu0
  %4928 = vmatprep.mubr.f32.mxu0 0.0
  %v4929 = vand.u32 %v3338, 4294901760
  %4930 = vmatmul.mubr.f32.gmra.mrb[0].mxu0 %v4929
  %v4931 = vpop.f32.mrb[0].mxu0
  %v4932 = vadd.f32 %v4701, %v4931
  %v4933 = vpop.f32.mrb[0].mxu0
  %4934 = vmatprep.mubr.f32.mxu0 0.0
  %v4935 = vand.u32 %v3339, 4294901760
  %4936 = vmatmul.mubr.f32.gmra.mrb[0].mxu0 %v4935
  %v4937 = vpop.f32.mrb[0].mxu0
  %v4938 = vadd.f32 %v4707, %v4937
  %v4939 = vpop.f32.mrb[0].mxu0
  %4940 = vmatprep.mubr.f32.mxu0 0.0
  %v4941 = vand.u32 %v3340, 4294901760
  %4942 = vmatmul.mubr.f32.gmra.mrb[0].mxu0 %v4941
  %v4943 = vpop.f32.mrb[0].mxu0
  %v4944 = vadd.f32 %v4713, %v4943
  %v4945 = vpop.f32.mrb[0].mxu0
  %4946 = vmatprep.mubr.f32.mxu0 0.0
  %v4947 = vand.u32 %v3341, 4294901760
  %4948 = vmatmul.mubr.f32.gmra.mrb[0].mxu0 %v4947
  %v4949 = vpop.f32.mrb[0].mxu0
  %v4950 = vadd.f32 %v4719, %v4949
  %v4951 = vpop.f32.mrb[0].mxu0
  %4952 = vmatprep.mubr.f32.mxu0 0.0
  %v4953 = vand.u32 %v3342, 4294901760
  %4954 = vmatmul.mubr.f32.gmra.mrb[0].mxu0 %v4953
  %v4955 = vpop.f32.mrb[0].mxu0
  %v4956 = vadd.f32 %v4725, %v4955
  %v4957 = vpop.f32.mrb[0].mxu0
  %4958 = vmatprep.mubr.f32.mxu0 0.0
  %v4959 = vand.u32 %v3343, 4294901760
  %4960 = vmatmul.mubr.f32.gmra.mrb[0].mxu0 %v4959
  %v4961 = vpop.f32.mrb[0].mxu0
  %v4962 = vadd.f32 %v4731, %v4961
  %v4963 = vpop.f32.mrb[0].mxu0
  %4964 = vmatprep.mubr.f32.mxu0 0.0
  %v4965 = vand.u32 %v3344, 4294901760
  %4966 = vmatmul.mubr.f32.gmra.mrb[0].mxu0 %v4965
  %v4967 = vpop.f32.mrb[0].mxu0
  %v4968 = vadd.f32 %v4737, %v4967
  %v4969 = vpop.f32.mrb[0].mxu0
  %4970 = vmatprep.mubr.f32.mxu0 0.0
  %v4971 = vand.u32 %v3345, 4294901760
  %4972 = vmatmul.mubr.f32.gmra.mrb[0].mxu0 %v4971
  %v4973 = vpop.f32.mrb[0].mxu0
  %v4974 = vadd.f32 %v4743, %v4973
  %v4975 = vpop.f32.mrb[0].mxu0
  %4976 = vmatprep.mubr.f32.mxu0 0.0
  %v4977 = vand.u32 %v3346, 4294901760
  %4978 = vmatmul.mubr.f32.gmra.mrb[0].mxu0 %v4977
  %v4979 = vpop.f32.mrb[0].mxu0
  %v4980 = vadd.f32 %v4749, %v4979
  %v4981 = vpop.f32.mrb[0].mxu0
  %4982 = vmatprep.mubr.f32.mxu0 0.0
  %v4983 = vand.u32 %v3347, 4294901760
  %4984 = vmatmul.mubr.f32.gmra.mrb[0].mxu0 %v4983
  %v4985 = vpop.f32.mrb[0].mxu0
  %v4986 = vadd.f32 %v4755, %v4985
  %v4987 = vpop.f32.mrb[0].mxu0
  %4988 = vmatprep.mubr.f32.mxu0 0.0
  %v4989 = vand.u32 %v3348, 4294901760
  %4990 = vmatmul.mubr.f32.gmra.mrb[0].mxu0 %v4989
  %v4991 = vpop.f32.mrb[0].mxu0
  %v4992 = vadd.f32 %v4761, %v4991
  %v4993 = vpop.f32.mrb[0].mxu0
  %4994 = vmatprep.mubr.f32.mxu0 0.0
  %v4995 = vand.u32 %v3349, 4294901760
  %4996 = vmatmul.mubr.f32.gmra.mrb[0].mxu0 %v4995
  %v4997 = vpop.f32.mrb[0].mxu0
  %v4998 = vadd.f32 %v4767, %v4997
  %v4999 = vpop.f32.mrb[0].mxu0
  %5000 = vmatprep.mubr.f32.mxu0 0.0
  %v5001 = vand.u32 %v3350, 4294901760
  %5002 = vmatmul.mubr.f32.gmra.mrb[0].mxu0 %v5001
  %v5003 = vpop.f32.mrb[0].mxu0
  %v5004 = vadd.f32 %v4773, %v5003
  %v5005 = vpop.f32.mrb[0].mxu0
  %5006 = vmatprep.mubr.f32.mxu0 0.0
  %v5007 = vand.u32 %v3351, 4294901760
  %5008 = vmatmul.mubr.f32.gmra.mrb[0].mxu0 %v5007
  %v5009 = vpop.f32.mrb[0].mxu0
  %v5010 = vadd.f32 %v4779, %v5009
  %v5011 = vpop.f32.mrb[0].mxu0
  %5012 = vmatprep.mubr.f32.mxu0 0.0
  %v5013 = vand.u32 %v3352, 4294901760
  %5014 = vmatmul.mubr.f32.gmra.mrb[0].mxu0 %v5013
  %v5015 = vpop.f32.mrb[0].mxu0
  %v5016 = vadd.f32 %v4785, %v5015
  %v5017 = vpop.f32.mrb[0].mxu0
  %5018 = vmatprep.mubr.f32.mxu0 0.0
  %v5019 = vand.u32 %v3353, 4294901760
  %5020 = vmatmul.mubr.f32.gmra.mrb[0].mxu0 %v5019
  %v5021 = vpop.f32.mrb[0].mxu0
  %v5022 = vadd.f32 %v4791, %v5021
  %v5023 = vpop.f32.mrb[0].mxu0
  %5024 = vmatprep.mubr.f32.mxu0 0.0
  %v5025 = vand.u32 %v3354, 4294901760
  %5026 = vmatmul.mubr.f32.gmra.mrb[0].mxu0 %v5025
  %v5027 = vpop.f32.mrb[0].mxu0
  %v5028 = vadd.f32 %v4797, %v5027
  %v5029 = vpop.f32.mrb[0].mxu0
  %5030 = vmatprep.mubr.f32.mxu0 0.0
  %v5031 = vand.u32 %v3355, 4294901760
  %5032 = vmatmul.mubr.f32.gmra.mrb[0].mxu0 %v5031
  %v5033 = vpop.f32.mrb[0].mxu0
  %v5034 = vadd.f32 %v4803, %v5033
  %v5035 = vpop.f32.mrb[0].mxu0
  %5036 = vmatprep.mubr.f32.mxu0 0.0
  %v5037 = vand.u32 %v3356, 4294901760
  %5038 = vmatmul.mubr.f32.gmra.mrb[0].mxu0 %v5037
  %v5039 = vpop.f32.mrb[0].mxu0
  %v5040 = vadd.f32 %v4809, %v5039
  %v5041 = vpop.f32.mrb[0].mxu0
  %5042 = vmatprep.mubr.f32.mxu0 0.0
  %v5043 = vand.u32 %v3357, 4294901760
  %5044 = vmatmul.mubr.f32.gmra.mrb[0].mxu0 %v5043
  %v5045 = vpop.f32.mrb[0].mxu0
  %v5046 = vadd.f32 %v4815, %v5045
  %v5047 = vpop.f32.mrb[0].mxu0
  %5048 = vmatprep.mubr.f32.mxu0 0.0
  %v5049 = vand.u32 %v3358, 4294901760
  %5050 = vmatmul.mubr.f32.gmra.mrb[0].mxu0 %v5049
  %v5051 = vpop.f32.mrb[0].mxu0
  %v5052 = vadd.f32 %v4821, %v5051
  %v5053 = vpop.f32.mrb[0].mxu0
  %5054 = vdwg.mxu0
  %vm5055 = vcmask 23552
  %5056 = vst.msk [vmem:[%s7] sm:$0xff] %vm5055, %v4908
  %5057 = vst.msk [vmem:[%s7 + $0x8] sm:$0xff] %vm5055, %v4914
  %5058 = vst.msk [vmem:[%s7 + $0x10] sm:$0xff] %vm5055, %v4920
  %5059 = vst.msk [vmem:[%s7 + $0x18] sm:$0xff] %vm5055, %v4926
  %5060 = vst.msk [vmem:[%s7 + $0x20] sm:$0xff] %vm5055, %v4932
  %5061 = vst.msk [vmem:[%s7 + $0x28] sm:$0xff] %vm5055, %v4938
  %5062 = vst.msk [vmem:[%s7 + $0x30] sm:$0xff] %vm5055, %v4944
  %5063 = vst.msk [vmem:[%s7 + $0x38] sm:$0xff] %vm5055, %v4950
  %5064 = vst.msk [vmem:[%s7 + $0x40] sm:$0xff] %vm5055, %v4956
  %5065 = vst.msk [vmem:[%s7 + $0x48] sm:$0xff] %vm5055, %v4962
  %5066 = vst.msk [vmem:[%s7 + $0x50] sm:$0xff] %vm5055, %v4968
  %5067 = vst.msk [vmem:[%s7 + $0x58] sm:$0xff] %vm5055, %v4974
  %5068 = vst.msk [vmem:[%s7 + $0x60] sm:$0xff] %vm5055, %v4980
  %5069 = vst.msk [vmem:[%s7 + $0x68] sm:$0xff] %vm5055, %v4986
  %5070 = vst.msk [vmem:[%s7 + $0x70] sm:$0xff] %vm5055, %v4992
  %5071 = vst.msk [vmem:[%s7 + $0x78] sm:$0xff] %vm5055, %v4998
  %5072 = vst.msk [vmem:[%s7 + $0x80] sm:$0xff] %vm5055, %v5004
  %5073 = vst.msk [vmem:[%s7 + $0x88] sm:$0xff] %vm5055, %v5010
  %5074 = vst.msk [vmem:[%s7 + $0x90] sm:$0xff] %vm5055, %v5016
  %5075 = vst.msk [vmem:[%s7 + $0x98] sm:$0xff] %vm5055, %v5022
  %5076 = vst.msk [vmem:[%s7 + $0xa0] sm:$0xff] %vm5055, %v5028
  %5077 = vst.msk [vmem:[%s7 + $0xa8] sm:$0xff] %vm5055, %v5034
  %5078 = vst.msk [vmem:[%s7 + $0xb0] sm:$0xff] %vm5055, %v5040
  %5079 = vst.msk [vmem:[%s7 + $0xb8] sm:$0xff] %vm5055, %v5046
  %5080 = vst.msk [vmem:[%s7 + $0xc0] sm:$0xff] %vm5055, %v5052
  // Predicated region
  $region30: #{tpu_custom_call.1} parent=0 // pred_check
    _
  $region31: #{tpu_custom_call.1} parent=0 // pred_check_branch
    %5082 = sbr.rel (0) target = $region33
  $region32: #{tpu_custom_call.1} parent=0 // pred_region
    _
  $region33: #{tpu_custom_call.1} parent=0 // pred_fallthru
    _
  // Predicated region
  $region34: #{tpu_custom_call.1} parent=0 // pred_check
    _
  $region35: #{tpu_custom_call.1} parent=0 // pred_check_branch
    %5084 = sbr.rel (0) target = $region37
  $region36: #{tpu_custom_call.1} parent=0 // pred_region
    _
  $region37: #{tpu_custom_call.1} parent=0 // pred_fallthru
    _

</llo_original>
